<compile_context>
chip_gen: v7x
topology: tpu7x:2x2x1
jax: 0.10.0
libtpu: 0.0.40
codegen_flags: <defaults>
</compile_context>

<pallas_src>
import jax
import jax.numpy as jnp
from jax.experimental import pallas as pl
from jax.experimental.pallas import tpu as pltpu

_BN_EPS = 1e-5
_LANE = 128
_VMEM_LIMIT_BYTES = 48 * 1024 * 1024   # <= v7x 64 MiB physical; fine on v5e/v6e


def _round_up(x, m):
    return ((x + m - 1) // m) * m


# -----------------------------------------------------------------------------
# Kernel 1: fused 4x4 / stride-2 conv (space-to-depth tap form) + BN partials
# -----------------------------------------------------------------------------
def _conv_s2_stats_kernel(xs_ref, w_ref, y_ref, sum_ref, sq_ref):
    # xs_ref : (HS, WS, C4)   padded, space-to-depth'd, already-activated input
    # w_ref  : (4, C4, Np)    tap-major weights, tap = 2*dh + dw
    # y_ref  : (TOH, OW, Np)  raw (pre-BN) conv output tile
    # sum/sq : (1, 1, Np)     this tile's per-channel sum / sum of squares
    toh, ow, npad = y_ref.shape
    c4 = xs_ref.shape[-1]
    oh0 = pl.program_id(1) * toh

    s_acc = jnp.zeros((1, npad), jnp.float32)
    q_acc = jnp.zeros((1, npad), jnp.float32)
    for r in range(toh):                              # static unroll (toh <= 8)
        acc = jnp.zeros((ow, npad), jnp.float32)
        for dh in range(2):
            for dw in range(2):
                xt = xs_ref[pl.ds(oh0 + r + dh, 1), pl.ds(dw, ow), :]
                xt = xt.reshape(ow, c4)               # drop leading unit dim
                acc = acc + jnp.dot(xt, w_ref[2 * dh + dw],
                                    preferred_element_type=jnp.float32)
        y_ref[r] = acc.astype(y_ref.dtype)
        s_acc = s_acc + jnp.sum(acc, axis=0, keepdims=True)
        q_acc = q_acc + jnp.sum(acc * acc, axis=0, keepdims=True)
    sum_ref[...] = s_acc.reshape(sum_ref.shape)
    sq_ref[...] = q_acc.reshape(sq_ref.shape)


def conv4x4_s2_with_stats(xs2d, w_tap, *, oh, ow, toh):
    """Fused Conv2d(k=4, s=2, p=1, bias=False) + per-channel batch-stat partials.

    xs2d : (B, OH+1, OW+1, 4*Cin) bf16 — padded, space-to-depth'd, previous
           layer's BN+ReLU already folded JAX-side.
    w_tap: (4, 4*Cin, Np) bf16 tap-major weights, Np = round_up(Cout, 128).
    Returns (y_raw (B, OH, OW, Np) bf16, col_sum (Np,), col_sumsq (Np,)) f32 stats.
    """
    B, HS, WS, C4 = xs2d.shape
    taps, C4w, Np = w_tap.shape
    assert taps == 4 and C4w == C4 and HS == oh + 1 and WS == ow + 1
    assert oh % toh == 0
    T = oh // toh

    flops = 2 * B * oh * ow * (4 * C4) * Np
    bytes_accessed = (B * HS * WS * C4 * 2 + 4 * C4 * Np * 2
                      + B * oh * ow * Np * 2 + 2 * B * T * Np * 4)

    y, sums, sqs = pl.pallas_call(
        _conv_s2_stats_kernel,
        out_shape=(
            jax.ShapeDtypeStruct((B, oh, ow, Np), jnp.bfloat16),
            jax.ShapeDtypeStruct((B, T, 1, Np), jnp.float32),
            jax.ShapeDtypeStruct((B, T, 1, Np), jnp.float32),
        ),
        grid=(B, T),
        in_specs=[
            # Whole (small) image stays resident in VMEM; re-DMA'd only when b
            # changes (t is the fast grid axis).
            pl.BlockSpec((None, HS, WS, C4), lambda b, t: (b, 0, 0, 0)),
            # Constant weight block.
            # TODO(synk): pl.Buffered(1) pipeline_mode would single-buffer this
            # and free a few MiB of VMEM on v7x.
            pl.BlockSpec((4, C4, Np), lambda b, t: (0, 0, 0)),
        ],
        out_specs=(
            pl.BlockSpec((None, toh, ow, Np), lambda b, t: (b, t, 0, 0)),
            pl.BlockSpec((None, 1, 1, Np), lambda b, t: (b, t, 0, 0)),
            pl.BlockSpec((None, 1, 1, Np), lambda b, t: (b, t, 0, 0)),
        ),
        compiler_params=pltpu.CompilerParams(
            dimension_semantics=("parallel", "parallel"),
            vmem_limit_bytes=_VMEM_LIMIT_BYTES,
        ),
        cost_estimate=pl.CostEstimate(flops=flops, transcendentals=0,
                                      bytes_accessed=bytes_accessed),
    )(xs2d, w_tap)
    return y, jnp.sum(sums, axis=(0, 1, 2)), jnp.sum(sqs, axis=(0, 1, 2))


# -----------------------------------------------------------------------------
# Kernel 2: GEMM (bf16 operands, f32 accumulate) + per-tile BN partials
# (used for the final k=4 / s=1 / p=0 conv, which is a flatten + matmul)
# -----------------------------------------------------------------------------
def _gemm_stats_kernel(x_ref, w_ref, y_ref, sum_ref, sq_ref):
    y = jnp.dot(x_ref[...], w_ref[...], preferred_element_type=jnp.float32)
    y_ref[...] = y.astype(y_ref.dtype)
    sum_ref[...] = jnp.sum(y, axis=0, keepdims=True)[None]
    sq_ref[...] = jnp.sum(y * y, axis=0, keepdims=True)[None]


def gemm_with_stats(x, w, *, tm=512, y_dtype=jnp.bfloat16):
    """x: (M, K) f32/bf16, w: (K, Np) bf16 -> (y[:M] (M, Np), col_sum, col_sumsq)."""
    M, K = x.shape
    K2, Np = w.shape
    assert K == K2
    if M <= tm:
        tm_eff, m_pad = M, M
    else:
        tm_eff = tm
        while tm_eff > 8 and M % tm_eff:
            tm_eff //= 2
        m_pad = _round_up(M, tm_eff)
    num_tiles = m_pad // tm_eff

    xb = x.astype(jnp.bfloat16)
    if m_pad != M:
        # Rare fallback (large non-divisible M); zero rows add nothing to stats.
        xb = jnp.pad(xb, ((0, m_pad - M), (0, 0)))

    y, sums, sqs = pl.pallas_call(
        _gemm_stats_kernel,
        out_shape=(
            jax.ShapeDtypeStruct((m_pad, Np), y_dtype),
            jax.ShapeDtypeStruct((num_tiles, 1, Np), jnp.float32),
            jax.ShapeDtypeStruct((num_tiles, 1, Np), jnp.float32),
        ),
        grid=(num_tiles,),
        in_specs=[
            pl.BlockSpec((tm_eff, K), lambda i: (i, 0)),
            pl.BlockSpec((K, Np), lambda i: (0, 0)),
        ],
        out_specs=(
            pl.BlockSpec((tm_eff, Np), lambda i: (i, 0)),
            pl.BlockSpec((1, 1, Np), lambda i: (i, 0, 0)),
            pl.BlockSpec((1, 1, Np), lambda i: (i, 0, 0)),
        ),
        compiler_params=pltpu.CompilerParams(
            dimension_semantics=("parallel",),
            vmem_limit_bytes=_VMEM_LIMIT_BYTES,
        ),
        cost_estimate=pl.CostEstimate(
            flops=2 * m_pad * K * Np, transcendentals=0,
            bytes_accessed=(m_pad * K * 2 + K * Np * 2 + m_pad * Np * 2
                            + 2 * num_tiles * Np * 4)),
    )(xb, w)
    return y[:M], jnp.sum(sums, axis=(0, 1)), jnp.sum(sqs, axis=(0, 1))


# -----------------------------------------------------------------------------
# JAX glue: BN fold, fused BN-apply + pad + space-to-depth input prep
# -----------------------------------------------------------------------------
def _fold_bn(col_sum, col_sq, m, gamma, beta):
    mean = col_sum / float(m)
    var = jnp.maximum(col_sq / float(m) - mean * mean, 0.0)
    scale = gamma * jax.lax.rsqrt(var + _BN_EPS)
    shift = beta - mean * scale
    return scale, shift


def _act_pad_s2d(h_raw, scale, shift, c_real):
    """Previous layer's BN+ReLU (folded), zero-pad(1) and stride-2 space-to-depth
    in one XLA pass.  Output: (B, OH+1, OW+1, 4*c_real) bf16."""
    if scale is None:                                   # first layer: raw image
        h = h_raw.astype(jnp.float32)
    else:
        h = (h_raw[..., :c_real].astype(jnp.float32) * scale[:c_real]
             + shift[:c_real])
        h = jnp.maximum(h, 0.0)
    h = h.astype(jnp.bfloat16)
    h = jnp.pad(h, ((0, 0), (1, 1), (1, 1), (0, 0)))
    B, Hp, Wp, C = h.shape
    h = h.reshape(B, Hp // 2, 2, Wp // 2, 2, C)
    h = h.transpose(0, 1, 3, 2, 4, 5)                   # (b, i, j, di, dj, c)
    return h.reshape(B, Hp // 2, Wp // 2, 4 * C)


def _batchnorm_train(z, gamma, beta):
    mu = jnp.mean(z, axis=0)
    var = jnp.maximum(jnp.mean(z * z, axis=0) - mu * mu, 0.0)
    return (z - mu) * (gamma * jax.lax.rsqrt(var + _BN_EPS)) + beta


# -----------------------------------------------------------------------------
# Encoder: parameter construction + forward
# -----------------------------------------------------------------------------
def make_encoder_params(key, image_size, n_z, n_chan, conv_hidden, lin_hid):
    assert image_size % 16 == 0, "Image size should be a multiple of 16"
    chans = []                                   # mirrors the PyTorch ctor
    c_in, c_out = n_chan, conv_hidden
    chans.append((c_in, c_out))
    cur = image_size // 2
    while cur > 4:
        c_in, c_out = c_out, c_out * 2
        chans.append((c_in, c_out))
        cur //= 2
    assert cur == 4

    keys = jax.random.split(key, len(chans) + 3)
    conv_s2 = []
    size = image_size
    for i, (ci, co) in enumerate(chans):
        w = jax.random.normal(keys[i], (co, ci, 4, 4), jnp.float32) * 0.1
        np_out = _round_up(co, _LANE)            # lane-dense output channels
        # Tap-major layout for the space-to-depth conv kernel:
        #   w_tap[2*dh+dw, (2*di+dj)*ci + c, o] = w[o, c, 2*dh+di, 2*dw+dj]
        w_tap = w.transpose(2, 3, 1, 0)                       # (kh, kw, ci, co)
        w_tap = w_tap.reshape(2, 2, 2, 2, ci, co)             # (dh, di, dw, dj, ci, co)
        w_tap = w_tap.transpose(0, 2, 1, 3, 4, 5)             # (dh, dw, di, dj, ci, co)
        w_tap = w_tap.reshape(4, 4 * ci, co)
        w_tap = jnp.pad(w_tap, ((0, 0), (0, 0), (0, np_out - co))).astype(jnp.bfloat16)
        oh = size // 2
        toh = min(oh, 8)
        while oh % toh:
            toh -= 1
        conv_s2.append(dict(
            w_raw=w, w_tap=w_tap, cin=ci, cout=co, npad=np_out,
            oh=oh, ow=oh, toh=toh,
            gamma_pad=jnp.pad(jnp.ones((co,), jnp.float32), (0, np_out - co)),
            beta_pad=jnp.zeros((np_out,), jnp.float32)))
        size = oh

    c_last_in = chans[-1][1]
    w_last = jax.random.normal(keys[len(chans)], (lin_hid, c_last_in, 4, 4),
                               jnp.float32) * 0.1
    np_last = _round_up(lin_hid, _LANE)
    w_last_mat = w_last.transpose(2, 3, 1, 0).reshape(16 * c_last_in, lin_hid)
    w_last_mat = jnp.pad(w_last_mat, ((0, 0), (0, np_last - lin_hid))).astype(jnp.bfloat16)

    w_lin = jax.random.normal(keys[len(chans) + 1], (n_z, lin_hid), jnp.float32) * 0.1
    b_lin = jax.random.normal(keys[len(chans) + 2], (n_z,), jnp.float32) * 0.1

    return dict(
        conv_s2=conv_s2,
        w_last_raw=w_last, w_last_mat=w_last_mat, npad_last=np_last,
        gamma_last_pad=jnp.pad(jnp.ones((lin_hid,), jnp.float32),
                               (0, np_last - lin_hid)),
        beta_last_pad=jnp.zeros((np_last,), jnp.float32),
        w_lin_t=w_lin.T, b_lin=b_lin,
        gamma_lin=jnp.ones((n_z,), jnp.float32),
        beta_lin=jnp.zeros((n_z,), jnp.float32),
        lin_hid=lin_hid, n_z=n_z)


def encoder_forward(x, params):
    """x: (B, n_chan, image_size, image_size) f32 NCHW (PyTorch layout) -> (B, n_z)."""
    B = x.shape[0]
    h_raw = jnp.transpose(x, (0, 2, 3, 1))       # one-time NCHW -> NHWC
    scale = shift = None
    c_real = h_raw.shape[-1]

    for layer in params["conv_s2"]:              # fused conv + BN-stats kernels
        xs = _act_pad_s2d(h_raw, scale, shift, c_real)
        y, col_sum, col_sq = conv4x4_s2_with_stats(
            xs, layer["w_tap"], oh=layer["oh"], ow=layer["ow"], toh=layer["toh"])
        m = B * layer["oh"] * layer["ow"]
        scale, shift = _fold_bn(col_sum, col_sq, m,
                                layer["gamma_pad"], layer["beta_pad"])
        h_raw, c_real = y, layer["cout"]

    # Final Conv2d(k=4, s=1, p=0) on the 4x4 map == flatten + GEMM (the NHWC
    # flatten order (h, w, ci) matches the (kh, kw, ci) weight layout exactly).
    act = jnp.maximum(
        h_raw[..., :c_real].astype(jnp.float32) * scale[:c_real] + shift[:c_real],
        0.0)
    xg = act.reshape(B, -1)
    y, col_sum, col_sq = gemm_with_stats(xg, params["w_last_mat"])
    scale, shift = _fold_bn(col_sum, col_sq, B,
                            params["gamma_last_pad"], params["beta_last_pad"])
    act = jnp.maximum(y.astype(jnp.float32) * scale + shift,
                      0.0)[:, :params["lin_hid"]]

    # Linear + BatchNorm1d (training-mode batch stats): M = B, N = n_z — plain
    # jnp/XLA; a Pallas call here is pure launch overhead (perf review item).
    z = act @ params["w_lin_t"] + params["b_lin"]
    return _batchnorm_train(z, params["gamma_lin"], params["beta_lin"])


# -----------------------------------------------------------------------------
# Independent reference (lax.conv) mirroring the kernel's bf16 rounding points
# -----------------------------------------------------------------------------
def encoder_forward_ref(x, params):
    dn = ("NHWC", "OIHW", "NHWC")
    h = jnp.transpose(x, (0, 2, 3, 1)).astype(jnp.float32)
    for layer in params["conv_s2"]:
        y = jax.lax.conv_general_dilated(
            h.astype(jnp.bfloat16), layer["w_raw"].astype(jnp.bfloat16),
            window_strides=(2, 2), padding=((1, 1), (1, 1)),
            dimension_numbers=dn, preferred_element_type=jnp.float32)
        mean = jnp.mean(y, axis=(0, 1, 2))
        var = jnp.maximum(jnp.mean(y * y, axis=(0, 1, 2)) - mean * mean, 0.0)
        s = jax.lax.rsqrt(var + _BN_EPS)
        yb = y.astype(jnp.bfloat16).astype(jnp.float32)
        h = jnp.maximum((yb - mean) * s, 0.0)
    y = jax.lax.conv_general_dilated(
        h.astype(jnp.bfloat16), params["w_last_raw"].astype(jnp.bfloat16),
        window_strides=(1, 1), padding=((0, 0), (0, 0)),
        dimension_numbers=dn, preferred_element_type=jnp.float32)
    y = y.reshape(y.shape[0], -1)                       # (B, lin_hid)
    mean = jnp.mean(y, axis=0)
    var = jnp.maximum(jnp.mean(y * y, axis=0) - mean * mean, 0.0)
    s = jax.lax.rsqrt(var + _BN_EPS)
    yb = y.astype(jnp.bfloat16).astype(jnp.float32)
    act = jnp.maximum((yb - mean) * s, 0.0)
    z = act @ params["w_lin_t"] + params["b_lin"]
    return _batchnorm_train(z, params["gamma_lin"], params["beta_lin"])


if __name__ == "__main__":
    key = jax.random.PRNGKey(0)
    k_x, k_p = jax.random.split(key)

    B, n_chan, image_size = 2, 4, 16
    n_z, conv_hidden, lin_hid = 8, 8, 32

    x = jax.random.normal(k_x, (B, n_chan, image_size, image_size), jnp.float32)
    params = make_encoder_params(k_p, image_size, n_z, n_chan, conv_hidden, lin_hid)

    out = jax.block_until_ready(encoder_forward(x, params))
    assert out.shape == (B, n_z), out.shape
    assert bool(jnp.all(jnp.isfinite(out)))

    ref = jax.block_until_ready(encoder_forward_ref(x, params))
    err = float(jnp.max(jnp.abs(out - ref)))
    assert err < 5e-2, f"max abs err vs lax.conv reference: {err}"
    print("KERNEL_OK")
</pallas_src>

<mosaic_0001>
module attributes {stable_mosaic.version = 11 : i64} {
  func.func @_conv_s2_stats_kernel(%arg0: i32, %arg1: i32, %arg2: memref<1x9x9x16xbf16, #tpu.memory_space<vmem>>, %arg3: memref<4x16x128xbf16, #tpu.memory_space<vmem>>, %arg4: memref<1x8x8x128xbf16, #tpu.memory_space<vmem>>, %arg5: memref<1x1x1x128xf32, #tpu.memory_space<vmem>>, %arg6: memref<1x1x1x128xf32, #tpu.memory_space<vmem>>) attributes {dimension_semantics = [#tpu.dimension_semantics<parallel>, #tpu.dimension_semantics<parallel>], iteration_bounds = array<i64: 2, 1>, scalar_prefetch = 0 : i64, scratch_operands = 0 : i64, tpu.core_type = #tpu.core_type<tc>, window_params = [{transform_indices = @transform_0, window_bounds = array<i64: 1, 9, 9, 16>}, {pipeline_mode = #tpu.pipeline_mode<synchronous>, transform_indices = @transform_1, window_bounds = array<i64: 4, 16, 128>}, {transform_indices = @transform_2, window_bounds = array<i64: 1, 8, 8, 128>}, {transform_indices = @transform_3, window_bounds = array<i64: 1, 1, 1, 128>}, {transform_indices = @transform_4, window_bounds = array<i64: 1, 1, 1, 128>}]} {
    %c8_i32 = arith.constant 8 : i32
    %0 = arith.muli %arg1, %c8_i32 : i32
    %cst = arith.constant 0.000000e+00 : f32
    %1 = vector.broadcast %cst : f32 to vector<1x128xf32>
    %cst_0 = arith.constant 0.000000e+00 : f32
    %2 = vector.broadcast %cst_0 : f32 to vector<1x128xf32>
    %cst_1 = arith.constant 0.000000e+00 : f32
    %3 = vector.broadcast %cst_1 : f32 to vector<8x128xf32>
    %c0_i32 = arith.constant 0 : i32
    %4 = arith.addi %0, %c0_i32 : i32
    %c0_i32_2 = arith.constant 0 : i32
    %5 = arith.addi %4, %c0_i32_2 : i32
    %c0 = arith.constant 0 : index
    %6 = arith.index_cast %5 : i32 to index
    %c0_3 = arith.constant 0 : index
    %c0_4 = arith.constant 0 : index
    %7 = vector.load %arg2[%c0, %6, %c0_3, %c0_4] : memref<1x9x9x16xbf16, #tpu.memory_space<vmem>>, vector<1x1x8x16xbf16>
    %8 = vector.shape_cast %7 : vector<1x1x8x16xbf16> to vector<1x8x16xbf16>
    %9 = vector.shape_cast %8 : vector<1x8x16xbf16> to vector<8x16xbf16>
    %c0_5 = arith.constant 0 : index
    %c0_6 = arith.constant 0 : index
    %c0_7 = arith.constant 0 : index
    %10 = vector.load %arg3[%c0_5, %c0_6, %c0_7] : memref<4x16x128xbf16, #tpu.memory_space<vmem>>, vector<1x16x128xbf16>
    %11 = vector.shape_cast %10 : vector<1x16x128xbf16> to vector<16x128xbf16>
    %cst_8 = arith.constant dense<0.000000e+00> : vector<8x128xf32>
    %12 = tpu.matmul %9, %11, %cst_8 {dimension_numbers = #tpu.dot_dimension_numbers<[1], [0], [0], [1], [0, 0, 1, 1], [], []>} : vector<8x16xbf16>, vector<16x128xbf16>, vector<8x128xf32> -> vector<8x128xf32>
    %13 = arith.addf %3, %12 : vector<8x128xf32>
    %c0_i32_9 = arith.constant 0 : i32
    %14 = arith.addi %0, %c0_i32_9 : i32
    %c0_i32_10 = arith.constant 0 : i32
    %15 = arith.addi %14, %c0_i32_10 : i32
    %c0_11 = arith.constant 0 : index
    %16 = arith.index_cast %15 : i32 to index
    %c1 = arith.constant 1 : index
    %c0_12 = arith.constant 0 : index
    %17 = vector.load %arg2[%c0_11, %16, %c1, %c0_12] : memref<1x9x9x16xbf16, #tpu.memory_space<vmem>>, vector<1x1x8x16xbf16>
    %18 = vector.shape_cast %17 : vector<1x1x8x16xbf16> to vector<1x8x16xbf16>
    %19 = vector.shape_cast %18 : vector<1x8x16xbf16> to vector<8x16xbf16>
    %c1_13 = arith.constant 1 : index
    %c0_14 = arith.constant 0 : index
    %c0_15 = arith.constant 0 : index
    %20 = vector.load %arg3[%c1_13, %c0_14, %c0_15] : memref<4x16x128xbf16, #tpu.memory_space<vmem>>, vector<1x16x128xbf16>
    %21 = vector.shape_cast %20 : vector<1x16x128xbf16> to vector<16x128xbf16>
    %cst_16 = arith.constant dense<0.000000e+00> : vector<8x128xf32>
    %22 = tpu.matmul %19, %21, %cst_16 {dimension_numbers = #tpu.dot_dimension_numbers<[1], [0], [0], [1], [0, 0, 1, 1], [], []>} : vector<8x16xbf16>, vector<16x128xbf16>, vector<8x128xf32> -> vector<8x128xf32>
    %23 = arith.addf %13, %22 : vector<8x128xf32>
    %c0_i32_17 = arith.constant 0 : i32
    %24 = arith.addi %0, %c0_i32_17 : i32
    %c1_i32 = arith.constant 1 : i32
    %25 = arith.addi %24, %c1_i32 : i32
    %c0_18 = arith.constant 0 : index
    %26 = arith.index_cast %25 : i32 to index
    %c0_19 = arith.constant 0 : index
    %c0_20 = arith.constant 0 : index
    %27 = vector.load %arg2[%c0_18, %26, %c0_19, %c0_20] : memref<1x9x9x16xbf16, #tpu.memory_space<vmem>>, vector<1x1x8x16xbf16>
    %28 = vector.shape_cast %27 : vector<1x1x8x16xbf16> to vector<1x8x16xbf16>
    %29 = vector.shape_cast %28 : vector<1x8x16xbf16> to vector<8x16xbf16>
    %c2 = arith.constant 2 : index
    %c0_21 = arith.constant 0 : index
    %c0_22 = arith.constant 0 : index
    %30 = vector.load %arg3[%c2, %c0_21, %c0_22] : memref<4x16x128xbf16, #tpu.memory_space<vmem>>, vector<1x16x128xbf16>
    %31 = vector.shape_cast %30 : vector<1x16x128xbf16> to vector<16x128xbf16>
    %cst_23 = arith.constant dense<0.000000e+00> : vector<8x128xf32>
    %32 = tpu.matmul %29, %31, %cst_23 {dimension_numbers = #tpu.dot_dimension_numbers<[1], [0], [0], [1], [0, 0, 1, 1], [], []>} : vector<8x16xbf16>, vector<16x128xbf16>, vector<8x128xf32> -> vector<8x128xf32>
    %33 = arith.addf %23, %32 : vector<8x128xf32>
    %c0_i32_24 = arith.constant 0 : i32
    %34 = arith.addi %0, %c0_i32_24 : i32
    %c1_i32_25 = arith.constant 1 : i32
    %35 = arith.addi %34, %c1_i32_25 : i32
    %c0_26 = arith.constant 0 : index
    %36 = arith.index_cast %35 : i32 to index
    %c1_27 = arith.constant 1 : index
    %c0_28 = arith.constant 0 : index
    %37 = vector.load %arg2[%c0_26, %36, %c1_27, %c0_28] : memref<1x9x9x16xbf16, #tpu.memory_space<vmem>>, vector<1x1x8x16xbf16>
    %38 = vector.shape_cast %37 : vector<1x1x8x16xbf16> to vector<1x8x16xbf16>
    %39 = vector.shape_cast %38 : vector<1x8x16xbf16> to vector<8x16xbf16>
    %c3 = arith.constant 3 : index
    %c0_29 = arith.constant 0 : index
    %c0_30 = arith.constant 0 : index
    %40 = vector.load %arg3[%c3, %c0_29, %c0_30] : memref<4x16x128xbf16, #tpu.memory_space<vmem>>, vector<1x16x128xbf16>
    %41 = vector.shape_cast %40 : vector<1x16x128xbf16> to vector<16x128xbf16>
    %cst_31 = arith.constant dense<0.000000e+00> : vector<8x128xf32>
    %42 = tpu.matmul %39, %41, %cst_31 {dimension_numbers = #tpu.dot_dimension_numbers<[1], [0], [0], [1], [0, 0, 1, 1], [], []>} : vector<8x16xbf16>, vector<16x128xbf16>, vector<8x128xf32> -> vector<8x128xf32>
    %43 = arith.addf %33, %42 : vector<8x128xf32>
    %44 = arith.truncf %43 : vector<8x128xf32> to vector<8x128xbf16>
    %c0_32 = arith.constant 0 : index
    %c0_33 = arith.constant 0 : index
    %c0_34 = arith.constant 0 : index
    %c0_35 = arith.constant 0 : index
    %45 = vector.load %arg4[%c0_32, %c0_33, %c0_34, %c0_35] : memref<1x8x8x128xbf16, #tpu.memory_space<vmem>>, vector<1x1x8x128xbf16>
    %46 = vector.shape_cast %45 : vector<1x1x8x128xbf16> to vector<8x128xbf16>
    %47 = vector.shape_cast %44 : vector<8x128xbf16> to vector<1x1x8x128xbf16>
    tpu.vector_store %arg4[%c0_32, %c0_33, %c0_34, %c0_35], %47 {strides = array<i32>} : memref<1x8x8x128xbf16, #tpu.memory_space<vmem>>, vector<1x1x8x128xbf16>,
    %cst_36 = arith.constant dense<0.000000e+00> : vector<128xf32>
    %48 = vector.multi_reduction <add>, %43, %cst_36 [0] : vector<8x128xf32> to vector<128xf32>
    %49 = vector.shape_cast %48 : vector<128xf32> to vector<1x128xf32>
    %50 = arith.addf %1, %49 : vector<1x128xf32>
    %51 = arith.mulf %43, %43 : vector<8x128xf32>
    %cst_37 = arith.constant dense<0.000000e+00> : vector<128xf32>
    %52 = vector.multi_reduction <add>, %51, %cst_37 [0] : vector<8x128xf32> to vector<128xf32>
    %53 = vector.shape_cast %52 : vector<128xf32> to vector<1x128xf32>
    %54 = arith.addf %2, %53 : vector<1x128xf32>
    %cst_38 = arith.constant 0.000000e+00 : f32
    %55 = vector.broadcast %cst_38 : f32 to vector<8x128xf32>
    %c1_i32_39 = arith.constant 1 : i32
    %56 = arith.addi %0, %c1_i32_39 : i32
    %c0_i32_40 = arith.constant 0 : i32
    %57 = arith.addi %56, %c0_i32_40 : i32
    %c0_41 = arith.constant 0 : index
    %58 = arith.index_cast %57 : i32 to index
    %c0_42 = arith.constant 0 : index
    %c0_43 = arith.constant 0 : index
    %59 = vector.load %arg2[%c0_41, %58, %c0_42, %c0_43] : memref<1x9x9x16xbf16, #tpu.memory_space<vmem>>, vector<1x1x8x16xbf16>
    %60 = vector.shape_cast %59 : vector<1x1x8x16xbf16> to vector<1x8x16xbf16>
    %61 = vector.shape_cast %60 : vector<1x8x16xbf16> to vector<8x16xbf16>
    %c0_44 = arith.constant 0 : index
    %c0_45 = arith.constant 0 : index
    %c0_46 = arith.constant 0 : index
    %62 = vector.load %arg3[%c0_44, %c0_45, %c0_46] : memref<4x16x128xbf16, #tpu.memory_space<vmem>>, vector<1x16x128xbf16>
    %63 = vector.shape_cast %62 : vector<1x16x128xbf16> to vector<16x128xbf16>
    %cst_47 = arith.constant dense<0.000000e+00> : vector<8x128xf32>
    %64 = tpu.matmul %61, %63, %cst_47 {dimension_numbers = #tpu.dot_dimension_numbers<[1], [0], [0], [1], [0, 0, 1, 1], [], []>} : vector<8x16xbf16>, vector<16x128xbf16>, vector<8x128xf32> -> vector<8x128xf32>
    %65 = arith.addf %55, %64 : vector<8x128xf32>
    %c1_i32_48 = arith.constant 1 : i32
    %66 = arith.addi %0, %c1_i32_48 : i32
    %c0_i32_49 = arith.constant 0 : i32
    %67 = arith.addi %66, %c0_i32_49 : i32
    %c0_50 = arith.constant 0 : index
    %68 = arith.index_cast %67 : i32 to index
    %c1_51 = arith.constant 1 : index
    %c0_52 = arith.constant 0 : index
    %69 = vector.load %arg2[%c0_50, %68, %c1_51, %c0_52] : memref<1x9x9x16xbf16, #tpu.memory_space<vmem>>, vector<1x1x8x16xbf16>
    %70 = vector.shape_cast %69 : vector<1x1x8x16xbf16> to vector<1x8x16xbf16>
    %71 = vector.shape_cast %70 : vector<1x8x16xbf16> to vector<8x16xbf16>
    %c1_53 = arith.constant 1 : index
    %c0_54 = arith.constant 0 : index
    %c0_55 = arith.constant 0 : index
    %72 = vector.load %arg3[%c1_53, %c0_54, %c0_55] : memref<4x16x128xbf16, #tpu.memory_space<vmem>>, vector<1x16x128xbf16>
    %73 = vector.shape_cast %72 : vector<1x16x128xbf16> to vector<16x128xbf16>
    %cst_56 = arith.constant dense<0.000000e+00> : vector<8x128xf32>
    %74 = tpu.matmul %71, %73, %cst_56 {dimension_numbers = #tpu.dot_dimension_numbers<[1], [0], [0], [1], [0, 0, 1, 1], [], []>} : vector<8x16xbf16>, vector<16x128xbf16>, vector<8x128xf32> -> vector<8x128xf32>
    %75 = arith.addf %65, %74 : vector<8x128xf32>
    %c1_i32_57 = arith.constant 1 : i32
    %76 = arith.addi %0, %c1_i32_57 : i32
    %c1_i32_58 = arith.constant 1 : i32
    %77 = arith.addi %76, %c1_i32_58 : i32
    %c0_59 = arith.constant 0 : index
    %78 = arith.index_cast %77 : i32 to index
    %c0_60 = arith.constant 0 : index
    %c0_61 = arith.constant 0 : index
    %79 = vector.load %arg2[%c0_59, %78, %c0_60, %c0_61] : memref<1x9x9x16xbf16, #tpu.memory_space<vmem>>, vector<1x1x8x16xbf16>
    %80 = vector.shape_cast %79 : vector<1x1x8x16xbf16> to vector<1x8x16xbf16>
    %81 = vector.shape_cast %80 : vector<1x8x16xbf16> to vector<8x16xbf16>
    %c2_62 = arith.constant 2 : index
    %c0_63 = arith.constant 0 : index
    %c0_64 = arith.constant 0 : index
    %82 = vector.load %arg3[%c2_62, %c0_63, %c0_64] : memref<4x16x128xbf16, #tpu.memory_space<vmem>>, vector<1x16x128xbf16>
    %83 = vector.shape_cast %82 : vector<1x16x128xbf16> to vector<16x128xbf16>
    %cst_65 = arith.constant dense<0.000000e+00> : vector<8x128xf32>
    %84 = tpu.matmul %81, %83, %cst_65 {dimension_numbers = #tpu.dot_dimension_numbers<[1], [0], [0], [1], [0, 0, 1, 1], [], []>} : vector<8x16xbf16>, vector<16x128xbf16>, vector<8x128xf32> -> vector<8x128xf32>
    %85 = arith.addf %75, %84 : vector<8x128xf32>
    %c1_i32_66 = arith.constant 1 : i32
    %86 = arith.addi %0, %c1_i32_66 : i32
    %c1_i32_67 = arith.constant 1 : i32
    %87 = arith.addi %86, %c1_i32_67 : i32
    %c0_68 = arith.constant 0 : index
    %88 = arith.index_cast %87 : i32 to index
    %c1_69 = arith.constant 1 : index
    %c0_70 = arith.constant 0 : index
    %89 = vector.load %arg2[%c0_68, %88, %c1_69, %c0_70] : memref<1x9x9x16xbf16, #tpu.memory_space<vmem>>, vector<1x1x8x16xbf16>
    %90 = vector.shape_cast %89 : vector<1x1x8x16xbf16> to vector<1x8x16xbf16>
    %91 = vector.shape_cast %90 : vector<1x8x16xbf16> to vector<8x16xbf16>
    %c3_71 = arith.constant 3 : index
    %c0_72 = arith.constant 0 : index
    %c0_73 = arith.constant 0 : index
    %92 = vector.load %arg3[%c3_71, %c0_72, %c0_73] : memref<4x16x128xbf16, #tpu.memory_space<vmem>>, vector<1x16x128xbf16>
    %93 = vector.shape_cast %92 : vector<1x16x128xbf16> to vector<16x128xbf16>
    %cst_74 = arith.constant dense<0.000000e+00> : vector<8x128xf32>
    %94 = tpu.matmul %91, %93, %cst_74 {dimension_numbers = #tpu.dot_dimension_numbers<[1], [0], [0], [1], [0, 0, 1, 1], [], []>} : vector<8x16xbf16>, vector<16x128xbf16>, vector<8x128xf32> -> vector<8x128xf32>
    %95 = arith.addf %85, %94 : vector<8x128xf32>
    %96 = arith.truncf %95 : vector<8x128xf32> to vector<8x128xbf16>
    %c0_75 = arith.constant 0 : index
    %c1_76 = arith.constant 1 : index
    %c0_77 = arith.constant 0 : index
    %c0_78 = arith.constant 0 : index
    %97 = vector.load %arg4[%c0_75, %c1_76, %c0_77, %c0_78] : memref<1x8x8x128xbf16, #tpu.memory_space<vmem>>, vector<1x1x8x128xbf16>
    %98 = vector.shape_cast %97 : vector<1x1x8x128xbf16> to vector<8x128xbf16>
    %99 = vector.shape_cast %96 : vector<8x128xbf16> to vector<1x1x8x128xbf16>
    tpu.vector_store %arg4[%c0_75, %c1_76, %c0_77, %c0_78], %99 {strides = array<i32>} : memref<1x8x8x128xbf16, #tpu.memory_space<vmem>>, vector<1x1x8x128xbf16>,
    %cst_79 = arith.constant dense<0.000000e+00> : vector<128xf32>
    %100 = vector.multi_reduction <add>, %95, %cst_79 [0] : vector<8x128xf32> to vector<128xf32>
    %101 = vector.shape_cast %100 : vector<128xf32> to vector<1x128xf32>
    %102 = arith.addf %50, %101 : vector<1x128xf32>
    %103 = arith.mulf %95, %95 : vector<8x128xf32>
    %cst_80 = arith.constant dense<0.000000e+00> : vector<128xf32>
    %104 = vector.multi_reduction <add>, %103, %cst_80 [0] : vector<8x128xf32> to vector<128xf32>
    %105 = vector.shape_cast %104 : vector<128xf32> to vector<1x128xf32>
    %106 = arith.addf %54, %105 : vector<1x128xf32>
    %cst_81 = arith.constant 0.000000e+00 : f32
    %107 = vector.broadcast %cst_81 : f32 to vector<8x128xf32>
    %c2_i32 = arith.constant 2 : i32
    %108 = arith.addi %0, %c2_i32 : i32
    %c0_i32_82 = arith.constant 0 : i32
    %109 = arith.addi %108, %c0_i32_82 : i32
    %c0_83 = arith.constant 0 : index
    %110 = arith.index_cast %109 : i32 to index
    %c0_84 = arith.constant 0 : index
    %c0_85 = arith.constant 0 : index
    %111 = vector.load %arg2[%c0_83, %110, %c0_84, %c0_85] : memref<1x9x9x16xbf16, #tpu.memory_space<vmem>>, vector<1x1x8x16xbf16>
    %112 = vector.shape_cast %111 : vector<1x1x8x16xbf16> to vector<1x8x16xbf16>
    %113 = vector.shape_cast %112 : vector<1x8x16xbf16> to vector<8x16xbf16>
    %c0_86 = arith.constant 0 : index
    %c0_87 = arith.constant 0 : index
    %c0_88 = arith.constant 0 : index
    %114 = vector.load %arg3[%c0_86, %c0_87, %c0_88] : memref<4x16x128xbf16, #tpu.memory_space<vmem>>, vector<1x16x128xbf16>
    %115 = vector.shape_cast %114 : vector<1x16x128xbf16> to vector<16x128xbf16>
    %cst_89 = arith.constant dense<0.000000e+00> : vector<8x128xf32>
    %116 = tpu.matmul %113, %115, %cst_89 {dimension_numbers = #tpu.dot_dimension_numbers<[1], [0], [0], [1], [0, 0, 1, 1], [], []>} : vector<8x16xbf16>, vector<16x128xbf16>, vector<8x128xf32> -> vector<8x128xf32>
    %117 = arith.addf %107, %116 : vector<8x128xf32>
    %c2_i32_90 = arith.constant 2 : i32
    %118 = arith.addi %0, %c2_i32_90 : i32
    %c0_i32_91 = arith.constant 0 : i32
    %119 = arith.addi %118, %c0_i32_91 : i32
    %c0_92 = arith.constant 0 : index
    %120 = arith.index_cast %119 : i32 to index
    %c1_93 = arith.constant 1 : index
    %c0_94 = arith.constant 0 : index
    %121 = vector.load %arg2[%c0_92, %120, %c1_93, %c0_94] : memref<1x9x9x16xbf16, #tpu.memory_space<vmem>>, vector<1x1x8x16xbf16>
    %122 = vector.shape_cast %121 : vector<1x1x8x16xbf16> to vector<1x8x16xbf16>
    %123 = vector.shape_cast %122 : vector<1x8x16xbf16> to vector<8x16xbf16>
    %c1_95 = arith.constant 1 : index
    %c0_96 = arith.constant 0 : index
    %c0_97 = arith.constant 0 : index
    %124 = vector.load %arg3[%c1_95, %c0_96, %c0_97] : memref<4x16x128xbf16, #tpu.memory_space<vmem>>, vector<1x16x128xbf16>
    %125 = vector.shape_cast %124 : vector<1x16x128xbf16> to vector<16x128xbf16>
    %cst_98 = arith.constant dense<0.000000e+00> : vector<8x128xf32>
    %126 = tpu.matmul %123, %125, %cst_98 {dimension_numbers = #tpu.dot_dimension_numbers<[1], [0], [0], [1], [0, 0, 1, 1], [], []>} : vector<8x16xbf16>, vector<16x128xbf16>, vector<8x128xf32> -> vector<8x128xf32>
    %127 = arith.addf %117, %126 : vector<8x128xf32>
    %c2_i32_99 = arith.constant 2 : i32
    %128 = arith.addi %0, %c2_i32_99 : i32
    %c1_i32_100 = arith.constant 1 : i32
    %129 = arith.addi %128, %c1_i32_100 : i32
    %c0_101 = arith.constant 0 : index
    %130 = arith.index_cast %129 : i32 to index
    %c0_102 = arith.constant 0 : index
    %c0_103 = arith.constant 0 : index
    %131 = vector.load %arg2[%c0_101, %130, %c0_102, %c0_103] : memref<1x9x9x16xbf16, #tpu.memory_space<vmem>>, vector<1x1x8x16xbf16>
    %132 = vector.shape_cast %131 : vector<1x1x8x16xbf16> to vector<1x8x16xbf16>
    %133 = vector.shape_cast %132 : vector<1x8x16xbf16> to vector<8x16xbf16>
    %c2_104 = arith.constant 2 : index
    %c0_105 = arith.constant 0 : index
    %c0_106 = arith.constant 0 : index
    %134 = vector.load %arg3[%c2_104, %c0_105, %c0_106] : memref<4x16x128xbf16, #tpu.memory_space<vmem>>, vector<1x16x128xbf16>
    %135 = vector.shape_cast %134 : vector<1x16x128xbf16> to vector<16x128xbf16>
    %cst_107 = arith.constant dense<0.000000e+00> : vector<8x128xf32>
    %136 = tpu.matmul %133, %135, %cst_107 {dimension_numbers = #tpu.dot_dimension_numbers<[1], [0], [0], [1], [0, 0, 1, 1], [], []>} : vector<8x16xbf16>, vector<16x128xbf16>, vector<8x128xf32> -> vector<8x128xf32>
    %137 = arith.addf %127, %136 : vector<8x128xf32>
    %c2_i32_108 = arith.constant 2 : i32
    %138 = arith.addi %0, %c2_i32_108 : i32
    %c1_i32_109 = arith.constant 1 : i32
    %139 = arith.addi %138, %c1_i32_109 : i32
    %c0_110 = arith.constant 0 : index
    %140 = arith.index_cast %139 : i32 to index
    %c1_111 = arith.constant 1 : index
    %c0_112 = arith.constant 0 : index
    %141 = vector.load %arg2[%c0_110, %140, %c1_111, %c0_112] : memref<1x9x9x16xbf16, #tpu.memory_space<vmem>>, vector<1x1x8x16xbf16>
    %142 = vector.shape_cast %141 : vector<1x1x8x16xbf16> to vector<1x8x16xbf16>
    %143 = vector.shape_cast %142 : vector<1x8x16xbf16> to vector<8x16xbf16>
    %c3_113 = arith.constant 3 : index
    %c0_114 = arith.constant 0 : index
    %c0_115 = arith.constant 0 : index
    %144 = vector.load %arg3[%c3_113, %c0_114, %c0_115] : memref<4x16x128xbf16, #tpu.memory_space<vmem>>, vector<1x16x128xbf16>
    %145 = vector.shape_cast %144 : vector<1x16x128xbf16> to vector<16x128xbf16>
    %cst_116 = arith.constant dense<0.000000e+00> : vector<8x128xf32>
    %146 = tpu.matmul %143, %145, %cst_116 {dimension_numbers = #tpu.dot_dimension_numbers<[1], [0], [0], [1], [0, 0, 1, 1], [], []>} : vector<8x16xbf16>, vector<16x128xbf16>, vector<8x128xf32> -> vector<8x128xf32>
    %147 = arith.addf %137, %146 : vector<8x128xf32>
    %148 = arith.truncf %147 : vector<8x128xf32> to vector<8x128xbf16>
    %c0_117 = arith.constant 0 : index
    %c2_118 = arith.constant 2 : index
    %c0_119 = arith.constant 0 : index
    %c0_120 = arith.constant 0 : index
    %149 = vector.load %arg4[%c0_117, %c2_118, %c0_119, %c0_120] : memref<1x8x8x128xbf16, #tpu.memory_space<vmem>>, vector<1x1x8x128xbf16>
    %150 = vector.shape_cast %149 : vector<1x1x8x128xbf16> to vector<8x128xbf16>
    %151 = vector.shape_cast %148 : vector<8x128xbf16> to vector<1x1x8x128xbf16>
    tpu.vector_store %arg4[%c0_117, %c2_118, %c0_119, %c0_120], %151 {strides = array<i32>} : memref<1x8x8x128xbf16, #tpu.memory_space<vmem>>, vector<1x1x8x128xbf16>,
    %cst_121 = arith.constant dense<0.000000e+00> : vector<128xf32>
    %152 = vector.multi_reduction <add>, %147, %cst_121 [0] : vector<8x128xf32> to vector<128xf32>
    %153 = vector.shape_cast %152 : vector<128xf32> to vector<1x128xf32>
    %154 = arith.addf %102, %153 : vector<1x128xf32>
    %155 = arith.mulf %147, %147 : vector<8x128xf32>
    %cst_122 = arith.constant dense<0.000000e+00> : vector<128xf32>
    %156 = vector.multi_reduction <add>, %155, %cst_122 [0] : vector<8x128xf32> to vector<128xf32>
    %157 = vector.shape_cast %156 : vector<128xf32> to vector<1x128xf32>
    %158 = arith.addf %106, %157 : vector<1x128xf32>
    %cst_123 = arith.constant 0.000000e+00 : f32
    %159 = vector.broadcast %cst_123 : f32 to vector<8x128xf32>
    %c3_i32 = arith.constant 3 : i32
    %160 = arith.addi %0, %c3_i32 : i32
    %c0_i32_124 = arith.constant 0 : i32
    %161 = arith.addi %160, %c0_i32_124 : i32
    %c0_125 = arith.constant 0 : index
    %162 = arith.index_cast %161 : i32 to index
    %c0_126 = arith.constant 0 : index
    %c0_127 = arith.constant 0 : index
    %163 = vector.load %arg2[%c0_125, %162, %c0_126, %c0_127] : memref<1x9x9x16xbf16, #tpu.memory_space<vmem>>, vector<1x1x8x16xbf16>
    %164 = vector.shape_cast %163 : vector<1x1x8x16xbf16> to vector<1x8x16xbf16>
    %165 = vector.shape_cast %164 : vector<1x8x16xbf16> to vector<8x16xbf16>
    %c0_128 = arith.constant 0 : index
    %c0_129 = arith.constant 0 : index
    %c0_130 = arith.constant 0 : index
    %166 = vector.load %arg3[%c0_128, %c0_129, %c0_130] : memref<4x16x128xbf16, #tpu.memory_space<vmem>>, vector<1x16x128xbf16>
    %167 = vector.shape_cast %166 : vector<1x16x128xbf16> to vector<16x128xbf16>
    %cst_131 = arith.constant dense<0.000000e+00> : vector<8x128xf32>
    %168 = tpu.matmul %165, %167, %cst_131 {dimension_numbers = #tpu.dot_dimension_numbers<[1], [0], [0], [1], [0, 0, 1, 1], [], []>} : vector<8x16xbf16>, vector<16x128xbf16>, vector<8x128xf32> -> vector<8x128xf32>
    %169 = arith.addf %159, %168 : vector<8x128xf32>
    %c3_i32_132 = arith.constant 3 : i32
    %170 = arith.addi %0, %c3_i32_132 : i32
    %c0_i32_133 = arith.constant 0 : i32
    %171 = arith.addi %170, %c0_i32_133 : i32
    %c0_134 = arith.constant 0 : index
    %172 = arith.index_cast %171 : i32 to index
    %c1_135 = arith.constant 1 : index
    %c0_136 = arith.constant 0 : index
    %173 = vector.load %arg2[%c0_134, %172, %c1_135, %c0_136] : memref<1x9x9x16xbf16, #tpu.memory_space<vmem>>, vector<1x1x8x16xbf16>
    %174 = vector.shape_cast %173 : vector<1x1x8x16xbf16> to vector<1x8x16xbf16>
    %175 = vector.shape_cast %174 : vector<1x8x16xbf16> to vector<8x16xbf16>
    %c1_137 = arith.constant 1 : index
    %c0_138 = arith.constant 0 : index
    %c0_139 = arith.constant 0 : index
    %176 = vector.load %arg3[%c1_137, %c0_138, %c0_139] : memref<4x16x128xbf16, #tpu.memory_space<vmem>>, vector<1x16x128xbf16>
    %177 = vector.shape_cast %176 : vector<1x16x128xbf16> to vector<16x128xbf16>
    %cst_140 = arith.constant dense<0.000000e+00> : vector<8x128xf32>
    %178 = tpu.matmul %175, %177, %cst_140 {dimension_numbers = #tpu.dot_dimension_numbers<[1], [0], [0], [1], [0, 0, 1, 1], [], []>} : vector<8x16xbf16>, vector<16x128xbf16>, vector<8x128xf32> -> vector<8x128xf32>
    %179 = arith.addf %169, %178 : vector<8x128xf32>
    %c3_i32_141 = arith.constant 3 : i32
    %180 = arith.addi %0, %c3_i32_141 : i32
    %c1_i32_142 = arith.constant 1 : i32
    %181 = arith.addi %180, %c1_i32_142 : i32
    %c0_143 = arith.constant 0 : index
    %182 = arith.index_cast %181 : i32 to index
    %c0_144 = arith.constant 0 : index
    %c0_145 = arith.constant 0 : index
    %183 = vector.load %arg2[%c0_143, %182, %c0_144, %c0_145] : memref<1x9x9x16xbf16, #tpu.memory_space<vmem>>, vector<1x1x8x16xbf16>
    %184 = vector.shape_cast %183 : vector<1x1x8x16xbf16> to vector<1x8x16xbf16>
    %185 = vector.shape_cast %184 : vector<1x8x16xbf16> to vector<8x16xbf16>
    %c2_146 = arith.constant 2 : index
    %c0_147 = arith.constant 0 : index
    %c0_148 = arith.constant 0 : index
    %186 = vector.load %arg3[%c2_146, %c0_147, %c0_148] : memref<4x16x128xbf16, #tpu.memory_space<vmem>>, vector<1x16x128xbf16>
    %187 = vector.shape_cast %186 : vector<1x16x128xbf16> to vector<16x128xbf16>
    %cst_149 = arith.constant dense<0.000000e+00> : vector<8x128xf32>
    %188 = tpu.matmul %185, %187, %cst_149 {dimension_numbers = #tpu.dot_dimension_numbers<[1], [0], [0], [1], [0, 0, 1, 1], [], []>} : vector<8x16xbf16>, vector<16x128xbf16>, vector<8x128xf32> -> vector<8x128xf32>
    %189 = arith.addf %179, %188 : vector<8x128xf32>
    %c3_i32_150 = arith.constant 3 : i32
    %190 = arith.addi %0, %c3_i32_150 : i32
    %c1_i32_151 = arith.constant 1 : i32
    %191 = arith.addi %190, %c1_i32_151 : i32
    %c0_152 = arith.constant 0 : index
    %192 = arith.index_cast %191 : i32 to index
    %c1_153 = arith.constant 1 : index
    %c0_154 = arith.constant 0 : index
    %193 = vector.load %arg2[%c0_152, %192, %c1_153, %c0_154] : memref<1x9x9x16xbf16, #tpu.memory_space<vmem>>, vector<1x1x8x16xbf16>
    %194 = vector.shape_cast %193 : vector<1x1x8x16xbf16> to vector<1x8x16xbf16>
    %195 = vector.shape_cast %194 : vector<1x8x16xbf16> to vector<8x16xbf16>
    %c3_155 = arith.constant 3 : index
    %c0_156 = arith.constant 0 : index
    %c0_157 = arith.constant 0 : index
    %196 = vector.load %arg3[%c3_155, %c0_156, %c0_157] : memref<4x16x128xbf16, #tpu.memory_space<vmem>>, vector<1x16x128xbf16>
    %197 = vector.shape_cast %196 : vector<1x16x128xbf16> to vector<16x128xbf16>
    %cst_158 = arith.constant dense<0.000000e+00> : vector<8x128xf32>
    %198 = tpu.matmul %195, %197, %cst_158 {dimension_numbers = #tpu.dot_dimension_numbers<[1], [0], [0], [1], [0, 0, 1, 1], [], []>} : vector<8x16xbf16>, vector<16x128xbf16>, vector<8x128xf32> -> vector<8x128xf32>
    %199 = arith.addf %189, %198 : vector<8x128xf32>
    %200 = arith.truncf %199 : vector<8x128xf32> to vector<8x128xbf16>
    %c0_159 = arith.constant 0 : index
    %c3_160 = arith.constant 3 : index
    %c0_161 = arith.constant 0 : index
    %c0_162 = arith.constant 0 : index
    %201 = vector.load %arg4[%c0_159, %c3_160, %c0_161, %c0_162] : memref<1x8x8x128xbf16, #tpu.memory_space<vmem>>, vector<1x1x8x128xbf16>
    %202 = vector.shape_cast %201 : vector<1x1x8x128xbf16> to vector<8x128xbf16>
    %203 = vector.shape_cast %200 : vector<8x128xbf16> to vector<1x1x8x128xbf16>
    tpu.vector_store %arg4[%c0_159, %c3_160, %c0_161, %c0_162], %203 {strides = array<i32>} : memref<1x8x8x128xbf16, #tpu.memory_space<vmem>>, vector<1x1x8x128xbf16>,
    %cst_163 = arith.constant dense<0.000000e+00> : vector<128xf32>
    %204 = vector.multi_reduction <add>, %199, %cst_163 [0] : vector<8x128xf32> to vector<128xf32>
    %205 = vector.shape_cast %204 : vector<128xf32> to vector<1x128xf32>
    %206 = arith.addf %154, %205 : vector<1x128xf32>
    %207 = arith.mulf %199, %199 : vector<8x128xf32>
    %cst_164 = arith.constant dense<0.000000e+00> : vector<128xf32>
    %208 = vector.multi_reduction <add>, %207, %cst_164 [0] : vector<8x128xf32> to vector<128xf32>
    %209 = vector.shape_cast %208 : vector<128xf32> to vector<1x128xf32>
    %210 = arith.addf %158, %209 : vector<1x128xf32>
    %cst_165 = arith.constant 0.000000e+00 : f32
    %211 = vector.broadcast %cst_165 : f32 to vector<8x128xf32>
    %c4_i32 = arith.constant 4 : i32
    %212 = arith.addi %0, %c4_i32 : i32
    %c0_i32_166 = arith.constant 0 : i32
    %213 = arith.addi %212, %c0_i32_166 : i32
    %c0_167 = arith.constant 0 : index
    %214 = arith.index_cast %213 : i32 to index
    %c0_168 = arith.constant 0 : index
    %c0_169 = arith.constant 0 : index
    %215 = vector.load %arg2[%c0_167, %214, %c0_168, %c0_169] : memref<1x9x9x16xbf16, #tpu.memory_space<vmem>>, vector<1x1x8x16xbf16>
    %216 = vector.shape_cast %215 : vector<1x1x8x16xbf16> to vector<1x8x16xbf16>
    %217 = vector.shape_cast %216 : vector<1x8x16xbf16> to vector<8x16xbf16>
    %c0_170 = arith.constant 0 : index
    %c0_171 = arith.constant 0 : index
    %c0_172 = arith.constant 0 : index
    %218 = vector.load %arg3[%c0_170, %c0_171, %c0_172] : memref<4x16x128xbf16, #tpu.memory_space<vmem>>, vector<1x16x128xbf16>
    %219 = vector.shape_cast %218 : vector<1x16x128xbf16> to vector<16x128xbf16>
    %cst_173 = arith.constant dense<0.000000e+00> : vector<8x128xf32>
    %220 = tpu.matmul %217, %219, %cst_173 {dimension_numbers = #tpu.dot_dimension_numbers<[1], [0], [0], [1], [0, 0, 1, 1], [], []>} : vector<8x16xbf16>, vector<16x128xbf16>, vector<8x128xf32> -> vector<8x128xf32>
    %221 = arith.addf %211, %220 : vector<8x128xf32>
    %c4_i32_174 = arith.constant 4 : i32
    %222 = arith.addi %0, %c4_i32_174 : i32
    %c0_i32_175 = arith.constant 0 : i32
    %223 = arith.addi %222, %c0_i32_175 : i32
    %c0_176 = arith.constant 0 : index
    %224 = arith.index_cast %223 : i32 to index
    %c1_177 = arith.constant 1 : index
    %c0_178 = arith.constant 0 : index
    %225 = vector.load %arg2[%c0_176, %224, %c1_177, %c0_178] : memref<1x9x9x16xbf16, #tpu.memory_space<vmem>>, vector<1x1x8x16xbf16>
    %226 = vector.shape_cast %225 : vector<1x1x8x16xbf16> to vector<1x8x16xbf16>
    %227 = vector.shape_cast %226 : vector<1x8x16xbf16> to vector<8x16xbf16>
    %c1_179 = arith.constant 1 : index
    %c0_180 = arith.constant 0 : index
    %c0_181 = arith.constant 0 : index
    %228 = vector.load %arg3[%c1_179, %c0_180, %c0_181] : memref<4x16x128xbf16, #tpu.memory_space<vmem>>, vector<1x16x128xbf16>
    %229 = vector.shape_cast %228 : vector<1x16x128xbf16> to vector<16x128xbf16>
    %cst_182 = arith.constant dense<0.000000e+00> : vector<8x128xf32>
    %230 = tpu.matmul %227, %229, %cst_182 {dimension_numbers = #tpu.dot_dimension_numbers<[1], [0], [0], [1], [0, 0, 1, 1], [], []>} : vector<8x16xbf16>, vector<16x128xbf16>, vector<8x128xf32> -> vector<8x128xf32>
    %231 = arith.addf %221, %230 : vector<8x128xf32>
    %c4_i32_183 = arith.constant 4 : i32
    %232 = arith.addi %0, %c4_i32_183 : i32
    %c1_i32_184 = arith.constant 1 : i32
    %233 = arith.addi %232, %c1_i32_184 : i32
    %c0_185 = arith.constant 0 : index
    %234 = arith.index_cast %233 : i32 to index
    %c0_186 = arith.constant 0 : index
    %c0_187 = arith.constant 0 : index
    %235 = vector.load %arg2[%c0_185, %234, %c0_186, %c0_187] : memref<1x9x9x16xbf16, #tpu.memory_space<vmem>>, vector<1x1x8x16xbf16>
    %236 = vector.shape_cast %235 : vector<1x1x8x16xbf16> to vector<1x8x16xbf16>
    %237 = vector.shape_cast %236 : vector<1x8x16xbf16> to vector<8x16xbf16>
    %c2_188 = arith.constant 2 : index
    %c0_189 = arith.constant 0 : index
    %c0_190 = arith.constant 0 : index
    %238 = vector.load %arg3[%c2_188, %c0_189, %c0_190] : memref<4x16x128xbf16, #tpu.memory_space<vmem>>, vector<1x16x128xbf16>
    %239 = vector.shape_cast %238 : vector<1x16x128xbf16> to vector<16x128xbf16>
    %cst_191 = arith.constant dense<0.000000e+00> : vector<8x128xf32>
    %240 = tpu.matmul %237, %239, %cst_191 {dimension_numbers = #tpu.dot_dimension_numbers<[1], [0], [0], [1], [0, 0, 1, 1], [], []>} : vector<8x16xbf16>, vector<16x128xbf16>, vector<8x128xf32> -> vector<8x128xf32>
    %241 = arith.addf %231, %240 : vector<8x128xf32>
    %c4_i32_192 = arith.constant 4 : i32
    %242 = arith.addi %0, %c4_i32_192 : i32
    %c1_i32_193 = arith.constant 1 : i32
    %243 = arith.addi %242, %c1_i32_193 : i32
    %c0_194 = arith.constant 0 : index
    %244 = arith.index_cast %243 : i32 to index
    %c1_195 = arith.constant 1 : index
    %c0_196 = arith.constant 0 : index
    %245 = vector.load %arg2[%c0_194, %244, %c1_195, %c0_196] : memref<1x9x9x16xbf16, #tpu.memory_space<vmem>>, vector<1x1x8x16xbf16>
    %246 = vector.shape_cast %245 : vector<1x1x8x16xbf16> to vector<1x8x16xbf16>
    %247 = vector.shape_cast %246 : vector<1x8x16xbf16> to vector<8x16xbf16>
    %c3_197 = arith.constant 3 : index
    %c0_198 = arith.constant 0 : index
    %c0_199 = arith.constant 0 : index
    %248 = vector.load %arg3[%c3_197, %c0_198, %c0_199] : memref<4x16x128xbf16, #tpu.memory_space<vmem>>, vector<1x16x128xbf16>
    %249 = vector.shape_cast %248 : vector<1x16x128xbf16> to vector<16x128xbf16>
    %cst_200 = arith.constant dense<0.000000e+00> : vector<8x128xf32>
    %250 = tpu.matmul %247, %249, %cst_200 {dimension_numbers = #tpu.dot_dimension_numbers<[1], [0], [0], [1], [0, 0, 1, 1], [], []>} : vector<8x16xbf16>, vector<16x128xbf16>, vector<8x128xf32> -> vector<8x128xf32>
    %251 = arith.addf %241, %250 : vector<8x128xf32>
    %252 = arith.truncf %251 : vector<8x128xf32> to vector<8x128xbf16>
    %c0_201 = arith.constant 0 : index
    %c4 = arith.constant 4 : index
    %c0_202 = arith.constant 0 : index
    %c0_203 = arith.constant 0 : index
    %253 = vector.load %arg4[%c0_201, %c4, %c0_202, %c0_203] : memref<1x8x8x128xbf16, #tpu.memory_space<vmem>>, vector<1x1x8x128xbf16>
    %254 = vector.shape_cast %253 : vector<1x1x8x128xbf16> to vector<8x128xbf16>
    %255 = vector.shape_cast %252 : vector<8x128xbf16> to vector<1x1x8x128xbf16>
    tpu.vector_store %arg4[%c0_201, %c4, %c0_202, %c0_203], %255 {strides = array<i32>} : memref<1x8x8x128xbf16, #tpu.memory_space<vmem>>, vector<1x1x8x128xbf16>,
    %cst_204 = arith.constant dense<0.000000e+00> : vector<128xf32>
    %256 = vector.multi_reduction <add>, %251, %cst_204 [0] : vector<8x128xf32> to vector<128xf32>
    %257 = vector.shape_cast %256 : vector<128xf32> to vector<1x128xf32>
    %258 = arith.addf %206, %257 : vector<1x128xf32>
    %259 = arith.mulf %251, %251 : vector<8x128xf32>
    %cst_205 = arith.constant dense<0.000000e+00> : vector<128xf32>
    %260 = vector.multi_reduction <add>, %259, %cst_205 [0] : vector<8x128xf32> to vector<128xf32>
    %261 = vector.shape_cast %260 : vector<128xf32> to vector<1x128xf32>
    %262 = arith.addf %210, %261 : vector<1x128xf32>
    %cst_206 = arith.constant 0.000000e+00 : f32
    %263 = vector.broadcast %cst_206 : f32 to vector<8x128xf32>
    %c5_i32 = arith.constant 5 : i32
    %264 = arith.addi %0, %c5_i32 : i32
    %c0_i32_207 = arith.constant 0 : i32
    %265 = arith.addi %264, %c0_i32_207 : i32
    %c0_208 = arith.constant 0 : index
    %266 = arith.index_cast %265 : i32 to index
    %c0_209 = arith.constant 0 : index
    %c0_210 = arith.constant 0 : index
    %267 = vector.load %arg2[%c0_208, %266, %c0_209, %c0_210] : memref<1x9x9x16xbf16, #tpu.memory_space<vmem>>, vector<1x1x8x16xbf16>
    %268 = vector.shape_cast %267 : vector<1x1x8x16xbf16> to vector<1x8x16xbf16>
    %269 = vector.shape_cast %268 : vector<1x8x16xbf16> to vector<8x16xbf16>
    %c0_211 = arith.constant 0 : index
    %c0_212 = arith.constant 0 : index
    %c0_213 = arith.constant 0 : index
    %270 = vector.load %arg3[%c0_211, %c0_212, %c0_213] : memref<4x16x128xbf16, #tpu.memory_space<vmem>>, vector<1x16x128xbf16>
    %271 = vector.shape_cast %270 : vector<1x16x128xbf16> to vector<16x128xbf16>
    %cst_214 = arith.constant dense<0.000000e+00> : vector<8x128xf32>
    %272 = tpu.matmul %269, %271, %cst_214 {dimension_numbers = #tpu.dot_dimension_numbers<[1], [0], [0], [1], [0, 0, 1, 1], [], []>} : vector<8x16xbf16>, vector<16x128xbf16>, vector<8x128xf32> -> vector<8x128xf32>
    %273 = arith.addf %263, %272 : vector<8x128xf32>
    %c5_i32_215 = arith.constant 5 : i32
    %274 = arith.addi %0, %c5_i32_215 : i32
    %c0_i32_216 = arith.constant 0 : i32
    %275 = arith.addi %274, %c0_i32_216 : i32
    %c0_217 = arith.constant 0 : index
    %276 = arith.index_cast %275 : i32 to index
    %c1_218 = arith.constant 1 : index
    %c0_219 = arith.constant 0 : index
    %277 = vector.load %arg2[%c0_217, %276, %c1_218, %c0_219] : memref<1x9x9x16xbf16, #tpu.memory_space<vmem>>, vector<1x1x8x16xbf16>
    %278 = vector.shape_cast %277 : vector<1x1x8x16xbf16> to vector<1x8x16xbf16>
    %279 = vector.shape_cast %278 : vector<1x8x16xbf16> to vector<8x16xbf16>
    %c1_220 = arith.constant 1 : index
    %c0_221 = arith.constant 0 : index
    %c0_222 = arith.constant 0 : index
    %280 = vector.load %arg3[%c1_220, %c0_221, %c0_222] : memref<4x16x128xbf16, #tpu.memory_space<vmem>>, vector<1x16x128xbf16>
    %281 = vector.shape_cast %280 : vector<1x16x128xbf16> to vector<16x128xbf16>
    %cst_223 = arith.constant dense<0.000000e+00> : vector<8x128xf32>
    %282 = tpu.matmul %279, %281, %cst_223 {dimension_numbers = #tpu.dot_dimension_numbers<[1], [0], [0], [1], [0, 0, 1, 1], [], []>} : vector<8x16xbf16>, vector<16x128xbf16>, vector<8x128xf32> -> vector<8x128xf32>
    %283 = arith.addf %273, %282 : vector<8x128xf32>
    %c5_i32_224 = arith.constant 5 : i32
    %284 = arith.addi %0, %c5_i32_224 : i32
    %c1_i32_225 = arith.constant 1 : i32
    %285 = arith.addi %284, %c1_i32_225 : i32
    %c0_226 = arith.constant 0 : index
    %286 = arith.index_cast %285 : i32 to index
    %c0_227 = arith.constant 0 : index
    %c0_228 = arith.constant 0 : index
    %287 = vector.load %arg2[%c0_226, %286, %c0_227, %c0_228] : memref<1x9x9x16xbf16, #tpu.memory_space<vmem>>, vector<1x1x8x16xbf16>
    %288 = vector.shape_cast %287 : vector<1x1x8x16xbf16> to vector<1x8x16xbf16>
    %289 = vector.shape_cast %288 : vector<1x8x16xbf16> to vector<8x16xbf16>
    %c2_229 = arith.constant 2 : index
    %c0_230 = arith.constant 0 : index
    %c0_231 = arith.constant 0 : index
    %290 = vector.load %arg3[%c2_229, %c0_230, %c0_231] : memref<4x16x128xbf16, #tpu.memory_space<vmem>>, vector<1x16x128xbf16>
    %291 = vector.shape_cast %290 : vector<1x16x128xbf16> to vector<16x128xbf16>
    %cst_232 = arith.constant dense<0.000000e+00> : vector<8x128xf32>
    %292 = tpu.matmul %289, %291, %cst_232 {dimension_numbers = #tpu.dot_dimension_numbers<[1], [0], [0], [1], [0, 0, 1, 1], [], []>} : vector<8x16xbf16>, vector<16x128xbf16>, vector<8x128xf32> -> vector<8x128xf32>
    %293 = arith.addf %283, %292 : vector<8x128xf32>
    %c5_i32_233 = arith.constant 5 : i32
    %294 = arith.addi %0, %c5_i32_233 : i32
    %c1_i32_234 = arith.constant 1 : i32
    %295 = arith.addi %294, %c1_i32_234 : i32
    %c0_235 = arith.constant 0 : index
    %296 = arith.index_cast %295 : i32 to index
    %c1_236 = arith.constant 1 : index
    %c0_237 = arith.constant 0 : index
    %297 = vector.load %arg2[%c0_235, %296, %c1_236, %c0_237] : memref<1x9x9x16xbf16, #tpu.memory_space<vmem>>, vector<1x1x8x16xbf16>
    %298 = vector.shape_cast %297 : vector<1x1x8x16xbf16> to vector<1x8x16xbf16>
    %299 = vector.shape_cast %298 : vector<1x8x16xbf16> to vector<8x16xbf16>
    %c3_238 = arith.constant 3 : index
    %c0_239 = arith.constant 0 : index
    %c0_240 = arith.constant 0 : index
    %300 = vector.load %arg3[%c3_238, %c0_239, %c0_240] : memref<4x16x128xbf16, #tpu.memory_space<vmem>>, vector<1x16x128xbf16>
    %301 = vector.shape_cast %300 : vector<1x16x128xbf16> to vector<16x128xbf16>
    %cst_241 = arith.constant dense<0.000000e+00> : vector<8x128xf32>
    %302 = tpu.matmul %299, %301, %cst_241 {dimension_numbers = #tpu.dot_dimension_numbers<[1], [0], [0], [1], [0, 0, 1, 1], [], []>} : vector<8x16xbf16>, vector<16x128xbf16>, vector<8x128xf32> -> vector<8x128xf32>
    %303 = arith.addf %293, %302 : vector<8x128xf32>
    %304 = arith.truncf %303 : vector<8x128xf32> to vector<8x128xbf16>
    %c0_242 = arith.constant 0 : index
    %c5 = arith.constant 5 : index
    %c0_243 = arith.constant 0 : index
    %c0_244 = arith.constant 0 : index
    %305 = vector.load %arg4[%c0_242, %c5, %c0_243, %c0_244] : memref<1x8x8x128xbf16, #tpu.memory_space<vmem>>, vector<1x1x8x128xbf16>
    %306 = vector.shape_cast %305 : vector<1x1x8x128xbf16> to vector<8x128xbf16>
    %307 = vector.shape_cast %304 : vector<8x128xbf16> to vector<1x1x8x128xbf16>
    tpu.vector_store %arg4[%c0_242, %c5, %c0_243, %c0_244], %307 {strides = array<i32>} : memref<1x8x8x128xbf16, #tpu.memory_space<vmem>>, vector<1x1x8x128xbf16>,
    %cst_245 = arith.constant dense<0.000000e+00> : vector<128xf32>
    %308 = vector.multi_reduction <add>, %303, %cst_245 [0] : vector<8x128xf32> to vector<128xf32>
    %309 = vector.shape_cast %308 : vector<128xf32> to vector<1x128xf32>
    %310 = arith.addf %258, %309 : vector<1x128xf32>
    %311 = arith.mulf %303, %303 : vector<8x128xf32>
    %cst_246 = arith.constant dense<0.000000e+00> : vector<128xf32>
    %312 = vector.multi_reduction <add>, %311, %cst_246 [0] : vector<8x128xf32> to vector<128xf32>
    %313 = vector.shape_cast %312 : vector<128xf32> to vector<1x128xf32>
    %314 = arith.addf %262, %313 : vector<1x128xf32>
    %cst_247 = arith.constant 0.000000e+00 : f32
    %315 = vector.broadcast %cst_247 : f32 to vector<8x128xf32>
    %c6_i32 = arith.constant 6 : i32
    %316 = arith.addi %0, %c6_i32 : i32
    %c0_i32_248 = arith.constant 0 : i32
    %317 = arith.addi %316, %c0_i32_248 : i32
    %c0_249 = arith.constant 0 : index
    %318 = arith.index_cast %317 : i32 to index
    %c0_250 = arith.constant 0 : index
    %c0_251 = arith.constant 0 : index
    %319 = vector.load %arg2[%c0_249, %318, %c0_250, %c0_251] : memref<1x9x9x16xbf16, #tpu.memory_space<vmem>>, vector<1x1x8x16xbf16>
    %320 = vector.shape_cast %319 : vector<1x1x8x16xbf16> to vector<1x8x16xbf16>
    %321 = vector.shape_cast %320 : vector<1x8x16xbf16> to vector<8x16xbf16>
    %c0_252 = arith.constant 0 : index
    %c0_253 = arith.constant 0 : index
    %c0_254 = arith.constant 0 : index
    %322 = vector.load %arg3[%c0_252, %c0_253, %c0_254] : memref<4x16x128xbf16, #tpu.memory_space<vmem>>, vector<1x16x128xbf16>
    %323 = vector.shape_cast %322 : vector<1x16x128xbf16> to vector<16x128xbf16>
    %cst_255 = arith.constant dense<0.000000e+00> : vector<8x128xf32>
    %324 = tpu.matmul %321, %323, %cst_255 {dimension_numbers = #tpu.dot_dimension_numbers<[1], [0], [0], [1], [0, 0, 1, 1], [], []>} : vector<8x16xbf16>, vector<16x128xbf16>, vector<8x128xf32> -> vector<8x128xf32>
    %325 = arith.addf %315, %324 : vector<8x128xf32>
    %c6_i32_256 = arith.constant 6 : i32
    %326 = arith.addi %0, %c6_i32_256 : i32
    %c0_i32_257 = arith.constant 0 : i32
    %327 = arith.addi %326, %c0_i32_257 : i32
    %c0_258 = arith.constant 0 : index
    %328 = arith.index_cast %327 : i32 to index
    %c1_259 = arith.constant 1 : index
    %c0_260 = arith.constant 0 : index
    %329 = vector.load %arg2[%c0_258, %328, %c1_259, %c0_260] : memref<1x9x9x16xbf16, #tpu.memory_space<vmem>>, vector<1x1x8x16xbf16>
    %330 = vector.shape_cast %329 : vector<1x1x8x16xbf16> to vector<1x8x16xbf16>
    %331 = vector.shape_cast %330 : vector<1x8x16xbf16> to vector<8x16xbf16>
    %c1_261 = arith.constant 1 : index
    %c0_262 = arith.constant 0 : index
    %c0_263 = arith.constant 0 : index
    %332 = vector.load %arg3[%c1_261, %c0_262, %c0_263] : memref<4x16x128xbf16, #tpu.memory_space<vmem>>, vector<1x16x128xbf16>
    %333 = vector.shape_cast %332 : vector<1x16x128xbf16> to vector<16x128xbf16>
    %cst_264 = arith.constant dense<0.000000e+00> : vector<8x128xf32>
    %334 = tpu.matmul %331, %333, %cst_264 {dimension_numbers = #tpu.dot_dimension_numbers<[1], [0], [0], [1], [0, 0, 1, 1], [], []>} : vector<8x16xbf16>, vector<16x128xbf16>, vector<8x128xf32> -> vector<8x128xf32>
    %335 = arith.addf %325, %334 : vector<8x128xf32>
    %c6_i32_265 = arith.constant 6 : i32
    %336 = arith.addi %0, %c6_i32_265 : i32
    %c1_i32_266 = arith.constant 1 : i32
    %337 = arith.addi %336, %c1_i32_266 : i32
    %c0_267 = arith.constant 0 : index
    %338 = arith.index_cast %337 : i32 to index
    %c0_268 = arith.constant 0 : index
    %c0_269 = arith.constant 0 : index
    %339 = vector.load %arg2[%c0_267, %338, %c0_268, %c0_269] : memref<1x9x9x16xbf16, #tpu.memory_space<vmem>>, vector<1x1x8x16xbf16>
    %340 = vector.shape_cast %339 : vector<1x1x8x16xbf16> to vector<1x8x16xbf16>
    %341 = vector.shape_cast %340 : vector<1x8x16xbf16> to vector<8x16xbf16>
    %c2_270 = arith.constant 2 : index
    %c0_271 = arith.constant 0 : index
    %c0_272 = arith.constant 0 : index
    %342 = vector.load %arg3[%c2_270, %c0_271, %c0_272] : memref<4x16x128xbf16, #tpu.memory_space<vmem>>, vector<1x16x128xbf16>
    %343 = vector.shape_cast %342 : vector<1x16x128xbf16> to vector<16x128xbf16>
    %cst_273 = arith.constant dense<0.000000e+00> : vector<8x128xf32>
    %344 = tpu.matmul %341, %343, %cst_273 {dimension_numbers = #tpu.dot_dimension_numbers<[1], [0], [0], [1], [0, 0, 1, 1], [], []>} : vector<8x16xbf16>, vector<16x128xbf16>, vector<8x128xf32> -> vector<8x128xf32>
    %345 = arith.addf %335, %344 : vector<8x128xf32>
    %c6_i32_274 = arith.constant 6 : i32
    %346 = arith.addi %0, %c6_i32_274 : i32
    %c1_i32_275 = arith.constant 1 : i32
    %347 = arith.addi %346, %c1_i32_275 : i32
    %c0_276 = arith.constant 0 : index
    %348 = arith.index_cast %347 : i32 to index
    %c1_277 = arith.constant 1 : index
    %c0_278 = arith.constant 0 : index
    %349 = vector.load %arg2[%c0_276, %348, %c1_277, %c0_278] : memref<1x9x9x16xbf16, #tpu.memory_space<vmem>>, vector<1x1x8x16xbf16>
    %350 = vector.shape_cast %349 : vector<1x1x8x16xbf16> to vector<1x8x16xbf16>
    %351 = vector.shape_cast %350 : vector<1x8x16xbf16> to vector<8x16xbf16>
    %c3_279 = arith.constant 3 : index
    %c0_280 = arith.constant 0 : index
    %c0_281 = arith.constant 0 : index
    %352 = vector.load %arg3[%c3_279, %c0_280, %c0_281] : memref<4x16x128xbf16, #tpu.memory_space<vmem>>, vector<1x16x128xbf16>
    %353 = vector.shape_cast %352 : vector<1x16x128xbf16> to vector<16x128xbf16>
    %cst_282 = arith.constant dense<0.000000e+00> : vector<8x128xf32>
    %354 = tpu.matmul %351, %353, %cst_282 {dimension_numbers = #tpu.dot_dimension_numbers<[1], [0], [0], [1], [0, 0, 1, 1], [], []>} : vector<8x16xbf16>, vector<16x128xbf16>, vector<8x128xf32> -> vector<8x128xf32>
    %355 = arith.addf %345, %354 : vector<8x128xf32>
    %356 = arith.truncf %355 : vector<8x128xf32> to vector<8x128xbf16>
    %c0_283 = arith.constant 0 : index
    %c6 = arith.constant 6 : index
    %c0_284 = arith.constant 0 : index
    %c0_285 = arith.constant 0 : index
    %357 = vector.load %arg4[%c0_283, %c6, %c0_284, %c0_285] : memref<1x8x8x128xbf16, #tpu.memory_space<vmem>>, vector<1x1x8x128xbf16>
    %358 = vector.shape_cast %357 : vector<1x1x8x128xbf16> to vector<8x128xbf16>
    %359 = vector.shape_cast %356 : vector<8x128xbf16> to vector<1x1x8x128xbf16>
    tpu.vector_store %arg4[%c0_283, %c6, %c0_284, %c0_285], %359 {strides = array<i32>} : memref<1x8x8x128xbf16, #tpu.memory_space<vmem>>, vector<1x1x8x128xbf16>,
    %cst_286 = arith.constant dense<0.000000e+00> : vector<128xf32>
    %360 = vector.multi_reduction <add>, %355, %cst_286 [0] : vector<8x128xf32> to vector<128xf32>
    %361 = vector.shape_cast %360 : vector<128xf32> to vector<1x128xf32>
    %362 = arith.addf %310, %361 : vector<1x128xf32>
    %363 = arith.mulf %355, %355 : vector<8x128xf32>
    %cst_287 = arith.constant dense<0.000000e+00> : vector<128xf32>
    %364 = vector.multi_reduction <add>, %363, %cst_287 [0] : vector<8x128xf32> to vector<128xf32>
    %365 = vector.shape_cast %364 : vector<128xf32> to vector<1x128xf32>
    %366 = arith.addf %314, %365 : vector<1x128xf32>
    %cst_288 = arith.constant 0.000000e+00 : f32
    %367 = vector.broadcast %cst_288 : f32 to vector<8x128xf32>
    %c7_i32 = arith.constant 7 : i32
    %368 = arith.addi %0, %c7_i32 : i32
    %c0_i32_289 = arith.constant 0 : i32
    %369 = arith.addi %368, %c0_i32_289 : i32
    %c0_290 = arith.constant 0 : index
    %370 = arith.index_cast %369 : i32 to index
    %c0_291 = arith.constant 0 : index
    %c0_292 = arith.constant 0 : index
    %371 = vector.load %arg2[%c0_290, %370, %c0_291, %c0_292] : memref<1x9x9x16xbf16, #tpu.memory_space<vmem>>, vector<1x1x8x16xbf16>
    %372 = vector.shape_cast %371 : vector<1x1x8x16xbf16> to vector<1x8x16xbf16>
    %373 = vector.shape_cast %372 : vector<1x8x16xbf16> to vector<8x16xbf16>
    %c0_293 = arith.constant 0 : index
    %c0_294 = arith.constant 0 : index
    %c0_295 = arith.constant 0 : index
    %374 = vector.load %arg3[%c0_293, %c0_294, %c0_295] : memref<4x16x128xbf16, #tpu.memory_space<vmem>>, vector<1x16x128xbf16>
    %375 = vector.shape_cast %374 : vector<1x16x128xbf16> to vector<16x128xbf16>
    %cst_296 = arith.constant dense<0.000000e+00> : vector<8x128xf32>
    %376 = tpu.matmul %373, %375, %cst_296 {dimension_numbers = #tpu.dot_dimension_numbers<[1], [0], [0], [1], [0, 0, 1, 1], [], []>} : vector<8x16xbf16>, vector<16x128xbf16>, vector<8x128xf32> -> vector<8x128xf32>
    %377 = arith.addf %367, %376 : vector<8x128xf32>
    %c7_i32_297 = arith.constant 7 : i32
    %378 = arith.addi %0, %c7_i32_297 : i32
    %c0_i32_298 = arith.constant 0 : i32
    %379 = arith.addi %378, %c0_i32_298 : i32
    %c0_299 = arith.constant 0 : index
    %380 = arith.index_cast %379 : i32 to index
    %c1_300 = arith.constant 1 : index
    %c0_301 = arith.constant 0 : index
    %381 = vector.load %arg2[%c0_299, %380, %c1_300, %c0_301] : memref<1x9x9x16xbf16, #tpu.memory_space<vmem>>, vector<1x1x8x16xbf16>
    %382 = vector.shape_cast %381 : vector<1x1x8x16xbf16> to vector<1x8x16xbf16>
    %383 = vector.shape_cast %382 : vector<1x8x16xbf16> to vector<8x16xbf16>
    %c1_302 = arith.constant 1 : index
    %c0_303 = arith.constant 0 : index
    %c0_304 = arith.constant 0 : index
    %384 = vector.load %arg3[%c1_302, %c0_303, %c0_304] : memref<4x16x128xbf16, #tpu.memory_space<vmem>>, vector<1x16x128xbf16>
    %385 = vector.shape_cast %384 : vector<1x16x128xbf16> to vector<16x128xbf16>
    %cst_305 = arith.constant dense<0.000000e+00> : vector<8x128xf32>
    %386 = tpu.matmul %383, %385, %cst_305 {dimension_numbers = #tpu.dot_dimension_numbers<[1], [0], [0], [1], [0, 0, 1, 1], [], []>} : vector<8x16xbf16>, vector<16x128xbf16>, vector<8x128xf32> -> vector<8x128xf32>
    %387 = arith.addf %377, %386 : vector<8x128xf32>
    %c7_i32_306 = arith.constant 7 : i32
    %388 = arith.addi %0, %c7_i32_306 : i32
    %c1_i32_307 = arith.constant 1 : i32
    %389 = arith.addi %388, %c1_i32_307 : i32
    %c0_308 = arith.constant 0 : index
    %390 = arith.index_cast %389 : i32 to index
    %c0_309 = arith.constant 0 : index
    %c0_310 = arith.constant 0 : index
    %391 = vector.load %arg2[%c0_308, %390, %c0_309, %c0_310] : memref<1x9x9x16xbf16, #tpu.memory_space<vmem>>, vector<1x1x8x16xbf16>
    %392 = vector.shape_cast %391 : vector<1x1x8x16xbf16> to vector<1x8x16xbf16>
    %393 = vector.shape_cast %392 : vector<1x8x16xbf16> to vector<8x16xbf16>
    %c2_311 = arith.constant 2 : index
    %c0_312 = arith.constant 0 : index
    %c0_313 = arith.constant 0 : index
    %394 = vector.load %arg3[%c2_311, %c0_312, %c0_313] : memref<4x16x128xbf16, #tpu.memory_space<vmem>>, vector<1x16x128xbf16>
    %395 = vector.shape_cast %394 : vector<1x16x128xbf16> to vector<16x128xbf16>
    %cst_314 = arith.constant dense<0.000000e+00> : vector<8x128xf32>
    %396 = tpu.matmul %393, %395, %cst_314 {dimension_numbers = #tpu.dot_dimension_numbers<[1], [0], [0], [1], [0, 0, 1, 1], [], []>} : vector<8x16xbf16>, vector<16x128xbf16>, vector<8x128xf32> -> vector<8x128xf32>
    %397 = arith.addf %387, %396 : vector<8x128xf32>
    %c7_i32_315 = arith.constant 7 : i32
    %398 = arith.addi %0, %c7_i32_315 : i32
    %c1_i32_316 = arith.constant 1 : i32
    %399 = arith.addi %398, %c1_i32_316 : i32
    %c0_317 = arith.constant 0 : index
    %400 = arith.index_cast %399 : i32 to index
    %c1_318 = arith.constant 1 : index
    %c0_319 = arith.constant 0 : index
    %401 = vector.load %arg2[%c0_317, %400, %c1_318, %c0_319] : memref<1x9x9x16xbf16, #tpu.memory_space<vmem>>, vector<1x1x8x16xbf16>
    %402 = vector.shape_cast %401 : vector<1x1x8x16xbf16> to vector<1x8x16xbf16>
    %403 = vector.shape_cast %402 : vector<1x8x16xbf16> to vector<8x16xbf16>
    %c3_320 = arith.constant 3 : index
    %c0_321 = arith.constant 0 : index
    %c0_322 = arith.constant 0 : index
    %404 = vector.load %arg3[%c3_320, %c0_321, %c0_322] : memref<4x16x128xbf16, #tpu.memory_space<vmem>>, vector<1x16x128xbf16>
    %405 = vector.shape_cast %404 : vector<1x16x128xbf16> to vector<16x128xbf16>
    %cst_323 = arith.constant dense<0.000000e+00> : vector<8x128xf32>
    %406 = tpu.matmul %403, %405, %cst_323 {dimension_numbers = #tpu.dot_dimension_numbers<[1], [0], [0], [1], [0, 0, 1, 1], [], []>} : vector<8x16xbf16>, vector<16x128xbf16>, vector<8x128xf32> -> vector<8x128xf32>
    %407 = arith.addf %397, %406 : vector<8x128xf32>
    %408 = arith.truncf %407 : vector<8x128xf32> to vector<8x128xbf16>
    %c0_324 = arith.constant 0 : index
    %c7 = arith.constant 7 : index
    %c0_325 = arith.constant 0 : index
    %c0_326 = arith.constant 0 : index
    %409 = vector.load %arg4[%c0_324, %c7, %c0_325, %c0_326] : memref<1x8x8x128xbf16, #tpu.memory_space<vmem>>, vector<1x1x8x128xbf16>
    %410 = vector.shape_cast %409 : vector<1x1x8x128xbf16> to vector<8x128xbf16>
    %411 = vector.shape_cast %408 : vector<8x128xbf16> to vector<1x1x8x128xbf16>
    tpu.vector_store %arg4[%c0_324, %c7, %c0_325, %c0_326], %411 {strides = array<i32>} : memref<1x8x8x128xbf16, #tpu.memory_space<vmem>>, vector<1x1x8x128xbf16>,
    %cst_327 = arith.constant dense<0.000000e+00> : vector<128xf32>
    %412 = vector.multi_reduction <add>, %407, %cst_327 [0] : vector<8x128xf32> to vector<128xf32>
    %413 = vector.shape_cast %412 : vector<128xf32> to vector<1x128xf32>
    %414 = arith.addf %362, %413 : vector<1x128xf32>
    %415 = arith.mulf %407, %407 : vector<8x128xf32>
    %cst_328 = arith.constant dense<0.000000e+00> : vector<128xf32>
    %416 = vector.multi_reduction <add>, %415, %cst_328 [0] : vector<8x128xf32> to vector<128xf32>
    %417 = vector.shape_cast %416 : vector<128xf32> to vector<1x128xf32>
    %418 = arith.addf %366, %417 : vector<1x128xf32>
    %419 = vector.shape_cast %414 : vector<1x128xf32> to vector<1x1x128xf32>
    %c0_329 = arith.constant 0 : index
    %c0_330 = arith.constant 0 : index
    %c0_331 = arith.constant 0 : index
    %c0_332 = arith.constant 0 : index
    %420 = vector.load %arg5[%c0_329, %c0_330, %c0_331, %c0_332] : memref<1x1x1x128xf32, #tpu.memory_space<vmem>>, vector<1x1x1x128xf32>
    %421 = vector.shape_cast %420 : vector<1x1x1x128xf32> to vector<1x1x128xf32>
    %422 = vector.shape_cast %419 : vector<1x1x128xf32> to vector<1x1x1x128xf32>
    tpu.vector_store %arg5[%c0_329, %c0_330, %c0_331, %c0_332], %422 {strides = array<i32>} : memref<1x1x1x128xf32, #tpu.memory_space<vmem>>, vector<1x1x1x128xf32>,
    %423 = vector.shape_cast %418 : vector<1x128xf32> to vector<1x1x128xf32>
    %c0_333 = arith.constant 0 : index
    %c0_334 = arith.constant 0 : index
    %c0_335 = arith.constant 0 : index
    %c0_336 = arith.constant 0 : index
    %424 = vector.load %arg6[%c0_333, %c0_334, %c0_335, %c0_336] : memref<1x1x1x128xf32, #tpu.memory_space<vmem>>, vector<1x1x1x128xf32>
    %425 = vector.shape_cast %424 : vector<1x1x1x128xf32> to vector<1x1x128xf32>
    %426 = vector.shape_cast %423 : vector<1x1x128xf32> to vector<1x1x1x128xf32>
    tpu.vector_store %arg6[%c0_333, %c0_334, %c0_335, %c0_336], %426 {strides = array<i32>} : memref<1x1x1x128xf32, #tpu.memory_space<vmem>>, vector<1x1x1x128xf32>,
    return
  }
  func.func @transform_0(%arg0: i32, %arg1: i32) -> (i32, i32, i32, i32) {
    %c0_i32 = arith.constant 0 : i32
    %c0_i32_0 = arith.constant 0 : i32
    %c0_i32_1 = arith.constant 0 : i32
    %c0_i32_2 = arith.constant 0 : i32
    return %arg0, %c0_i32, %c0_i32_0, %c0_i32_1 : i32, i32, i32, i32
  }
  func.func @transform_1(%arg0: i32, %arg1: i32) -> (i32, i32, i32) {
    %c0_i32 = arith.constant 0 : i32
    %c0_i32_0 = arith.constant 0 : i32
    %c0_i32_1 = arith.constant 0 : i32
    %c0_i32_2 = arith.constant 0 : i32
    return %c0_i32, %c0_i32_0, %c0_i32_1 : i32, i32, i32
  }
  func.func @transform_2(%arg0: i32, %arg1: i32) -> (i32, i32, i32, i32) {
    %c0_i32 = arith.constant 0 : i32
    %c0_i32_0 = arith.constant 0 : i32
    %c0_i32_1 = arith.constant 0 : i32
    return %arg0, %arg1, %c0_i32, %c0_i32_0 : i32, i32, i32, i32
  }
  func.func @transform_3(%arg0: i32, %arg1: i32) -> (i32, i32, i32, i32) {
    %c0_i32 = arith.constant 0 : i32
    %c0_i32_0 = arith.constant 0 : i32
    %c0_i32_1 = arith.constant 0 : i32
    return %arg0, %arg1, %c0_i32, %c0_i32_0 : i32, i32, i32, i32
  }
  func.func @transform_4(%arg0: i32, %arg1: i32) -> (i32, i32, i32, i32) {
    %c0_i32 = arith.constant 0 : i32
    %c0_i32_0 = arith.constant 0 : i32
    %c0_i32_1 = arith.constant 0 : i32
    return %arg0, %arg1, %c0_i32, %c0_i32_0 : i32, i32, i32, i32
  }
}

</mosaic_0001>

<llo_original>
// kernel: tpu_custom_call.1
$region0: #{tpu_custom_call.1}
  #allocation0 [shape = 'u32[]', space=smem, size = 0x4, offset = 0x4, fixed_abs, tag = 'smem constant byte address 0x4 - core index']
  #allocation1 [shape = 'u32[144,128]{1,0:T(1,128)}', space=vmem, size = 0x12000, scoped, tag = 'internal scratch']
  %s0 = inlined_call_operand.vmem [shape: bf16[2,9,9,16], index: 0, kind: input, shape index: {}]
  %s1 = inlined_call_operand.vmem [shape: bf16[4,16,128], index: 1, kind: input, shape index: {}]
  %s2 = inlined_call_operand.hbm [shape: bf16[2,8,8,128], index: 2, kind: output, shape index: {0}]
  %s3 = inlined_call_operand.hbm [shape: f32[2,1,1,128], index: 3, kind: output, shape index: {1}]
  %s4 = inlined_call_operand.hbm [shape: f32[2,1,1,128], index: 4, kind: output, shape index: {2}]
  %5 = xla_tuple %s2, %s3, %s4
  %s6 = sld [smem:[#allocation0]]
  $region57: #{tpu_custom_call.1} parent=0
    _
  %s8 = ssub.s32 1, %s6
  %s9 = scalar_select 0, %s8, %s6
  $region1: #{tpu_custom_call.1} parent=0
    #allocation2 [shape = 'u8[32768]{0}', space=vmem, size = 0x8000, scoped, tag = 'output window, operand 0']
    #allocation3 [shape = 's32[2]{0}', space=sflag, size = 0x8, scoped, tag = 'scoped memory for tpu_custom_call.1']
    #allocation4 [shape = 'u8[1024]{0}', space=vmem, size = 0x400, scoped, tag = 'output window, operand 1']
    #allocation5 [shape = 's32[2]{0}', space=sflag, size = 0x8, scoped, tag = 'scoped memory for tpu_custom_call.1']
    #allocation6 [shape = 'u8[1024]{0}', space=vmem, size = 0x400, scoped, tag = 'output window, operand 2']
    %10 = vsyncpa [#allocation3], 0
    %s11 = scalar_lea.sflag [#allocation3], 1
    %12 = vsyncpa %s11, 0
    %13 = vsyncpa [#allocation5], 0
    %s14 = scalar_lea.sflag [#allocation5], 1
    %15 = vsyncpa %s14, 0
    loop: start=0, step=1, limit=4
    $region2: #{tpu_custom_call.1} parent=1 // loop_pre_header
      _
    $region3: #{tpu_custom_call.1} parent=1 // loop_header
      %s17 = sphi 0, %s21
      %p18 = scmp.ge.s32.totalorder %s17, 4
      %s24 = sphi 0, %s36
      %s25 = sphi 0, %s32
      %s26 = sphi 0, %s24
      %s27 = sphi 0, %s25
      %s28 = sphi 0, %s26
      %s29 = sphi 0, %s27
      %s39 = sphi 0, %s41
      %s42 = sphi 0, %s39
      %s43 = sphi 0, %s42
      %s59 = sphi 0, %s43
      %s63 = sphi 0, %s63
      %s65 = sphi 0, %s63
      %s66 = sphi 0, %s65
      %s80 = sphi 0, %s66
      %s88 = sphi 0, %s90
      %s91 = sphi 0, %s88
      %s92 = sphi 0, %s91
      %s108 = sphi 0, %s92
      %s116 = sphi 0, %s118
      %s119 = sphi 0, %s116
      %s120 = sphi 0, %s119
      %s136 = sphi 0, %s120
      %s144 = sphi 0, %s146
      %s147 = sphi 0, %s144
      %s148 = sphi 0, %s147
      %s164 = sphi 0, %s148
    $region4: #{tpu_custom_call.1} parent=1 // loop_header_branch
      %20 = sbr.rel (%p18) target = $region8
    $region5: #{tpu_custom_call.1} parent=1 // loop_body
      %s22 = ssub.s32 %s17, 1
      %s23 = ssub.s32 %s17, 2
      %s30 = sadd.s32 1, %s25
      %p31 = scmp.ge.s32.totalorder %s30, 1
      %s32 = scalar_select %p31, 0, %s30
      %s33 = sadd.s32 1, %s24
      %s34 = scalar_select %p31, %s33, %s24
      %p35 = scmp.ge.s32.totalorder %s34, 2
      %s36 = scalar_select %p35, 0, %s34
      %s37 = ssub.s32 %s24, %s36
      %p38 = scmp.eq.s32.totalorder %s37, 0
      %s40 = sadd.s32 %s39, 1
      %s41 = scalar_select %p38, %s39, %s40
      %p44 = pneg %p38
      %p45 = scmp.eq.s32.totalorder %s17, 1
      %p46 = por %p44, %p45
      %p47 = scmp.ne.s32.totalorder %s39, %s42
      %p48 = scmp.eq.s32.totalorder %s17, 0
      %p49 = por %p47, %p48
      %p50 = scmp.ne.s32.totalorder %s39, %s42
      %p51 = scmp.eq.s32.totalorder %s22, 1
      %p52 = por %p50, %p51
      %p53 = scmp.ne.s32.totalorder %s42, %s43
      %p54 = scmp.eq.s32.totalorder %s22, 0
      %p55 = por %p53, %p54
      %p56 = scmp.ne.s32.totalorder %s42, %s43
      %p57 = scmp.eq.s32.totalorder %s23, 1
      %p58 = por %p56, %p57
      %p60 = scmp.ne.s32.totalorder %s43, %s59
      %p61 = scmp.eq.s32.totalorder %s23, 0
      %p62 = por %p60, %p61
      %s64 = sadd.s32 %s63, 1
      %p67 = scmp.eq.s32.totalorder %s17, 1
      %p68 = scmp.ne.s32.totalorder %s63, %s65
      %p69 = scmp.eq.s32.totalorder %s17, 0
      %p70 = por %p68, %p69
      %p71 = scmp.ne.s32.totalorder %s63, %s65
      %p72 = scmp.eq.s32.totalorder %s22, 1
      %p73 = por %p71, %p72
      %p74 = scmp.ne.s32.totalorder %s65, %s66
      %p75 = scmp.eq.s32.totalorder %s22, 0
      %p76 = por %p74, %p75
      %p77 = scmp.ne.s32.totalorder %s65, %s66
      %p78 = scmp.eq.s32.totalorder %s23, 1
      %p79 = por %p77, %p78
      %p81 = scmp.ne.s32.totalorder %s66, %s80
      %p82 = scmp.eq.s32.totalorder %s23, 0
      %p83 = por %p81, %p82
      %s84 = ssub.s32 %s24, %s36
      %s85 = ssub.s32 %s25, %s32
      %s86 = sor.u32 %s84, %s85
      %p87 = scmp.eq.s32.totalorder %s86, 0
      %s89 = sadd.s32 %s88, 1
      %s90 = scalar_select %p87, %s88, %s89
      %p93 = pneg %p87
      %p94 = scmp.eq.s32.totalorder %s17, 1
      %p95 = por %p93, %p94
      %p96 = scmp.ne.s32.totalorder %s88, %s91
      %p97 = scmp.eq.s32.totalorder %s17, 0
      %p98 = por %p96, %p97
      %p99 = scmp.ne.s32.totalorder %s88, %s91
      %p100 = scmp.eq.s32.totalorder %s22, 1
      %p101 = por %p99, %p100
      %p102 = scmp.ne.s32.totalorder %s91, %s92
      %p103 = scmp.eq.s32.totalorder %s22, 0
      %p104 = por %p102, %p103
      %p105 = scmp.ne.s32.totalorder %s91, %s92
      %p106 = scmp.eq.s32.totalorder %s23, 1
      %p107 = por %p105, %p106
      %p109 = scmp.ne.s32.totalorder %s92, %s108
      %p110 = scmp.eq.s32.totalorder %s23, 0
      %p111 = por %p109, %p110
      %s112 = ssub.s32 %s24, %s36
      %s113 = ssub.s32 %s25, %s32
      %s114 = sor.u32 %s112, %s113
      %p115 = scmp.eq.s32.totalorder %s114, 0
      %s117 = sadd.s32 %s116, 1
      %s118 = scalar_select %p115, %s116, %s117
      %p121 = pneg %p115
      %p122 = scmp.eq.s32.totalorder %s17, 1
      %p123 = por %p121, %p122
      %p124 = scmp.ne.s32.totalorder %s116, %s119
      %p125 = scmp.eq.s32.totalorder %s17, 0
      %p126 = por %p124, %p125
      %p127 = scmp.ne.s32.totalorder %s116, %s119
      %p128 = scmp.eq.s32.totalorder %s22, 1
      %p129 = por %p127, %p128
      %p130 = scmp.ne.s32.totalorder %s119, %s120
      %p131 = scmp.eq.s32.totalorder %s22, 0
      %p132 = por %p130, %p131
      %p133 = scmp.ne.s32.totalorder %s119, %s120
      %p134 = scmp.eq.s32.totalorder %s23, 1
      %p135 = por %p133, %p134
      %p137 = scmp.ne.s32.totalorder %s120, %s136
      %p138 = scmp.eq.s32.totalorder %s23, 0
      %p139 = por %p137, %p138
      %s140 = ssub.s32 %s24, %s36
      %s141 = ssub.s32 %s25, %s32
      %s142 = sor.u32 %s140, %s141
      %p143 = scmp.eq.s32.totalorder %s142, 0
      %s145 = sadd.s32 %s144, 1
      %s146 = scalar_select %p143, %s144, %s145
      %p149 = pneg %p143
      %p150 = scmp.eq.s32.totalorder %s17, 1
      %p151 = por %p149, %p150
      %p152 = scmp.ne.s32.totalorder %s144, %s147
      %p153 = scmp.eq.s32.totalorder %s17, 0
      %p154 = por %p152, %p153
      %p155 = scmp.ne.s32.totalorder %s144, %s147
      %p156 = scmp.eq.s32.totalorder %s22, 1
      %p157 = por %p155, %p156
      %p158 = scmp.ne.s32.totalorder %s147, %s148
      %p159 = scmp.eq.s32.totalorder %s22, 0
      %p160 = por %p158, %p159
      %p161 = scmp.ne.s32.totalorder %s147, %s148
      %p162 = scmp.eq.s32.totalorder %s23, 1
      %p163 = por %p161, %p162
      %p165 = scmp.ne.s32.totalorder %s148, %s164
      %p166 = scmp.eq.s32.totalorder %s23, 0
      %p167 = por %p165, %p166
      %p168 = scmp.le.s32.totalorder 1, %s17
      %p169 = scmp.lt.s32.totalorder %s17, 3
      %p170 = pnand %p168, %p169
      %p171 = pneg %p170
      // Predicated region
      $region9: #{tpu_custom_call.1} parent=5 // pred_check
        _
      $region10: #{tpu_custom_call.1} parent=5 // pred_check_branch
        %173 = sbr.rel (%p170) target = $region12
      $region11: #{tpu_custom_call.1} parent=5 // pred_region
        %s174 = ssub.s32 %s17, 1
        // Predicated region
        $region13: #{tpu_custom_call.1} parent=11 // pred_check
          %p175 = pneg %p76
        $region14: #{tpu_custom_call.1} parent=11 // pred_check_branch
          %177 = sbr.rel (%p175) target = $region16
        $region15: #{tpu_custom_call.1} parent=11 // pred_region
          _
        $region16: #{tpu_custom_call.1} parent=11 // pred_fallthru
          _
      $region12: #{tpu_custom_call.1} parent=5 // pred_fallthru
        _
      %p178 = scmp.lt.s32.totalorder %s17, 2
      // Predicated region
      $region17: #{tpu_custom_call.1} parent=5 // pred_check
        %p179 = pneg %p178
      $region18: #{tpu_custom_call.1} parent=5 // pred_check_branch
        %181 = sbr.rel (%p179) target = $region20
      $region19: #{tpu_custom_call.1} parent=5 // pred_region
        // Predicated region
        $region21: #{tpu_custom_call.1} parent=19 // pred_check
          %p182 = pneg %p49
        $region22: #{tpu_custom_call.1} parent=19 // pred_check_branch
          %184 = sbr.rel (%p182) target = $region24
        $region23: #{tpu_custom_call.1} parent=19 // pred_region
          %p185 = scmp.lt.s32.totalorder %s24, 1
          %s186 = scalar_select %p185, %s24, 1
          %s187 = smul.addr %s186, 18
          %s188 = smul.addr %s187, 4
          %s189 = scalar_lea.vmem %s0, %s188
        $region24: #{tpu_custom_call.1} parent=19 // pred_fallthru
          _
      $region20: #{tpu_custom_call.1} parent=5 // pred_fallthru
        _
      %p190 = scmp.le.s32.totalorder 1, %s17
      %p191 = scmp.lt.s32.totalorder %s17, 3
      %p192 = pnand %p190, %p191
      %p193 = pneg %p192
      // Predicated region
      $region25: #{tpu_custom_call.1} parent=5 // pred_check
        _
      $region26: #{tpu_custom_call.1} parent=5 // pred_check_branch
        %195 = sbr.rel (%p192) target = $region28
      $region27: #{tpu_custom_call.1} parent=5 // pred_region
        %s196 = ssub.s32 %s17, 1
        %p197 = scmp.lt.s32.totalorder %s26, 1
        %s198 = scalar_select %p197, %s26, 1
        %s199 = smul.addr %s198, 18
        %s200 = smul.addr %s199, 4
        %s201 = scalar_lea.vmem %s0, %s200
        %p202 = pneg %p55
        %p203 = pneg %p52
        %p204 = pneg %p76
        %p205 = pneg %p73
        %p206 = pneg %p104
        %p207 = pneg %p101
        %s208 = sand.u32 %s91, 1
        %s209 = scalar_lea.sflag [#allocation3], %s208
        %s210 = sand.u32 %s91, 1
        %s211 = smul.addr %s210, 32
        %s212 = scalar_lea.vmem [#allocation2], %s211
        %p213 = pneg %p132
        %p214 = pneg %p129
        %s215 = sand.u32 %s22, 1
        %s216 = scalar_lea.sflag [#allocation5], %s215
        %s217 = sand.u32 %s119, 1
        %s218 = scalar_lea.vmem [#allocation4], %s217
        %p219 = pneg %p160
        %p220 = pneg %p157
        %s221 = sand.u32 %s22, 1
        %s222 = scalar_lea.sflag [#allocation5], %s221
        %s223 = sand.u32 %s147, 1
        %s224 = scalar_lea.vmem [#allocation6], %s223
        %p225 = scmp.lt.s32.totalorder %s26, 1
        %s226 = scalar_select %p225, %s26, 1
        %s227 = smul.addr %s226, 18
        %s228 = smul.addr %s227, 4
        %s229 = scalar_lea.vmem %s0, %s228
        %s230 = smul.u32 8, %s27
        %s232 = smul.u32 %s27, 8
        %s233 = smul.u32 %s232, 2
        %s234 = smul.addr %s233, 4
        %s235 = scalar_lea.vmem %s229, %s234
        %v236 = vld [vmem:[%s235] sm:$0xf]
        %v237 = vld [vmem:[%s1] sm:$0xf]
        %v238 = vld [vmem:[%s1 + $0x4] sm:$0xf]
        %v239 = vld [vmem:[%s235 + $0x4] sm:$0x1]
        %s240 = scalar_lea.vmem %s1, 8
        %v241 = vld [vmem:[%s240] sm:$0xf]
        %v242 = vld [vmem:[%s240 + $0x4] sm:$0xf]
        %v245 = vunpack.c.l.b16 %v236
        %v246 = vunpack.c.l.b16 %v239
        %v247 = vpack.c.b16 %v246, %v245
        %v249 = vshrl.u32 %v247, 16
        %v251 = vshll.u32 %v247, 16
        %v253 = vrot.slane %v251, 1
        %v254 = vor.u32 %v249, %v253
        %v257 = vunpack.c.l.b16 %v241
        %v258 = vunpack.c.l.b16 %v242
        %v259 = vpack.c.b16 %v258, %v257
        %vm261 = vcmask 130048
        %v263 = vsel %vm261, %v254, 0
        %265 = vmatprep.subr.bf16.mxu0 0
        %266 = vmatpush1.bf16.msra.mxu0 %v259
        %267 = vmatprep.subr.bf16.mxu0 0
        %268 = vmatpush1.bf16.msra.mxu0 0
        %269 = vmatprep.subr.bf16.mxu0 0
        %270 = vmatpush1.bf16.msra.mxu0 0
        %271 = vmatprep.subr.bf16.mxu0 0
        %272 = vmatpush1.bf16.msra.mxu0 0
        %273 = vmatprep.subr.bf16.mxu0 0
        %274 = vmatpush1.bf16.msra.mxu0 0
        %275 = vmatprep.subr.bf16.mxu0 0
        %276 = vmatpush1.bf16.msra.mxu0 0
        %277 = vmatprep.subr.bf16.mxu0 0
        %278 = vmatpush1.bf16.msra.mxu0 0
        %279 = vmatprep.subr.bf16.mxu0 0
        %280 = vmatpush1.bf16.msra.mxu0 0
        %281 = vmatprep.subr.bf16.mxu0 0
        %282 = vmatpush1.bf16.msra.mxu0 0
        %283 = vmatprep.subr.bf16.mxu0 0
        %284 = vmatpush1.bf16.msra.mxu0 0
        %285 = vmatprep.subr.bf16.mxu0 0
        %286 = vmatpush1.bf16.msra.mxu0 0
        %287 = vmatprep.subr.bf16.mxu0 0
        %288 = vmatpush1.bf16.msra.mxu0 0
        %289 = vmatprep.subr.bf16.mxu0 0
        %290 = vmatpush1.bf16.msra.mxu0 0
        %291 = vmatprep.subr.bf16.mxu0 0
        %292 = vmatpush1.bf16.msra.mxu0 0
        %293 = vmatprep.subr.bf16.mxu0 0
        %294 = vmatpush1.bf16.msra.mxu0 0
        %295 = vmatprep.subr.bf16.mxu0 0
        %296 = vmatpush1.bf16.msra.mxu0 0
        %297 = vmatprep.mubr.bf16.mxu0 0
        %298 = vmatmul.mubr.bf16.gmra.mrb[0].mxu0 %v263
        %v299 = vpop.f32.mrb[0].mxu0
        %v300 = vadd.f32 0.0, %v299
        %v301 = vpop.f32.mrb[0].mxu0
        %v302 = vpop.f32.mrb[0].mxu0
        %v303 = vpop.f32.mrb[0].mxu0
        %304 = vdwg.mxu0
        %v307 = vunpack.c.l.b16 %v237
        %v308 = vunpack.c.l.b16 %v238
        %v309 = vpack.c.b16 %v308, %v307
        %v312 = vsel %vm261, %v236, 0
        %314 = vmatprep.subr.bf16.mxu0 0
        %315 = vmatpush1.bf16.msra.mxu0 %v309
        %316 = vmatprep.subr.bf16.mxu0 0
        %317 = vmatpush1.bf16.msra.mxu0 0
        %318 = vmatprep.subr.bf16.mxu0 0
        %319 = vmatpush1.bf16.msra.mxu0 0
        %320 = vmatprep.subr.bf16.mxu0 0
        %321 = vmatpush1.bf16.msra.mxu0 0
        %322 = vmatprep.subr.bf16.mxu0 0
        %323 = vmatpush1.bf16.msra.mxu0 0
        %324 = vmatprep.subr.bf16.mxu0 0
        %325 = vmatpush1.bf16.msra.mxu0 0
        %326 = vmatprep.subr.bf16.mxu0 0
        %327 = vmatpush1.bf16.msra.mxu0 0
        %328 = vmatprep.subr.bf16.mxu0 0
        %329 = vmatpush1.bf16.msra.mxu0 0
        %330 = vmatprep.subr.bf16.mxu0 0
        %331 = vmatpush1.bf16.msra.mxu0 0
        %332 = vmatprep.subr.bf16.mxu0 0
        %333 = vmatpush1.bf16.msra.mxu0 0
        %334 = vmatprep.subr.bf16.mxu0 0
        %335 = vmatpush1.bf16.msra.mxu0 0
        %336 = vmatprep.subr.bf16.mxu0 0
        %337 = vmatpush1.bf16.msra.mxu0 0
        %338 = vmatprep.subr.bf16.mxu0 0
        %339 = vmatpush1.bf16.msra.mxu0 0
        %340 = vmatprep.subr.bf16.mxu0 0
        %341 = vmatpush1.bf16.msra.mxu0 0
        %342 = vmatprep.subr.bf16.mxu0 0
        %343 = vmatpush1.bf16.msra.mxu0 0
        %344 = vmatprep.subr.bf16.mxu0 0
        %345 = vmatpush1.bf16.msra.mxu0 0
        %346 = vmatprep.mubr.bf16.mxu0 0
        %347 = vmatmul.mubr.bf16.gmra.mrb[0].mxu0 %v312
        %v348 = vpop.f32.mrb[0].mxu0
        %v349 = vadd.f32 %v300, %v348
        %v350 = vpop.f32.mrb[0].mxu0
        %v351 = vpop.f32.mrb[0].mxu0
        %v352 = vpop.f32.mrb[0].mxu0
        %353 = vdwg.mxu0
        %s354 = sadd.s32 %s232, 1
        %s355 = smul.u32 %s354, 2
        %s356 = smul.addr %s355, 4
        %s357 = scalar_lea.vmem %s229, %s356
        %v358 = vld [vmem:[%s357] sm:$0xf]
        %s359 = scalar_lea.vmem %s1, 16
        %v360 = vld [vmem:[%s359] sm:$0xf]
        %v361 = vld [vmem:[%s359 + $0x4] sm:$0xf]
        %v364 = vunpack.c.l.b16 %v360
        %v365 = vunpack.c.l.b16 %v361
        %v366 = vpack.c.b16 %v365, %v364
        %v369 = vsel %vm261, %v358, 0
        %371 = vmatprep.subr.bf16.mxu0 0
        %372 = vmatpush1.bf16.msra.mxu0 %v366
        %373 = vmatprep.subr.bf16.mxu0 0
        %374 = vmatpush1.bf16.msra.mxu0 0
        %375 = vmatprep.subr.bf16.mxu0 0
        %376 = vmatpush1.bf16.msra.mxu0 0
        %377 = vmatprep.subr.bf16.mxu0 0
        %378 = vmatpush1.bf16.msra.mxu0 0
        %379 = vmatprep.subr.bf16.mxu0 0
        %380 = vmatpush1.bf16.msra.mxu0 0
        %381 = vmatprep.subr.bf16.mxu0 0
        %382 = vmatpush1.bf16.msra.mxu0 0
        %383 = vmatprep.subr.bf16.mxu0 0
        %384 = vmatpush1.bf16.msra.mxu0 0
        %385 = vmatprep.subr.bf16.mxu0 0
        %386 = vmatpush1.bf16.msra.mxu0 0
        %387 = vmatprep.subr.bf16.mxu0 0
        %388 = vmatpush1.bf16.msra.mxu0 0
        %389 = vmatprep.subr.bf16.mxu0 0
        %390 = vmatpush1.bf16.msra.mxu0 0
        %391 = vmatprep.subr.bf16.mxu0 0
        %392 = vmatpush1.bf16.msra.mxu0 0
        %393 = vmatprep.subr.bf16.mxu0 0
        %394 = vmatpush1.bf16.msra.mxu0 0
        %395 = vmatprep.subr.bf16.mxu0 0
        %396 = vmatpush1.bf16.msra.mxu0 0
        %397 = vmatprep.subr.bf16.mxu0 0
        %398 = vmatpush1.bf16.msra.mxu0 0
        %399 = vmatprep.subr.bf16.mxu0 0
        %400 = vmatpush1.bf16.msra.mxu0 0
        %401 = vmatprep.subr.bf16.mxu0 0
        %402 = vmatpush1.bf16.msra.mxu0 0
        %403 = vmatprep.mubr.bf16.mxu0 0
        %404 = vmatmul.mubr.bf16.gmra.mrb[0].mxu0 %v369
        %v405 = vpop.f32.mrb[0].mxu0
        %v406 = vadd.f32 0.0, %v405
        %v407 = vpop.f32.mrb[0].mxu0
        %v408 = vpop.f32.mrb[0].mxu0
        %v409 = vpop.f32.mrb[0].mxu0
        %410 = vdwg.mxu0
        %v411 = vadd.f32 %v349, %v406
        %v412 = vld [vmem:[%s357] sm:$0xf]
        %v413 = vld [vmem:[%s357 + $0x4] sm:$0x1]
        %s414 = scalar_lea.vmem %s1, 24
        %v415 = vld [vmem:[%s414] sm:$0xf]
        %v416 = vld [vmem:[%s414 + $0x4] sm:$0xf]
        %v419 = vunpack.c.l.b16 %v412
        %v420 = vunpack.c.l.b16 %v413
        %v421 = vpack.c.b16 %v420, %v419
        %v423 = vshrl.u32 %v421, 16
        %v425 = vshll.u32 %v421, 16
        %v427 = vrot.slane %v425, 1
        %v428 = vor.u32 %v423, %v427
        %v431 = vunpack.c.l.b16 %v415
        %v432 = vunpack.c.l.b16 %v416
        %v433 = vpack.c.b16 %v432, %v431
        %v436 = vsel %vm261, %v428, 0
        %438 = vmatprep.subr.bf16.mxu0 0
        %439 = vmatpush1.bf16.msra.mxu0 %v433
        %440 = vmatprep.subr.bf16.mxu0 0
        %441 = vmatpush1.bf16.msra.mxu0 0
        %442 = vmatprep.subr.bf16.mxu0 0
        %443 = vmatpush1.bf16.msra.mxu0 0
        %444 = vmatprep.subr.bf16.mxu0 0
        %445 = vmatpush1.bf16.msra.mxu0 0
        %446 = vmatprep.subr.bf16.mxu0 0
        %447 = vmatpush1.bf16.msra.mxu0 0
        %448 = vmatprep.subr.bf16.mxu0 0
        %449 = vmatpush1.bf16.msra.mxu0 0
        %450 = vmatprep.subr.bf16.mxu0 0
        %451 = vmatpush1.bf16.msra.mxu0 0
        %452 = vmatprep.subr.bf16.mxu0 0
        %453 = vmatpush1.bf16.msra.mxu0 0
        %454 = vmatprep.subr.bf16.mxu0 0
        %455 = vmatpush1.bf16.msra.mxu0 0
        %456 = vmatprep.subr.bf16.mxu0 0
        %457 = vmatpush1.bf16.msra.mxu0 0
        %458 = vmatprep.subr.bf16.mxu0 0
        %459 = vmatpush1.bf16.msra.mxu0 0
        %460 = vmatprep.subr.bf16.mxu0 0
        %461 = vmatpush1.bf16.msra.mxu0 0
        %462 = vmatprep.subr.bf16.mxu0 0
        %463 = vmatpush1.bf16.msra.mxu0 0
        %464 = vmatprep.subr.bf16.mxu0 0
        %465 = vmatpush1.bf16.msra.mxu0 0
        %466 = vmatprep.subr.bf16.mxu0 0
        %467 = vmatpush1.bf16.msra.mxu0 0
        %468 = vmatprep.subr.bf16.mxu0 0
        %469 = vmatpush1.bf16.msra.mxu0 0
        %470 = vmatprep.mubr.bf16.mxu0 0
        %471 = vmatmul.mubr.bf16.gmra.mrb[0].mxu0 %v436
        %v472 = vpop.f32.mrb[0].mxu0
        %v473 = vadd.f32 0.0, %v472
        %v474 = vpop.f32.mrb[0].mxu0
        %v475 = vpop.f32.mrb[0].mxu0
        %v476 = vpop.f32.mrb[0].mxu0
        %477 = vdwg.mxu0
        %v478 = vadd.f32 %v411, %v473
        %v479 = vpack.c.bf16 %v478, %v478
        %480 = vst [vmem:[%s212] sm:$0xf] %v479
        %v481 = vrot.slane %v478, 4
        %v482 = vadd.f32 %v478, %v481
        %v483 = vrot.slane %v482, 2
        %v484 = vadd.f32 %v482, %v483
        %v485 = vrot.slane %v484, 1
        %v486 = vadd.f32 %v484, %v485
        %v487 = vadd.f32 %v486, 0.0
        %v488 = vmul.f32 %v478, %v478
        %v489 = vrot.slane %v488, 4
        %v490 = vadd.f32 %v488, %v489
        %v491 = vrot.slane %v490, 2
        %v492 = vadd.f32 %v490, %v491
        %v493 = vrot.slane %v492, 1
        %v494 = vadd.f32 %v492, %v493
        %v495 = vadd.f32 %v494, 0.0
        %v496 = vld [vmem:[%s357] sm:$0xf]
        %v497 = vld [vmem:[%s1] sm:$0xf]
        %v498 = vld [vmem:[%s1 + $0x4] sm:$0xf]
        %v499 = vld [vmem:[%s357 + $0x4] sm:$0x1]
        %v500 = vld [vmem:[%s240] sm:$0xf]
        %v501 = vld [vmem:[%s240 + $0x4] sm:$0xf]
        %v504 = vunpack.c.l.b16 %v496
        %v505 = vunpack.c.l.b16 %v499
        %v506 = vpack.c.b16 %v505, %v504
        %v508 = vshrl.u32 %v506, 16
        %v510 = vshll.u32 %v506, 16
        %v512 = vrot.slane %v510, 1
        %v513 = vor.u32 %v508, %v512
        %v516 = vunpack.c.l.b16 %v500
        %v517 = vunpack.c.l.b16 %v501
        %v518 = vpack.c.b16 %v517, %v516
        %v521 = vsel %vm261, %v513, 0
        %523 = vmatprep.subr.bf16.mxu0 0
        %524 = vmatpush1.bf16.msra.mxu0 %v518
        %525 = vmatprep.subr.bf16.mxu0 0
        %526 = vmatpush1.bf16.msra.mxu0 0
        %527 = vmatprep.subr.bf16.mxu0 0
        %528 = vmatpush1.bf16.msra.mxu0 0
        %529 = vmatprep.subr.bf16.mxu0 0
        %530 = vmatpush1.bf16.msra.mxu0 0
        %531 = vmatprep.subr.bf16.mxu0 0
        %532 = vmatpush1.bf16.msra.mxu0 0
        %533 = vmatprep.subr.bf16.mxu0 0
        %534 = vmatpush1.bf16.msra.mxu0 0
        %535 = vmatprep.subr.bf16.mxu0 0
        %536 = vmatpush1.bf16.msra.mxu0 0
        %537 = vmatprep.subr.bf16.mxu0 0
        %538 = vmatpush1.bf16.msra.mxu0 0
        %539 = vmatprep.subr.bf16.mxu0 0
        %540 = vmatpush1.bf16.msra.mxu0 0
        %541 = vmatprep.subr.bf16.mxu0 0
        %542 = vmatpush1.bf16.msra.mxu0 0
        %543 = vmatprep.subr.bf16.mxu0 0
        %544 = vmatpush1.bf16.msra.mxu0 0
        %545 = vmatprep.subr.bf16.mxu0 0
        %546 = vmatpush1.bf16.msra.mxu0 0
        %547 = vmatprep.subr.bf16.mxu0 0
        %548 = vmatpush1.bf16.msra.mxu0 0
        %549 = vmatprep.subr.bf16.mxu0 0
        %550 = vmatpush1.bf16.msra.mxu0 0
        %551 = vmatprep.subr.bf16.mxu0 0
        %552 = vmatpush1.bf16.msra.mxu0 0
        %553 = vmatprep.subr.bf16.mxu0 0
        %554 = vmatpush1.bf16.msra.mxu0 0
        %555 = vmatprep.mubr.bf16.mxu0 0
        %556 = vmatmul.mubr.bf16.gmra.mrb[0].mxu0 %v521
        %v557 = vpop.f32.mrb[0].mxu0
        %v558 = vadd.f32 0.0, %v557
        %v559 = vpop.f32.mrb[0].mxu0
        %v560 = vpop.f32.mrb[0].mxu0
        %v561 = vpop.f32.mrb[0].mxu0
        %562 = vdwg.mxu0
        %v565 = vunpack.c.l.b16 %v497
        %v566 = vunpack.c.l.b16 %v498
        %v567 = vpack.c.b16 %v566, %v565
        %v570 = vsel %vm261, %v496, 0
        %572 = vmatprep.subr.bf16.mxu0 0
        %573 = vmatpush1.bf16.msra.mxu0 %v567
        %574 = vmatprep.subr.bf16.mxu0 0
        %575 = vmatpush1.bf16.msra.mxu0 0
        %576 = vmatprep.subr.bf16.mxu0 0
        %577 = vmatpush1.bf16.msra.mxu0 0
        %578 = vmatprep.subr.bf16.mxu0 0
        %579 = vmatpush1.bf16.msra.mxu0 0
        %580 = vmatprep.subr.bf16.mxu0 0
        %581 = vmatpush1.bf16.msra.mxu0 0
        %582 = vmatprep.subr.bf16.mxu0 0
        %583 = vmatpush1.bf16.msra.mxu0 0
        %584 = vmatprep.subr.bf16.mxu0 0
        %585 = vmatpush1.bf16.msra.mxu0 0
        %586 = vmatprep.subr.bf16.mxu0 0
        %587 = vmatpush1.bf16.msra.mxu0 0
        %588 = vmatprep.subr.bf16.mxu0 0
        %589 = vmatpush1.bf16.msra.mxu0 0
        %590 = vmatprep.subr.bf16.mxu0 0
        %591 = vmatpush1.bf16.msra.mxu0 0
        %592 = vmatprep.subr.bf16.mxu0 0
        %593 = vmatpush1.bf16.msra.mxu0 0
        %594 = vmatprep.subr.bf16.mxu0 0
        %595 = vmatpush1.bf16.msra.mxu0 0
        %596 = vmatprep.subr.bf16.mxu0 0
        %597 = vmatpush1.bf16.msra.mxu0 0
        %598 = vmatprep.subr.bf16.mxu0 0
        %599 = vmatpush1.bf16.msra.mxu0 0
        %600 = vmatprep.subr.bf16.mxu0 0
        %601 = vmatpush1.bf16.msra.mxu0 0
        %602 = vmatprep.subr.bf16.mxu0 0
        %603 = vmatpush1.bf16.msra.mxu0 0
        %604 = vmatprep.mubr.bf16.mxu0 0
        %605 = vmatmul.mubr.bf16.gmra.mrb[0].mxu0 %v570
        %v606 = vpop.f32.mrb[0].mxu0
        %v607 = vadd.f32 %v558, %v606
        %v608 = vpop.f32.mrb[0].mxu0
        %v609 = vpop.f32.mrb[0].mxu0
        %v610 = vpop.f32.mrb[0].mxu0
        %611 = vdwg.mxu0
        %s612 = sadd.s32 %s232, 2
        %s613 = smul.u32 %s612, 2
        %s614 = smul.addr %s613, 4
        %s615 = scalar_lea.vmem %s229, %s614
        %v616 = vld [vmem:[%s615] sm:$0xf]
        %v617 = vld [vmem:[%s359] sm:$0xf]
        %v618 = vld [vmem:[%s359 + $0x4] sm:$0xf]
        %v621 = vunpack.c.l.b16 %v617
        %v622 = vunpack.c.l.b16 %v618
        %v623 = vpack.c.b16 %v622, %v621
        %v626 = vsel %vm261, %v616, 0
        %628 = vmatprep.subr.bf16.mxu0 0
        %629 = vmatpush1.bf16.msra.mxu0 %v623
        %630 = vmatprep.subr.bf16.mxu0 0
        %631 = vmatpush1.bf16.msra.mxu0 0
        %632 = vmatprep.subr.bf16.mxu0 0
        %633 = vmatpush1.bf16.msra.mxu0 0
        %634 = vmatprep.subr.bf16.mxu0 0
        %635 = vmatpush1.bf16.msra.mxu0 0
        %636 = vmatprep.subr.bf16.mxu0 0
        %637 = vmatpush1.bf16.msra.mxu0 0
        %638 = vmatprep.subr.bf16.mxu0 0
        %639 = vmatpush1.bf16.msra.mxu0 0
        %640 = vmatprep.subr.bf16.mxu0 0
        %641 = vmatpush1.bf16.msra.mxu0 0
        %642 = vmatprep.subr.bf16.mxu0 0
        %643 = vmatpush1.bf16.msra.mxu0 0
        %644 = vmatprep.subr.bf16.mxu0 0
        %645 = vmatpush1.bf16.msra.mxu0 0
        %646 = vmatprep.subr.bf16.mxu0 0
        %647 = vmatpush1.bf16.msra.mxu0 0
        %648 = vmatprep.subr.bf16.mxu0 0
        %649 = vmatpush1.bf16.msra.mxu0 0
        %650 = vmatprep.subr.bf16.mxu0 0
        %651 = vmatpush1.bf16.msra.mxu0 0
        %652 = vmatprep.subr.bf16.mxu0 0
        %653 = vmatpush1.bf16.msra.mxu0 0
        %654 = vmatprep.subr.bf16.mxu0 0
        %655 = vmatpush1.bf16.msra.mxu0 0
        %656 = vmatprep.subr.bf16.mxu0 0
        %657 = vmatpush1.bf16.msra.mxu0 0
        %658 = vmatprep.subr.bf16.mxu0 0
        %659 = vmatpush1.bf16.msra.mxu0 0
        %660 = vmatprep.mubr.bf16.mxu0 0
        %661 = vmatmul.mubr.bf16.gmra.mrb[0].mxu0 %v626
        %v662 = vpop.f32.mrb[0].mxu0
        %v663 = vadd.f32 0.0, %v662
        %v664 = vpop.f32.mrb[0].mxu0
        %v665 = vpop.f32.mrb[0].mxu0
        %v666 = vpop.f32.mrb[0].mxu0
        %667 = vdwg.mxu0
        %v668 = vadd.f32 %v607, %v663
        %v669 = vld [vmem:[%s615] sm:$0xf]
        %v670 = vld [vmem:[%s615 + $0x4] sm:$0x1]
        %v671 = vld [vmem:[%s414] sm:$0xf]
        %v672 = vld [vmem:[%s414 + $0x4] sm:$0xf]
        %v675 = vunpack.c.l.b16 %v669
        %v676 = vunpack.c.l.b16 %v670
        %v677 = vpack.c.b16 %v676, %v675
        %v679 = vshrl.u32 %v677, 16
        %v681 = vshll.u32 %v677, 16
        %v683 = vrot.slane %v681, 1
        %v684 = vor.u32 %v679, %v683
        %v687 = vunpack.c.l.b16 %v671
        %v688 = vunpack.c.l.b16 %v672
        %v689 = vpack.c.b16 %v688, %v687
        %v692 = vsel %vm261, %v684, 0
        %694 = vmatprep.subr.bf16.mxu0 0
        %695 = vmatpush1.bf16.msra.mxu0 %v689
        %696 = vmatprep.subr.bf16.mxu0 0
        %697 = vmatpush1.bf16.msra.mxu0 0
        %698 = vmatprep.subr.bf16.mxu0 0
        %699 = vmatpush1.bf16.msra.mxu0 0
        %700 = vmatprep.subr.bf16.mxu0 0
        %701 = vmatpush1.bf16.msra.mxu0 0
        %702 = vmatprep.subr.bf16.mxu0 0
        %703 = vmatpush1.bf16.msra.mxu0 0
        %704 = vmatprep.subr.bf16.mxu0 0
        %705 = vmatpush1.bf16.msra.mxu0 0
        %706 = vmatprep.subr.bf16.mxu0 0
        %707 = vmatpush1.bf16.msra.mxu0 0
        %708 = vmatprep.subr.bf16.mxu0 0
        %709 = vmatpush1.bf16.msra.mxu0 0
        %710 = vmatprep.subr.bf16.mxu0 0
        %711 = vmatpush1.bf16.msra.mxu0 0
        %712 = vmatprep.subr.bf16.mxu0 0
        %713 = vmatpush1.bf16.msra.mxu0 0
        %714 = vmatprep.subr.bf16.mxu0 0
        %715 = vmatpush1.bf16.msra.mxu0 0
        %716 = vmatprep.subr.bf16.mxu0 0
        %717 = vmatpush1.bf16.msra.mxu0 0
        %718 = vmatprep.subr.bf16.mxu0 0
        %719 = vmatpush1.bf16.msra.mxu0 0
        %720 = vmatprep.subr.bf16.mxu0 0
        %721 = vmatpush1.bf16.msra.mxu0 0
        %722 = vmatprep.subr.bf16.mxu0 0
        %723 = vmatpush1.bf16.msra.mxu0 0
        %724 = vmatprep.subr.bf16.mxu0 0
        %725 = vmatpush1.bf16.msra.mxu0 0
        %726 = vmatprep.mubr.bf16.mxu0 0
        %727 = vmatmul.mubr.bf16.gmra.mrb[0].mxu0 %v692
        %v728 = vpop.f32.mrb[0].mxu0
        %v729 = vadd.f32 0.0, %v728
        %v730 = vpop.f32.mrb[0].mxu0
        %v731 = vpop.f32.mrb[0].mxu0
        %v732 = vpop.f32.mrb[0].mxu0
        %733 = vdwg.mxu0
        %v734 = vadd.f32 %v668, %v729
        %v735 = vpack.c.bf16 %v734, %v734
        %s736 = scalar_lea.vmem %s212, 4 [#allocation2]
        %737 = vst [vmem:[%s736] sm:$0xf] %v735
        %v738 = vrot.slane %v734, 4
        %v739 = vadd.f32 %v734, %v738
        %v740 = vrot.slane %v739, 2
        %v741 = vadd.f32 %v739, %v740
        %v742 = vrot.slane %v741, 1
        %v743 = vadd.f32 %v741, %v742
        %v744 = vadd.f32 %v487, %v743
        %v745 = vmul.f32 %v734, %v734
        %v746 = vrot.slane %v745, 4
        %v747 = vadd.f32 %v745, %v746
        %v748 = vrot.slane %v747, 2
        %v749 = vadd.f32 %v747, %v748
        %v750 = vrot.slane %v749, 1
        %v751 = vadd.f32 %v749, %v750
        %v752 = vadd.f32 %v495, %v751
        %v753 = vld [vmem:[%s615] sm:$0xf]
        %v754 = vld [vmem:[%s1] sm:$0xf]
        %v755 = vld [vmem:[%s1 + $0x4] sm:$0xf]
        %v756 = vld [vmem:[%s615 + $0x4] sm:$0x1]
        %v757 = vld [vmem:[%s240] sm:$0xf]
        %v758 = vld [vmem:[%s240 + $0x4] sm:$0xf]
        %v761 = vunpack.c.l.b16 %v753
        %v762 = vunpack.c.l.b16 %v756
        %v763 = vpack.c.b16 %v762, %v761
        %v765 = vshrl.u32 %v763, 16
        %v767 = vshll.u32 %v763, 16
        %v769 = vrot.slane %v767, 1
        %v770 = vor.u32 %v765, %v769
        %v773 = vunpack.c.l.b16 %v757
        %v774 = vunpack.c.l.b16 %v758
        %v775 = vpack.c.b16 %v774, %v773
        %v778 = vsel %vm261, %v770, 0
        %780 = vmatprep.subr.bf16.mxu0 0
        %781 = vmatpush1.bf16.msra.mxu0 %v775
        %782 = vmatprep.subr.bf16.mxu0 0
        %783 = vmatpush1.bf16.msra.mxu0 0
        %784 = vmatprep.subr.bf16.mxu0 0
        %785 = vmatpush1.bf16.msra.mxu0 0
        %786 = vmatprep.subr.bf16.mxu0 0
        %787 = vmatpush1.bf16.msra.mxu0 0
        %788 = vmatprep.subr.bf16.mxu0 0
        %789 = vmatpush1.bf16.msra.mxu0 0
        %790 = vmatprep.subr.bf16.mxu0 0
        %791 = vmatpush1.bf16.msra.mxu0 0
        %792 = vmatprep.subr.bf16.mxu0 0
        %793 = vmatpush1.bf16.msra.mxu0 0
        %794 = vmatprep.subr.bf16.mxu0 0
        %795 = vmatpush1.bf16.msra.mxu0 0
        %796 = vmatprep.subr.bf16.mxu0 0
        %797 = vmatpush1.bf16.msra.mxu0 0
        %798 = vmatprep.subr.bf16.mxu0 0
        %799 = vmatpush1.bf16.msra.mxu0 0
        %800 = vmatprep.subr.bf16.mxu0 0
        %801 = vmatpush1.bf16.msra.mxu0 0
        %802 = vmatprep.subr.bf16.mxu0 0
        %803 = vmatpush1.bf16.msra.mxu0 0
        %804 = vmatprep.subr.bf16.mxu0 0
        %805 = vmatpush1.bf16.msra.mxu0 0
        %806 = vmatprep.subr.bf16.mxu0 0
        %807 = vmatpush1.bf16.msra.mxu0 0
        %808 = vmatprep.subr.bf16.mxu0 0
        %809 = vmatpush1.bf16.msra.mxu0 0
        %810 = vmatprep.subr.bf16.mxu0 0
        %811 = vmatpush1.bf16.msra.mxu0 0
        %812 = vmatprep.mubr.bf16.mxu0 0
        %813 = vmatmul.mubr.bf16.gmra.mrb[0].mxu0 %v778
        %v814 = vpop.f32.mrb[0].mxu0
        %v815 = vadd.f32 0.0, %v814
        %v816 = vpop.f32.mrb[0].mxu0
        %v817 = vpop.f32.mrb[0].mxu0
        %v818 = vpop.f32.mrb[0].mxu0
        %819 = vdwg.mxu0
        %v822 = vunpack.c.l.b16 %v754
        %v823 = vunpack.c.l.b16 %v755
        %v824 = vpack.c.b16 %v823, %v822
        %v827 = vsel %vm261, %v753, 0
        %829 = vmatprep.subr.bf16.mxu0 0
        %830 = vmatpush1.bf16.msra.mxu0 %v824
        %831 = vmatprep.subr.bf16.mxu0 0
        %832 = vmatpush1.bf16.msra.mxu0 0
        %833 = vmatprep.subr.bf16.mxu0 0
        %834 = vmatpush1.bf16.msra.mxu0 0
        %835 = vmatprep.subr.bf16.mxu0 0
        %836 = vmatpush1.bf16.msra.mxu0 0
        %837 = vmatprep.subr.bf16.mxu0 0
        %838 = vmatpush1.bf16.msra.mxu0 0
        %839 = vmatprep.subr.bf16.mxu0 0
        %840 = vmatpush1.bf16.msra.mxu0 0
        %841 = vmatprep.subr.bf16.mxu0 0
        %842 = vmatpush1.bf16.msra.mxu0 0
        %843 = vmatprep.subr.bf16.mxu0 0
        %844 = vmatpush1.bf16.msra.mxu0 0
        %845 = vmatprep.subr.bf16.mxu0 0
        %846 = vmatpush1.bf16.msra.mxu0 0
        %847 = vmatprep.subr.bf16.mxu0 0
        %848 = vmatpush1.bf16.msra.mxu0 0
        %849 = vmatprep.subr.bf16.mxu0 0
        %850 = vmatpush1.bf16.msra.mxu0 0
        %851 = vmatprep.subr.bf16.mxu0 0
        %852 = vmatpush1.bf16.msra.mxu0 0
        %853 = vmatprep.subr.bf16.mxu0 0
        %854 = vmatpush1.bf16.msra.mxu0 0
        %855 = vmatprep.subr.bf16.mxu0 0
        %856 = vmatpush1.bf16.msra.mxu0 0
        %857 = vmatprep.subr.bf16.mxu0 0
        %858 = vmatpush1.bf16.msra.mxu0 0
        %859 = vmatprep.subr.bf16.mxu0 0
        %860 = vmatpush1.bf16.msra.mxu0 0
        %861 = vmatprep.mubr.bf16.mxu0 0
        %862 = vmatmul.mubr.bf16.gmra.mrb[0].mxu0 %v827
        %v863 = vpop.f32.mrb[0].mxu0
        %v864 = vadd.f32 %v815, %v863
        %v865 = vpop.f32.mrb[0].mxu0
        %v866 = vpop.f32.mrb[0].mxu0
        %v867 = vpop.f32.mrb[0].mxu0
        %868 = vdwg.mxu0
        %s869 = sadd.s32 %s232, 3
        %s870 = smul.u32 %s869, 2
        %s871 = smul.addr %s870, 4
        %s872 = scalar_lea.vmem %s229, %s871
        %v873 = vld [vmem:[%s872] sm:$0xf]
        %v874 = vld [vmem:[%s359] sm:$0xf]
        %v875 = vld [vmem:[%s359 + $0x4] sm:$0xf]
        %v878 = vunpack.c.l.b16 %v874
        %v879 = vunpack.c.l.b16 %v875
        %v880 = vpack.c.b16 %v879, %v878
        %v883 = vsel %vm261, %v873, 0
        %885 = vmatprep.subr.bf16.mxu0 0
        %886 = vmatpush1.bf16.msra.mxu0 %v880
        %887 = vmatprep.subr.bf16.mxu0 0
        %888 = vmatpush1.bf16.msra.mxu0 0
        %889 = vmatprep.subr.bf16.mxu0 0
        %890 = vmatpush1.bf16.msra.mxu0 0
        %891 = vmatprep.subr.bf16.mxu0 0
        %892 = vmatpush1.bf16.msra.mxu0 0
        %893 = vmatprep.subr.bf16.mxu0 0
        %894 = vmatpush1.bf16.msra.mxu0 0
        %895 = vmatprep.subr.bf16.mxu0 0
        %896 = vmatpush1.bf16.msra.mxu0 0
        %897 = vmatprep.subr.bf16.mxu0 0
        %898 = vmatpush1.bf16.msra.mxu0 0
        %899 = vmatprep.subr.bf16.mxu0 0
        %900 = vmatpush1.bf16.msra.mxu0 0
        %901 = vmatprep.subr.bf16.mxu0 0
        %902 = vmatpush1.bf16.msra.mxu0 0
        %903 = vmatprep.subr.bf16.mxu0 0
        %904 = vmatpush1.bf16.msra.mxu0 0
        %905 = vmatprep.subr.bf16.mxu0 0
        %906 = vmatpush1.bf16.msra.mxu0 0
        %907 = vmatprep.subr.bf16.mxu0 0
        %908 = vmatpush1.bf16.msra.mxu0 0
        %909 = vmatprep.subr.bf16.mxu0 0
        %910 = vmatpush1.bf16.msra.mxu0 0
        %911 = vmatprep.subr.bf16.mxu0 0
        %912 = vmatpush1.bf16.msra.mxu0 0
        %913 = vmatprep.subr.bf16.mxu0 0
        %914 = vmatpush1.bf16.msra.mxu0 0
        %915 = vmatprep.subr.bf16.mxu0 0
        %916 = vmatpush1.bf16.msra.mxu0 0
        %917 = vmatprep.mubr.bf16.mxu0 0
        %918 = vmatmul.mubr.bf16.gmra.mrb[0].mxu0 %v883
        %v919 = vpop.f32.mrb[0].mxu0
        %v920 = vadd.f32 0.0, %v919
        %v921 = vpop.f32.mrb[0].mxu0
        %v922 = vpop.f32.mrb[0].mxu0
        %v923 = vpop.f32.mrb[0].mxu0
        %924 = vdwg.mxu0
        %v925 = vadd.f32 %v864, %v920
        %v926 = vld [vmem:[%s872] sm:$0xf]
        %v927 = vld [vmem:[%s872 + $0x4] sm:$0x1]
        %v928 = vld [vmem:[%s414] sm:$0xf]
        %v929 = vld [vmem:[%s414 + $0x4] sm:$0xf]
        %v932 = vunpack.c.l.b16 %v926
        %v933 = vunpack.c.l.b16 %v927
        %v934 = vpack.c.b16 %v933, %v932
        %v936 = vshrl.u32 %v934, 16
        %v938 = vshll.u32 %v934, 16
        %v940 = vrot.slane %v938, 1
        %v941 = vor.u32 %v936, %v940
        %v944 = vunpack.c.l.b16 %v928
        %v945 = vunpack.c.l.b16 %v929
        %v946 = vpack.c.b16 %v945, %v944
        %v949 = vsel %vm261, %v941, 0
        %951 = vmatprep.subr.bf16.mxu0 0
        %952 = vmatpush1.bf16.msra.mxu0 %v946
        %953 = vmatprep.subr.bf16.mxu0 0
        %954 = vmatpush1.bf16.msra.mxu0 0
        %955 = vmatprep.subr.bf16.mxu0 0
        %956 = vmatpush1.bf16.msra.mxu0 0
        %957 = vmatprep.subr.bf16.mxu0 0
        %958 = vmatpush1.bf16.msra.mxu0 0
        %959 = vmatprep.subr.bf16.mxu0 0
        %960 = vmatpush1.bf16.msra.mxu0 0
        %961 = vmatprep.subr.bf16.mxu0 0
        %962 = vmatpush1.bf16.msra.mxu0 0
        %963 = vmatprep.subr.bf16.mxu0 0
        %964 = vmatpush1.bf16.msra.mxu0 0
        %965 = vmatprep.subr.bf16.mxu0 0
        %966 = vmatpush1.bf16.msra.mxu0 0
        %967 = vmatprep.subr.bf16.mxu0 0
        %968 = vmatpush1.bf16.msra.mxu0 0
        %969 = vmatprep.subr.bf16.mxu0 0
        %970 = vmatpush1.bf16.msra.mxu0 0
        %971 = vmatprep.subr.bf16.mxu0 0
        %972 = vmatpush1.bf16.msra.mxu0 0
        %973 = vmatprep.subr.bf16.mxu0 0
        %974 = vmatpush1.bf16.msra.mxu0 0
        %975 = vmatprep.subr.bf16.mxu0 0
        %976 = vmatpush1.bf16.msra.mxu0 0
        %977 = vmatprep.subr.bf16.mxu0 0
        %978 = vmatpush1.bf16.msra.mxu0 0
        %979 = vmatprep.subr.bf16.mxu0 0
        %980 = vmatpush1.bf16.msra.mxu0 0
        %981 = vmatprep.subr.bf16.mxu0 0
        %982 = vmatpush1.bf16.msra.mxu0 0
        %983 = vmatprep.mubr.bf16.mxu0 0
        %984 = vmatmul.mubr.bf16.gmra.mrb[0].mxu0 %v949
        %v985 = vpop.f32.mrb[0].mxu0
        %v986 = vadd.f32 0.0, %v985
        %v987 = vpop.f32.mrb[0].mxu0
        %v988 = vpop.f32.mrb[0].mxu0
        %v989 = vpop.f32.mrb[0].mxu0
        %990 = vdwg.mxu0
        %v991 = vadd.f32 %v925, %v986
        %v992 = vpack.c.bf16 %v991, %v991
        %s993 = scalar_lea.vmem %s212, 8 [#allocation2]
        %994 = vst [vmem:[%s993] sm:$0xf] %v992
        %v995 = vrot.slane %v991, 4
        %v996 = vadd.f32 %v991, %v995
        %v997 = vrot.slane %v996, 2
        %v998 = vadd.f32 %v996, %v997
        %v999 = vrot.slane %v998, 1
        %v1000 = vadd.f32 %v998, %v999
        %v1001 = vadd.f32 %v744, %v1000
        %v1002 = vmul.f32 %v991, %v991
        %v1003 = vrot.slane %v1002, 4
        %v1004 = vadd.f32 %v1002, %v1003
        %v1005 = vrot.slane %v1004, 2
        %v1006 = vadd.f32 %v1004, %v1005
        %v1007 = vrot.slane %v1006, 1
        %v1008 = vadd.f32 %v1006, %v1007
        %v1009 = vadd.f32 %v752, %v1008
        %v1010 = vld [vmem:[%s872] sm:$0xf]
        %v1011 = vld [vmem:[%s1] sm:$0xf]
        %v1012 = vld [vmem:[%s1 + $0x4] sm:$0xf]
        %v1013 = vld [vmem:[%s872 + $0x4] sm:$0x1]
        %v1014 = vld [vmem:[%s240] sm:$0xf]
        %v1015 = vld [vmem:[%s240 + $0x4] sm:$0xf]
        %v1018 = vunpack.c.l.b16 %v1010
        %v1019 = vunpack.c.l.b16 %v1013
        %v1020 = vpack.c.b16 %v1019, %v1018
        %v1022 = vshrl.u32 %v1020, 16
        %v1024 = vshll.u32 %v1020, 16
        %v1026 = vrot.slane %v1024, 1
        %v1027 = vor.u32 %v1022, %v1026
        %v1030 = vunpack.c.l.b16 %v1014
        %v1031 = vunpack.c.l.b16 %v1015
        %v1032 = vpack.c.b16 %v1031, %v1030
        %v1035 = vsel %vm261, %v1027, 0
        %1037 = vmatprep.subr.bf16.mxu0 0
        %1038 = vmatpush1.bf16.msra.mxu0 %v1032
        %1039 = vmatprep.subr.bf16.mxu0 0
        %1040 = vmatpush1.bf16.msra.mxu0 0
        %1041 = vmatprep.subr.bf16.mxu0 0
        %1042 = vmatpush1.bf16.msra.mxu0 0
        %1043 = vmatprep.subr.bf16.mxu0 0
        %1044 = vmatpush1.bf16.msra.mxu0 0
        %1045 = vmatprep.subr.bf16.mxu0 0
        %1046 = vmatpush1.bf16.msra.mxu0 0
        %1047 = vmatprep.subr.bf16.mxu0 0
        %1048 = vmatpush1.bf16.msra.mxu0 0
        %1049 = vmatprep.subr.bf16.mxu0 0
        %1050 = vmatpush1.bf16.msra.mxu0 0
        %1051 = vmatprep.subr.bf16.mxu0 0
        %1052 = vmatpush1.bf16.msra.mxu0 0
        %1053 = vmatprep.subr.bf16.mxu0 0
        %1054 = vmatpush1.bf16.msra.mxu0 0
        %1055 = vmatprep.subr.bf16.mxu0 0
        %1056 = vmatpush1.bf16.msra.mxu0 0
        %1057 = vmatprep.subr.bf16.mxu0 0
        %1058 = vmatpush1.bf16.msra.mxu0 0
        %1059 = vmatprep.subr.bf16.mxu0 0
        %1060 = vmatpush1.bf16.msra.mxu0 0
        %1061 = vmatprep.subr.bf16.mxu0 0
        %1062 = vmatpush1.bf16.msra.mxu0 0
        %1063 = vmatprep.subr.bf16.mxu0 0
        %1064 = vmatpush1.bf16.msra.mxu0 0
        %1065 = vmatprep.subr.bf16.mxu0 0
        %1066 = vmatpush1.bf16.msra.mxu0 0
        %1067 = vmatprep.subr.bf16.mxu0 0
        %1068 = vmatpush1.bf16.msra.mxu0 0
        %1069 = vmatprep.mubr.bf16.mxu0 0
        %1070 = vmatmul.mubr.bf16.gmra.mrb[0].mxu0 %v1035
        %v1071 = vpop.f32.mrb[0].mxu0
        %v1072 = vadd.f32 0.0, %v1071
        %v1073 = vpop.f32.mrb[0].mxu0
        %v1074 = vpop.f32.mrb[0].mxu0
        %v1075 = vpop.f32.mrb[0].mxu0
        %1076 = vdwg.mxu0
        %v1079 = vunpack.c.l.b16 %v1011
        %v1080 = vunpack.c.l.b16 %v1012
        %v1081 = vpack.c.b16 %v1080, %v1079
        %v1084 = vsel %vm261, %v1010, 0
        %1086 = vmatprep.subr.bf16.mxu0 0
        %1087 = vmatpush1.bf16.msra.mxu0 %v1081
        %1088 = vmatprep.subr.bf16.mxu0 0
        %1089 = vmatpush1.bf16.msra.mxu0 0
        %1090 = vmatprep.subr.bf16.mxu0 0
        %1091 = vmatpush1.bf16.msra.mxu0 0
        %1092 = vmatprep.subr.bf16.mxu0 0
        %1093 = vmatpush1.bf16.msra.mxu0 0
        %1094 = vmatprep.subr.bf16.mxu0 0
        %1095 = vmatpush1.bf16.msra.mxu0 0
        %1096 = vmatprep.subr.bf16.mxu0 0
        %1097 = vmatpush1.bf16.msra.mxu0 0
        %1098 = vmatprep.subr.bf16.mxu0 0
        %1099 = vmatpush1.bf16.msra.mxu0 0
        %1100 = vmatprep.subr.bf16.mxu0 0
        %1101 = vmatpush1.bf16.msra.mxu0 0
        %1102 = vmatprep.subr.bf16.mxu0 0
        %1103 = vmatpush1.bf16.msra.mxu0 0
        %1104 = vmatprep.subr.bf16.mxu0 0
        %1105 = vmatpush1.bf16.msra.mxu0 0
        %1106 = vmatprep.subr.bf16.mxu0 0
        %1107 = vmatpush1.bf16.msra.mxu0 0
        %1108 = vmatprep.subr.bf16.mxu0 0
        %1109 = vmatpush1.bf16.msra.mxu0 0
        %1110 = vmatprep.subr.bf16.mxu0 0
        %1111 = vmatpush1.bf16.msra.mxu0 0
        %1112 = vmatprep.subr.bf16.mxu0 0
        %1113 = vmatpush1.bf16.msra.mxu0 0
        %1114 = vmatprep.subr.bf16.mxu0 0
        %1115 = vmatpush1.bf16.msra.mxu0 0
        %1116 = vmatprep.subr.bf16.mxu0 0
        %1117 = vmatpush1.bf16.msra.mxu0 0
        %1118 = vmatprep.mubr.bf16.mxu0 0
        %1119 = vmatmul.mubr.bf16.gmra.mrb[0].mxu0 %v1084
        %v1120 = vpop.f32.mrb[0].mxu0
        %v1121 = vadd.f32 %v1072, %v1120
        %v1122 = vpop.f32.mrb[0].mxu0
        %v1123 = vpop.f32.mrb[0].mxu0
        %v1124 = vpop.f32.mrb[0].mxu0
        %1125 = vdwg.mxu0
        %s1126 = sadd.s32 %s232, 4
        %s1127 = smul.u32 %s1126, 2
        %s1128 = smul.addr %s1127, 4
        %s1129 = scalar_lea.vmem %s229, %s1128
        %v1130 = vld [vmem:[%s1129] sm:$0xf]
        %v1131 = vld [vmem:[%s359] sm:$0xf]
        %v1132 = vld [vmem:[%s359 + $0x4] sm:$0xf]
        %v1135 = vunpack.c.l.b16 %v1131
        %v1136 = vunpack.c.l.b16 %v1132
        %v1137 = vpack.c.b16 %v1136, %v1135
        %v1140 = vsel %vm261, %v1130, 0
        %1142 = vmatprep.subr.bf16.mxu0 0
        %1143 = vmatpush1.bf16.msra.mxu0 %v1137
        %1144 = vmatprep.subr.bf16.mxu0 0
        %1145 = vmatpush1.bf16.msra.mxu0 0
        %1146 = vmatprep.subr.bf16.mxu0 0
        %1147 = vmatpush1.bf16.msra.mxu0 0
        %1148 = vmatprep.subr.bf16.mxu0 0
        %1149 = vmatpush1.bf16.msra.mxu0 0
        %1150 = vmatprep.subr.bf16.mxu0 0
        %1151 = vmatpush1.bf16.msra.mxu0 0
        %1152 = vmatprep.subr.bf16.mxu0 0
        %1153 = vmatpush1.bf16.msra.mxu0 0
        %1154 = vmatprep.subr.bf16.mxu0 0
        %1155 = vmatpush1.bf16.msra.mxu0 0
        %1156 = vmatprep.subr.bf16.mxu0 0
        %1157 = vmatpush1.bf16.msra.mxu0 0
        %1158 = vmatprep.subr.bf16.mxu0 0
        %1159 = vmatpush1.bf16.msra.mxu0 0
        %1160 = vmatprep.subr.bf16.mxu0 0
        %1161 = vmatpush1.bf16.msra.mxu0 0
        %1162 = vmatprep.subr.bf16.mxu0 0
        %1163 = vmatpush1.bf16.msra.mxu0 0
        %1164 = vmatprep.subr.bf16.mxu0 0
        %1165 = vmatpush1.bf16.msra.mxu0 0
        %1166 = vmatprep.subr.bf16.mxu0 0
        %1167 = vmatpush1.bf16.msra.mxu0 0
        %1168 = vmatprep.subr.bf16.mxu0 0
        %1169 = vmatpush1.bf16.msra.mxu0 0
        %1170 = vmatprep.subr.bf16.mxu0 0
        %1171 = vmatpush1.bf16.msra.mxu0 0
        %1172 = vmatprep.subr.bf16.mxu0 0
        %1173 = vmatpush1.bf16.msra.mxu0 0
        %1174 = vmatprep.mubr.bf16.mxu0 0
        %1175 = vmatmul.mubr.bf16.gmra.mrb[0].mxu0 %v1140
        %v1176 = vpop.f32.mrb[0].mxu0
        %v1177 = vadd.f32 0.0, %v1176
        %v1178 = vpop.f32.mrb[0].mxu0
        %v1179 = vpop.f32.mrb[0].mxu0
        %v1180 = vpop.f32.mrb[0].mxu0
        %1181 = vdwg.mxu0
        %v1182 = vadd.f32 %v1121, %v1177
        %v1183 = vld [vmem:[%s1129] sm:$0xf]
        %v1184 = vld [vmem:[%s1129 + $0x4] sm:$0x1]
        %v1185 = vld [vmem:[%s414] sm:$0xf]
        %v1186 = vld [vmem:[%s414 + $0x4] sm:$0xf]
        %v1189 = vunpack.c.l.b16 %v1183
        %v1190 = vunpack.c.l.b16 %v1184
        %v1191 = vpack.c.b16 %v1190, %v1189
        %v1193 = vshrl.u32 %v1191, 16
        %v1195 = vshll.u32 %v1191, 16
        %v1197 = vrot.slane %v1195, 1
        %v1198 = vor.u32 %v1193, %v1197
        %v1201 = vunpack.c.l.b16 %v1185
        %v1202 = vunpack.c.l.b16 %v1186
        %v1203 = vpack.c.b16 %v1202, %v1201
        %v1206 = vsel %vm261, %v1198, 0
        %1208 = vmatprep.subr.bf16.mxu0 0
        %1209 = vmatpush1.bf16.msra.mxu0 %v1203
        %1210 = vmatprep.subr.bf16.mxu0 0
        %1211 = vmatpush1.bf16.msra.mxu0 0
        %1212 = vmatprep.subr.bf16.mxu0 0
        %1213 = vmatpush1.bf16.msra.mxu0 0
        %1214 = vmatprep.subr.bf16.mxu0 0
        %1215 = vmatpush1.bf16.msra.mxu0 0
        %1216 = vmatprep.subr.bf16.mxu0 0
        %1217 = vmatpush1.bf16.msra.mxu0 0
        %1218 = vmatprep.subr.bf16.mxu0 0
        %1219 = vmatpush1.bf16.msra.mxu0 0
        %1220 = vmatprep.subr.bf16.mxu0 0
        %1221 = vmatpush1.bf16.msra.mxu0 0
        %1222 = vmatprep.subr.bf16.mxu0 0
        %1223 = vmatpush1.bf16.msra.mxu0 0
        %1224 = vmatprep.subr.bf16.mxu0 0
        %1225 = vmatpush1.bf16.msra.mxu0 0
        %1226 = vmatprep.subr.bf16.mxu0 0
        %1227 = vmatpush1.bf16.msra.mxu0 0
        %1228 = vmatprep.subr.bf16.mxu0 0
        %1229 = vmatpush1.bf16.msra.mxu0 0
        %1230 = vmatprep.subr.bf16.mxu0 0
        %1231 = vmatpush1.bf16.msra.mxu0 0
        %1232 = vmatprep.subr.bf16.mxu0 0
        %1233 = vmatpush1.bf16.msra.mxu0 0
        %1234 = vmatprep.subr.bf16.mxu0 0
        %1235 = vmatpush1.bf16.msra.mxu0 0
        %1236 = vmatprep.subr.bf16.mxu0 0
        %1237 = vmatpush1.bf16.msra.mxu0 0
        %1238 = vmatprep.subr.bf16.mxu0 0
        %1239 = vmatpush1.bf16.msra.mxu0 0
        %1240 = vmatprep.mubr.bf16.mxu0 0
        %1241 = vmatmul.mubr.bf16.gmra.mrb[0].mxu0 %v1206
        %v1242 = vpop.f32.mrb[0].mxu0
        %v1243 = vadd.f32 0.0, %v1242
        %v1244 = vpop.f32.mrb[0].mxu0
        %v1245 = vpop.f32.mrb[0].mxu0
        %v1246 = vpop.f32.mrb[0].mxu0
        %1247 = vdwg.mxu0
        %v1248 = vadd.f32 %v1182, %v1243
        %v1249 = vpack.c.bf16 %v1248, %v1248
        %s1250 = scalar_lea.vmem %s212, 12 [#allocation2]
        %1251 = vst [vmem:[%s1250] sm:$0xf] %v1249
        %v1252 = vrot.slane %v1248, 4
        %v1253 = vadd.f32 %v1248, %v1252
        %v1254 = vrot.slane %v1253, 2
        %v1255 = vadd.f32 %v1253, %v1254
        %v1256 = vrot.slane %v1255, 1
        %v1257 = vadd.f32 %v1255, %v1256
        %v1258 = vadd.f32 %v1001, %v1257
        %v1259 = vmul.f32 %v1248, %v1248
        %v1260 = vrot.slane %v1259, 4
        %v1261 = vadd.f32 %v1259, %v1260
        %v1262 = vrot.slane %v1261, 2
        %v1263 = vadd.f32 %v1261, %v1262
        %v1264 = vrot.slane %v1263, 1
        %v1265 = vadd.f32 %v1263, %v1264
        %v1266 = vadd.f32 %v1009, %v1265
        %v1267 = vld [vmem:[%s1129] sm:$0xf]
        %v1268 = vld [vmem:[%s1] sm:$0xf]
        %v1269 = vld [vmem:[%s1 + $0x4] sm:$0xf]
        %v1270 = vld [vmem:[%s1129 + $0x4] sm:$0x1]
        %v1271 = vld [vmem:[%s240] sm:$0xf]
        %v1272 = vld [vmem:[%s240 + $0x4] sm:$0xf]
        %v1275 = vunpack.c.l.b16 %v1267
        %v1276 = vunpack.c.l.b16 %v1270
        %v1277 = vpack.c.b16 %v1276, %v1275
        %v1279 = vshrl.u32 %v1277, 16
        %v1281 = vshll.u32 %v1277, 16
        %v1283 = vrot.slane %v1281, 1
        %v1284 = vor.u32 %v1279, %v1283
        %v1287 = vunpack.c.l.b16 %v1271
        %v1288 = vunpack.c.l.b16 %v1272
        %v1289 = vpack.c.b16 %v1288, %v1287
        %v1292 = vsel %vm261, %v1284, 0
        %1294 = vmatprep.subr.bf16.mxu0 0
        %1295 = vmatpush1.bf16.msra.mxu0 %v1289
        %1296 = vmatprep.subr.bf16.mxu0 0
        %1297 = vmatpush1.bf16.msra.mxu0 0
        %1298 = vmatprep.subr.bf16.mxu0 0
        %1299 = vmatpush1.bf16.msra.mxu0 0
        %1300 = vmatprep.subr.bf16.mxu0 0
        %1301 = vmatpush1.bf16.msra.mxu0 0
        %1302 = vmatprep.subr.bf16.mxu0 0
        %1303 = vmatpush1.bf16.msra.mxu0 0
        %1304 = vmatprep.subr.bf16.mxu0 0
        %1305 = vmatpush1.bf16.msra.mxu0 0
        %1306 = vmatprep.subr.bf16.mxu0 0
        %1307 = vmatpush1.bf16.msra.mxu0 0
        %1308 = vmatprep.subr.bf16.mxu0 0
        %1309 = vmatpush1.bf16.msra.mxu0 0
        %1310 = vmatprep.subr.bf16.mxu0 0
        %1311 = vmatpush1.bf16.msra.mxu0 0
        %1312 = vmatprep.subr.bf16.mxu0 0
        %1313 = vmatpush1.bf16.msra.mxu0 0
        %1314 = vmatprep.subr.bf16.mxu0 0
        %1315 = vmatpush1.bf16.msra.mxu0 0
        %1316 = vmatprep.subr.bf16.mxu0 0
        %1317 = vmatpush1.bf16.msra.mxu0 0
        %1318 = vmatprep.subr.bf16.mxu0 0
        %1319 = vmatpush1.bf16.msra.mxu0 0
        %1320 = vmatprep.subr.bf16.mxu0 0
        %1321 = vmatpush1.bf16.msra.mxu0 0
        %1322 = vmatprep.subr.bf16.mxu0 0
        %1323 = vmatpush1.bf16.msra.mxu0 0
        %1324 = vmatprep.subr.bf16.mxu0 0
        %1325 = vmatpush1.bf16.msra.mxu0 0
        %1326 = vmatprep.mubr.bf16.mxu0 0
        %1327 = vmatmul.mubr.bf16.gmra.mrb[0].mxu0 %v1292
        %v1328 = vpop.f32.mrb[0].mxu0
        %v1329 = vadd.f32 0.0, %v1328
        %v1330 = vpop.f32.mrb[0].mxu0
        %v1331 = vpop.f32.mrb[0].mxu0
        %v1332 = vpop.f32.mrb[0].mxu0
        %1333 = vdwg.mxu0
        %v1336 = vunpack.c.l.b16 %v1268
        %v1337 = vunpack.c.l.b16 %v1269
        %v1338 = vpack.c.b16 %v1337, %v1336
        %v1341 = vsel %vm261, %v1267, 0
        %1343 = vmatprep.subr.bf16.mxu0 0
        %1344 = vmatpush1.bf16.msra.mxu0 %v1338
        %1345 = vmatprep.subr.bf16.mxu0 0
        %1346 = vmatpush1.bf16.msra.mxu0 0
        %1347 = vmatprep.subr.bf16.mxu0 0
        %1348 = vmatpush1.bf16.msra.mxu0 0
        %1349 = vmatprep.subr.bf16.mxu0 0
        %1350 = vmatpush1.bf16.msra.mxu0 0
        %1351 = vmatprep.subr.bf16.mxu0 0
        %1352 = vmatpush1.bf16.msra.mxu0 0
        %1353 = vmatprep.subr.bf16.mxu0 0
        %1354 = vmatpush1.bf16.msra.mxu0 0
        %1355 = vmatprep.subr.bf16.mxu0 0
        %1356 = vmatpush1.bf16.msra.mxu0 0
        %1357 = vmatprep.subr.bf16.mxu0 0
        %1358 = vmatpush1.bf16.msra.mxu0 0
        %1359 = vmatprep.subr.bf16.mxu0 0
        %1360 = vmatpush1.bf16.msra.mxu0 0
        %1361 = vmatprep.subr.bf16.mxu0 0
        %1362 = vmatpush1.bf16.msra.mxu0 0
        %1363 = vmatprep.subr.bf16.mxu0 0
        %1364 = vmatpush1.bf16.msra.mxu0 0
        %1365 = vmatprep.subr.bf16.mxu0 0
        %1366 = vmatpush1.bf16.msra.mxu0 0
        %1367 = vmatprep.subr.bf16.mxu0 0
        %1368 = vmatpush1.bf16.msra.mxu0 0
        %1369 = vmatprep.subr.bf16.mxu0 0
        %1370 = vmatpush1.bf16.msra.mxu0 0
        %1371 = vmatprep.subr.bf16.mxu0 0
        %1372 = vmatpush1.bf16.msra.mxu0 0
        %1373 = vmatprep.subr.bf16.mxu0 0
        %1374 = vmatpush1.bf16.msra.mxu0 0
        %1375 = vmatprep.mubr.bf16.mxu0 0
        %1376 = vmatmul.mubr.bf16.gmra.mrb[0].mxu0 %v1341
        %v1377 = vpop.f32.mrb[0].mxu0
        %v1378 = vadd.f32 %v1329, %v1377
        %v1379 = vpop.f32.mrb[0].mxu0
        %v1380 = vpop.f32.mrb[0].mxu0
        %v1381 = vpop.f32.mrb[0].mxu0
        %1382 = vdwg.mxu0
        %s1383 = sadd.s32 %s232, 5
        %s1384 = smul.u32 %s1383, 2
        %s1385 = smul.addr %s1384, 4
        %s1386 = scalar_lea.vmem %s229, %s1385
        %v1387 = vld [vmem:[%s1386] sm:$0xf]
        %v1388 = vld [vmem:[%s359] sm:$0xf]
        %v1389 = vld [vmem:[%s359 + $0x4] sm:$0xf]
        %v1392 = vunpack.c.l.b16 %v1388
        %v1393 = vunpack.c.l.b16 %v1389
        %v1394 = vpack.c.b16 %v1393, %v1392
        %v1397 = vsel %vm261, %v1387, 0
        %1399 = vmatprep.subr.bf16.mxu0 0
        %1400 = vmatpush1.bf16.msra.mxu0 %v1394
        %1401 = vmatprep.subr.bf16.mxu0 0
        %1402 = vmatpush1.bf16.msra.mxu0 0
        %1403 = vmatprep.subr.bf16.mxu0 0
        %1404 = vmatpush1.bf16.msra.mxu0 0
        %1405 = vmatprep.subr.bf16.mxu0 0
        %1406 = vmatpush1.bf16.msra.mxu0 0
        %1407 = vmatprep.subr.bf16.mxu0 0
        %1408 = vmatpush1.bf16.msra.mxu0 0
        %1409 = vmatprep.subr.bf16.mxu0 0
        %1410 = vmatpush1.bf16.msra.mxu0 0
        %1411 = vmatprep.subr.bf16.mxu0 0
        %1412 = vmatpush1.bf16.msra.mxu0 0
        %1413 = vmatprep.subr.bf16.mxu0 0
        %1414 = vmatpush1.bf16.msra.mxu0 0
        %1415 = vmatprep.subr.bf16.mxu0 0
        %1416 = vmatpush1.bf16.msra.mxu0 0
        %1417 = vmatprep.subr.bf16.mxu0 0
        %1418 = vmatpush1.bf16.msra.mxu0 0
        %1419 = vmatprep.subr.bf16.mxu0 0
        %1420 = vmatpush1.bf16.msra.mxu0 0
        %1421 = vmatprep.subr.bf16.mxu0 0
        %1422 = vmatpush1.bf16.msra.mxu0 0
        %1423 = vmatprep.subr.bf16.mxu0 0
        %1424 = vmatpush1.bf16.msra.mxu0 0
        %1425 = vmatprep.subr.bf16.mxu0 0
        %1426 = vmatpush1.bf16.msra.mxu0 0
        %1427 = vmatprep.subr.bf16.mxu0 0
        %1428 = vmatpush1.bf16.msra.mxu0 0
        %1429 = vmatprep.subr.bf16.mxu0 0
        %1430 = vmatpush1.bf16.msra.mxu0 0
        %1431 = vmatprep.mubr.bf16.mxu0 0
        %1432 = vmatmul.mubr.bf16.gmra.mrb[0].mxu0 %v1397
        %v1433 = vpop.f32.mrb[0].mxu0
        %v1434 = vadd.f32 0.0, %v1433
        %v1435 = vpop.f32.mrb[0].mxu0
        %v1436 = vpop.f32.mrb[0].mxu0
        %v1437 = vpop.f32.mrb[0].mxu0
        %1438 = vdwg.mxu0
        %v1439 = vadd.f32 %v1378, %v1434
        %v1440 = vld [vmem:[%s1386] sm:$0xf]
        %v1441 = vld [vmem:[%s1386 + $0x4] sm:$0x1]
        %v1442 = vld [vmem:[%s414] sm:$0xf]
        %v1443 = vld [vmem:[%s414 + $0x4] sm:$0xf]
        %v1446 = vunpack.c.l.b16 %v1440
        %v1447 = vunpack.c.l.b16 %v1441
        %v1448 = vpack.c.b16 %v1447, %v1446
        %v1450 = vshrl.u32 %v1448, 16
        %v1452 = vshll.u32 %v1448, 16
        %v1454 = vrot.slane %v1452, 1
        %v1455 = vor.u32 %v1450, %v1454
        %v1458 = vunpack.c.l.b16 %v1442
        %v1459 = vunpack.c.l.b16 %v1443
        %v1460 = vpack.c.b16 %v1459, %v1458
        %v1463 = vsel %vm261, %v1455, 0
        %1465 = vmatprep.subr.bf16.mxu0 0
        %1466 = vmatpush1.bf16.msra.mxu0 %v1460
        %1467 = vmatprep.subr.bf16.mxu0 0
        %1468 = vmatpush1.bf16.msra.mxu0 0
        %1469 = vmatprep.subr.bf16.mxu0 0
        %1470 = vmatpush1.bf16.msra.mxu0 0
        %1471 = vmatprep.subr.bf16.mxu0 0
        %1472 = vmatpush1.bf16.msra.mxu0 0
        %1473 = vmatprep.subr.bf16.mxu0 0
        %1474 = vmatpush1.bf16.msra.mxu0 0
        %1475 = vmatprep.subr.bf16.mxu0 0
        %1476 = vmatpush1.bf16.msra.mxu0 0
        %1477 = vmatprep.subr.bf16.mxu0 0
        %1478 = vmatpush1.bf16.msra.mxu0 0
        %1479 = vmatprep.subr.bf16.mxu0 0
        %1480 = vmatpush1.bf16.msra.mxu0 0
        %1481 = vmatprep.subr.bf16.mxu0 0
        %1482 = vmatpush1.bf16.msra.mxu0 0
        %1483 = vmatprep.subr.bf16.mxu0 0
        %1484 = vmatpush1.bf16.msra.mxu0 0
        %1485 = vmatprep.subr.bf16.mxu0 0
        %1486 = vmatpush1.bf16.msra.mxu0 0
        %1487 = vmatprep.subr.bf16.mxu0 0
        %1488 = vmatpush1.bf16.msra.mxu0 0
        %1489 = vmatprep.subr.bf16.mxu0 0
        %1490 = vmatpush1.bf16.msra.mxu0 0
        %1491 = vmatprep.subr.bf16.mxu0 0
        %1492 = vmatpush1.bf16.msra.mxu0 0
        %1493 = vmatprep.subr.bf16.mxu0 0
        %1494 = vmatpush1.bf16.msra.mxu0 0
        %1495 = vmatprep.subr.bf16.mxu0 0
        %1496 = vmatpush1.bf16.msra.mxu0 0
        %1497 = vmatprep.mubr.bf16.mxu0 0
        %1498 = vmatmul.mubr.bf16.gmra.mrb[0].mxu0 %v1463
        %v1499 = vpop.f32.mrb[0].mxu0
        %v1500 = vadd.f32 0.0, %v1499
        %v1501 = vpop.f32.mrb[0].mxu0
        %v1502 = vpop.f32.mrb[0].mxu0
        %v1503 = vpop.f32.mrb[0].mxu0
        %1504 = vdwg.mxu0
        %v1505 = vadd.f32 %v1439, %v1500
        %v1506 = vpack.c.bf16 %v1505, %v1505
        %s1507 = scalar_lea.vmem %s212, 16 [#allocation2]
        %1508 = vst [vmem:[%s1507] sm:$0xf] %v1506
        %v1509 = vrot.slane %v1505, 4
        %v1510 = vadd.f32 %v1505, %v1509
        %v1511 = vrot.slane %v1510, 2
        %v1512 = vadd.f32 %v1510, %v1511
        %v1513 = vrot.slane %v1512, 1
        %v1514 = vadd.f32 %v1512, %v1513
        %v1515 = vadd.f32 %v1258, %v1514
        %v1516 = vmul.f32 %v1505, %v1505
        %v1517 = vrot.slane %v1516, 4
        %v1518 = vadd.f32 %v1516, %v1517
        %v1519 = vrot.slane %v1518, 2
        %v1520 = vadd.f32 %v1518, %v1519
        %v1521 = vrot.slane %v1520, 1
        %v1522 = vadd.f32 %v1520, %v1521
        %v1523 = vadd.f32 %v1266, %v1522
        %v1524 = vld [vmem:[%s1386] sm:$0xf]
        %v1525 = vld [vmem:[%s1] sm:$0xf]
        %v1526 = vld [vmem:[%s1 + $0x4] sm:$0xf]
        %v1527 = vld [vmem:[%s1386 + $0x4] sm:$0x1]
        %v1528 = vld [vmem:[%s240] sm:$0xf]
        %v1529 = vld [vmem:[%s240 + $0x4] sm:$0xf]
        %v1532 = vunpack.c.l.b16 %v1524
        %v1533 = vunpack.c.l.b16 %v1527
        %v1534 = vpack.c.b16 %v1533, %v1532
        %v1536 = vshrl.u32 %v1534, 16
        %v1538 = vshll.u32 %v1534, 16
        %v1540 = vrot.slane %v1538, 1
        %v1541 = vor.u32 %v1536, %v1540
        %v1544 = vunpack.c.l.b16 %v1528
        %v1545 = vunpack.c.l.b16 %v1529
        %v1546 = vpack.c.b16 %v1545, %v1544
        %v1549 = vsel %vm261, %v1541, 0
        %1551 = vmatprep.subr.bf16.mxu0 0
        %1552 = vmatpush1.bf16.msra.mxu0 %v1546
        %1553 = vmatprep.subr.bf16.mxu0 0
        %1554 = vmatpush1.bf16.msra.mxu0 0
        %1555 = vmatprep.subr.bf16.mxu0 0
        %1556 = vmatpush1.bf16.msra.mxu0 0
        %1557 = vmatprep.subr.bf16.mxu0 0
        %1558 = vmatpush1.bf16.msra.mxu0 0
        %1559 = vmatprep.subr.bf16.mxu0 0
        %1560 = vmatpush1.bf16.msra.mxu0 0
        %1561 = vmatprep.subr.bf16.mxu0 0
        %1562 = vmatpush1.bf16.msra.mxu0 0
        %1563 = vmatprep.subr.bf16.mxu0 0
        %1564 = vmatpush1.bf16.msra.mxu0 0
        %1565 = vmatprep.subr.bf16.mxu0 0
        %1566 = vmatpush1.bf16.msra.mxu0 0
        %1567 = vmatprep.subr.bf16.mxu0 0
        %1568 = vmatpush1.bf16.msra.mxu0 0
        %1569 = vmatprep.subr.bf16.mxu0 0
        %1570 = vmatpush1.bf16.msra.mxu0 0
        %1571 = vmatprep.subr.bf16.mxu0 0
        %1572 = vmatpush1.bf16.msra.mxu0 0
        %1573 = vmatprep.subr.bf16.mxu0 0
        %1574 = vmatpush1.bf16.msra.mxu0 0
        %1575 = vmatprep.subr.bf16.mxu0 0
        %1576 = vmatpush1.bf16.msra.mxu0 0
        %1577 = vmatprep.subr.bf16.mxu0 0
        %1578 = vmatpush1.bf16.msra.mxu0 0
        %1579 = vmatprep.subr.bf16.mxu0 0
        %1580 = vmatpush1.bf16.msra.mxu0 0
        %1581 = vmatprep.subr.bf16.mxu0 0
        %1582 = vmatpush1.bf16.msra.mxu0 0
        %1583 = vmatprep.mubr.bf16.mxu0 0
        %1584 = vmatmul.mubr.bf16.gmra.mrb[0].mxu0 %v1549
        %v1585 = vpop.f32.mrb[0].mxu0
        %v1586 = vadd.f32 0.0, %v1585
        %v1587 = vpop.f32.mrb[0].mxu0
        %v1588 = vpop.f32.mrb[0].mxu0
        %v1589 = vpop.f32.mrb[0].mxu0
        %1590 = vdwg.mxu0
        %v1593 = vunpack.c.l.b16 %v1525
        %v1594 = vunpack.c.l.b16 %v1526
        %v1595 = vpack.c.b16 %v1594, %v1593
        %v1598 = vsel %vm261, %v1524, 0
        %1600 = vmatprep.subr.bf16.mxu0 0
        %1601 = vmatpush1.bf16.msra.mxu0 %v1595
        %1602 = vmatprep.subr.bf16.mxu0 0
        %1603 = vmatpush1.bf16.msra.mxu0 0
        %1604 = vmatprep.subr.bf16.mxu0 0
        %1605 = vmatpush1.bf16.msra.mxu0 0
        %1606 = vmatprep.subr.bf16.mxu0 0
        %1607 = vmatpush1.bf16.msra.mxu0 0
        %1608 = vmatprep.subr.bf16.mxu0 0
        %1609 = vmatpush1.bf16.msra.mxu0 0
        %1610 = vmatprep.subr.bf16.mxu0 0
        %1611 = vmatpush1.bf16.msra.mxu0 0
        %1612 = vmatprep.subr.bf16.mxu0 0
        %1613 = vmatpush1.bf16.msra.mxu0 0
        %1614 = vmatprep.subr.bf16.mxu0 0
        %1615 = vmatpush1.bf16.msra.mxu0 0
        %1616 = vmatprep.subr.bf16.mxu0 0
        %1617 = vmatpush1.bf16.msra.mxu0 0
        %1618 = vmatprep.subr.bf16.mxu0 0
        %1619 = vmatpush1.bf16.msra.mxu0 0
        %1620 = vmatprep.subr.bf16.mxu0 0
        %1621 = vmatpush1.bf16.msra.mxu0 0
        %1622 = vmatprep.subr.bf16.mxu0 0
        %1623 = vmatpush1.bf16.msra.mxu0 0
        %1624 = vmatprep.subr.bf16.mxu0 0
        %1625 = vmatpush1.bf16.msra.mxu0 0
        %1626 = vmatprep.subr.bf16.mxu0 0
        %1627 = vmatpush1.bf16.msra.mxu0 0
        %1628 = vmatprep.subr.bf16.mxu0 0
        %1629 = vmatpush1.bf16.msra.mxu0 0
        %1630 = vmatprep.subr.bf16.mxu0 0
        %1631 = vmatpush1.bf16.msra.mxu0 0
        %1632 = vmatprep.mubr.bf16.mxu0 0
        %1633 = vmatmul.mubr.bf16.gmra.mrb[0].mxu0 %v1598
        %v1634 = vpop.f32.mrb[0].mxu0
        %v1635 = vadd.f32 %v1586, %v1634
        %v1636 = vpop.f32.mrb[0].mxu0
        %v1637 = vpop.f32.mrb[0].mxu0
        %v1638 = vpop.f32.mrb[0].mxu0
        %1639 = vdwg.mxu0
        %s1640 = sadd.s32 %s232, 6
        %s1641 = smul.u32 %s1640, 2
        %s1642 = smul.addr %s1641, 4
        %s1643 = scalar_lea.vmem %s229, %s1642
        %v1644 = vld [vmem:[%s1643] sm:$0xf]
        %v1645 = vld [vmem:[%s359] sm:$0xf]
        %v1646 = vld [vmem:[%s359 + $0x4] sm:$0xf]
        %v1649 = vunpack.c.l.b16 %v1645
        %v1650 = vunpack.c.l.b16 %v1646
        %v1651 = vpack.c.b16 %v1650, %v1649
        %v1654 = vsel %vm261, %v1644, 0
        %1656 = vmatprep.subr.bf16.mxu0 0
        %1657 = vmatpush1.bf16.msra.mxu0 %v1651
        %1658 = vmatprep.subr.bf16.mxu0 0
        %1659 = vmatpush1.bf16.msra.mxu0 0
        %1660 = vmatprep.subr.bf16.mxu0 0
        %1661 = vmatpush1.bf16.msra.mxu0 0
        %1662 = vmatprep.subr.bf16.mxu0 0
        %1663 = vmatpush1.bf16.msra.mxu0 0
        %1664 = vmatprep.subr.bf16.mxu0 0
        %1665 = vmatpush1.bf16.msra.mxu0 0
        %1666 = vmatprep.subr.bf16.mxu0 0
        %1667 = vmatpush1.bf16.msra.mxu0 0
        %1668 = vmatprep.subr.bf16.mxu0 0
        %1669 = vmatpush1.bf16.msra.mxu0 0
        %1670 = vmatprep.subr.bf16.mxu0 0
        %1671 = vmatpush1.bf16.msra.mxu0 0
        %1672 = vmatprep.subr.bf16.mxu0 0
        %1673 = vmatpush1.bf16.msra.mxu0 0
        %1674 = vmatprep.subr.bf16.mxu0 0
        %1675 = vmatpush1.bf16.msra.mxu0 0
        %1676 = vmatprep.subr.bf16.mxu0 0
        %1677 = vmatpush1.bf16.msra.mxu0 0
        %1678 = vmatprep.subr.bf16.mxu0 0
        %1679 = vmatpush1.bf16.msra.mxu0 0
        %1680 = vmatprep.subr.bf16.mxu0 0
        %1681 = vmatpush1.bf16.msra.mxu0 0
        %1682 = vmatprep.subr.bf16.mxu0 0
        %1683 = vmatpush1.bf16.msra.mxu0 0
        %1684 = vmatprep.subr.bf16.mxu0 0
        %1685 = vmatpush1.bf16.msra.mxu0 0
        %1686 = vmatprep.subr.bf16.mxu0 0
        %1687 = vmatpush1.bf16.msra.mxu0 0
        %1688 = vmatprep.mubr.bf16.mxu0 0
        %1689 = vmatmul.mubr.bf16.gmra.mrb[0].mxu0 %v1654
        %v1690 = vpop.f32.mrb[0].mxu0
        %v1691 = vadd.f32 0.0, %v1690
        %v1692 = vpop.f32.mrb[0].mxu0
        %v1693 = vpop.f32.mrb[0].mxu0
        %v1694 = vpop.f32.mrb[0].mxu0
        %1695 = vdwg.mxu0
        %v1696 = vadd.f32 %v1635, %v1691
        %v1697 = vld [vmem:[%s1643] sm:$0xf]
        %v1698 = vld [vmem:[%s1643 + $0x4] sm:$0x1]
        %v1699 = vld [vmem:[%s414] sm:$0xf]
        %v1700 = vld [vmem:[%s414 + $0x4] sm:$0xf]
        %v1703 = vunpack.c.l.b16 %v1697
        %v1704 = vunpack.c.l.b16 %v1698
        %v1705 = vpack.c.b16 %v1704, %v1703
        %v1707 = vshrl.u32 %v1705, 16
        %v1709 = vshll.u32 %v1705, 16
        %v1711 = vrot.slane %v1709, 1
        %v1712 = vor.u32 %v1707, %v1711
        %v1715 = vunpack.c.l.b16 %v1699
        %v1716 = vunpack.c.l.b16 %v1700
        %v1717 = vpack.c.b16 %v1716, %v1715
        %v1720 = vsel %vm261, %v1712, 0
        %1722 = vmatprep.subr.bf16.mxu0 0
        %1723 = vmatpush1.bf16.msra.mxu0 %v1717
        %1724 = vmatprep.subr.bf16.mxu0 0
        %1725 = vmatpush1.bf16.msra.mxu0 0
        %1726 = vmatprep.subr.bf16.mxu0 0
        %1727 = vmatpush1.bf16.msra.mxu0 0
        %1728 = vmatprep.subr.bf16.mxu0 0
        %1729 = vmatpush1.bf16.msra.mxu0 0
        %1730 = vmatprep.subr.bf16.mxu0 0
        %1731 = vmatpush1.bf16.msra.mxu0 0
        %1732 = vmatprep.subr.bf16.mxu0 0
        %1733 = vmatpush1.bf16.msra.mxu0 0
        %1734 = vmatprep.subr.bf16.mxu0 0
        %1735 = vmatpush1.bf16.msra.mxu0 0
        %1736 = vmatprep.subr.bf16.mxu0 0
        %1737 = vmatpush1.bf16.msra.mxu0 0
        %1738 = vmatprep.subr.bf16.mxu0 0
        %1739 = vmatpush1.bf16.msra.mxu0 0
        %1740 = vmatprep.subr.bf16.mxu0 0
        %1741 = vmatpush1.bf16.msra.mxu0 0
        %1742 = vmatprep.subr.bf16.mxu0 0
        %1743 = vmatpush1.bf16.msra.mxu0 0
        %1744 = vmatprep.subr.bf16.mxu0 0
        %1745 = vmatpush1.bf16.msra.mxu0 0
        %1746 = vmatprep.subr.bf16.mxu0 0
        %1747 = vmatpush1.bf16.msra.mxu0 0
        %1748 = vmatprep.subr.bf16.mxu0 0
        %1749 = vmatpush1.bf16.msra.mxu0 0
        %1750 = vmatprep.subr.bf16.mxu0 0
        %1751 = vmatpush1.bf16.msra.mxu0 0
        %1752 = vmatprep.subr.bf16.mxu0 0
        %1753 = vmatpush1.bf16.msra.mxu0 0
        %1754 = vmatprep.mubr.bf16.mxu0 0
        %1755 = vmatmul.mubr.bf16.gmra.mrb[0].mxu0 %v1720
        %v1756 = vpop.f32.mrb[0].mxu0
        %v1757 = vadd.f32 0.0, %v1756
        %v1758 = vpop.f32.mrb[0].mxu0
        %v1759 = vpop.f32.mrb[0].mxu0
        %v1760 = vpop.f32.mrb[0].mxu0
        %1761 = vdwg.mxu0
        %v1762 = vadd.f32 %v1696, %v1757
        %v1763 = vpack.c.bf16 %v1762, %v1762
        %s1764 = scalar_lea.vmem %s212, 20 [#allocation2]
        %1765 = vst [vmem:[%s1764] sm:$0xf] %v1763
        %v1766 = vrot.slane %v1762, 4
        %v1767 = vadd.f32 %v1762, %v1766
        %v1768 = vrot.slane %v1767, 2
        %v1769 = vadd.f32 %v1767, %v1768
        %v1770 = vrot.slane %v1769, 1
        %v1771 = vadd.f32 %v1769, %v1770
        %v1772 = vadd.f32 %v1515, %v1771
        %v1773 = vmul.f32 %v1762, %v1762
        %v1774 = vrot.slane %v1773, 4
        %v1775 = vadd.f32 %v1773, %v1774
        %v1776 = vrot.slane %v1775, 2
        %v1777 = vadd.f32 %v1775, %v1776
        %v1778 = vrot.slane %v1777, 1
        %v1779 = vadd.f32 %v1777, %v1778
        %v1780 = vadd.f32 %v1523, %v1779
        %v1781 = vld [vmem:[%s1643] sm:$0xf]
        %v1782 = vld [vmem:[%s1] sm:$0xf]
        %v1783 = vld [vmem:[%s1 + $0x4] sm:$0xf]
        %v1784 = vld [vmem:[%s1643 + $0x4] sm:$0x1]
        %v1785 = vld [vmem:[%s240] sm:$0xf]
        %v1786 = vld [vmem:[%s240 + $0x4] sm:$0xf]
        %v1789 = vunpack.c.l.b16 %v1781
        %v1790 = vunpack.c.l.b16 %v1784
        %v1791 = vpack.c.b16 %v1790, %v1789
        %v1793 = vshrl.u32 %v1791, 16
        %v1795 = vshll.u32 %v1791, 16
        %v1797 = vrot.slane %v1795, 1
        %v1798 = vor.u32 %v1793, %v1797
        %v1801 = vunpack.c.l.b16 %v1785
        %v1802 = vunpack.c.l.b16 %v1786
        %v1803 = vpack.c.b16 %v1802, %v1801
        %v1806 = vsel %vm261, %v1798, 0
        %1808 = vmatprep.subr.bf16.mxu0 0
        %1809 = vmatpush1.bf16.msra.mxu0 %v1803
        %1810 = vmatprep.subr.bf16.mxu0 0
        %1811 = vmatpush1.bf16.msra.mxu0 0
        %1812 = vmatprep.subr.bf16.mxu0 0
        %1813 = vmatpush1.bf16.msra.mxu0 0
        %1814 = vmatprep.subr.bf16.mxu0 0
        %1815 = vmatpush1.bf16.msra.mxu0 0
        %1816 = vmatprep.subr.bf16.mxu0 0
        %1817 = vmatpush1.bf16.msra.mxu0 0
        %1818 = vmatprep.subr.bf16.mxu0 0
        %1819 = vmatpush1.bf16.msra.mxu0 0
        %1820 = vmatprep.subr.bf16.mxu0 0
        %1821 = vmatpush1.bf16.msra.mxu0 0
        %1822 = vmatprep.subr.bf16.mxu0 0
        %1823 = vmatpush1.bf16.msra.mxu0 0
        %1824 = vmatprep.subr.bf16.mxu0 0
        %1825 = vmatpush1.bf16.msra.mxu0 0
        %1826 = vmatprep.subr.bf16.mxu0 0
        %1827 = vmatpush1.bf16.msra.mxu0 0
        %1828 = vmatprep.subr.bf16.mxu0 0
        %1829 = vmatpush1.bf16.msra.mxu0 0
        %1830 = vmatprep.subr.bf16.mxu0 0
        %1831 = vmatpush1.bf16.msra.mxu0 0
        %1832 = vmatprep.subr.bf16.mxu0 0
        %1833 = vmatpush1.bf16.msra.mxu0 0
        %1834 = vmatprep.subr.bf16.mxu0 0
        %1835 = vmatpush1.bf16.msra.mxu0 0
        %1836 = vmatprep.subr.bf16.mxu0 0
        %1837 = vmatpush1.bf16.msra.mxu0 0
        %1838 = vmatprep.subr.bf16.mxu0 0
        %1839 = vmatpush1.bf16.msra.mxu0 0
        %1840 = vmatprep.mubr.bf16.mxu0 0
        %1841 = vmatmul.mubr.bf16.gmra.mrb[0].mxu0 %v1806
        %v1842 = vpop.f32.mrb[0].mxu0
        %v1843 = vadd.f32 0.0, %v1842
        %v1844 = vpop.f32.mrb[0].mxu0
        %v1845 = vpop.f32.mrb[0].mxu0
        %v1846 = vpop.f32.mrb[0].mxu0
        %1847 = vdwg.mxu0
        %v1850 = vunpack.c.l.b16 %v1782
        %v1851 = vunpack.c.l.b16 %v1783
        %v1852 = vpack.c.b16 %v1851, %v1850
        %v1855 = vsel %vm261, %v1781, 0
        %1857 = vmatprep.subr.bf16.mxu0 0
        %1858 = vmatpush1.bf16.msra.mxu0 %v1852
        %1859 = vmatprep.subr.bf16.mxu0 0
        %1860 = vmatpush1.bf16.msra.mxu0 0
        %1861 = vmatprep.subr.bf16.mxu0 0
        %1862 = vmatpush1.bf16.msra.mxu0 0
        %1863 = vmatprep.subr.bf16.mxu0 0
        %1864 = vmatpush1.bf16.msra.mxu0 0
        %1865 = vmatprep.subr.bf16.mxu0 0
        %1866 = vmatpush1.bf16.msra.mxu0 0
        %1867 = vmatprep.subr.bf16.mxu0 0
        %1868 = vmatpush1.bf16.msra.mxu0 0
        %1869 = vmatprep.subr.bf16.mxu0 0
        %1870 = vmatpush1.bf16.msra.mxu0 0
        %1871 = vmatprep.subr.bf16.mxu0 0
        %1872 = vmatpush1.bf16.msra.mxu0 0
        %1873 = vmatprep.subr.bf16.mxu0 0
        %1874 = vmatpush1.bf16.msra.mxu0 0
        %1875 = vmatprep.subr.bf16.mxu0 0
        %1876 = vmatpush1.bf16.msra.mxu0 0
        %1877 = vmatprep.subr.bf16.mxu0 0
        %1878 = vmatpush1.bf16.msra.mxu0 0
        %1879 = vmatprep.subr.bf16.mxu0 0
        %1880 = vmatpush1.bf16.msra.mxu0 0
        %1881 = vmatprep.subr.bf16.mxu0 0
        %1882 = vmatpush1.bf16.msra.mxu0 0
        %1883 = vmatprep.subr.bf16.mxu0 0
        %1884 = vmatpush1.bf16.msra.mxu0 0
        %1885 = vmatprep.subr.bf16.mxu0 0
        %1886 = vmatpush1.bf16.msra.mxu0 0
        %1887 = vmatprep.subr.bf16.mxu0 0
        %1888 = vmatpush1.bf16.msra.mxu0 0
        %1889 = vmatprep.mubr.bf16.mxu0 0
        %1890 = vmatmul.mubr.bf16.gmra.mrb[0].mxu0 %v1855
        %v1891 = vpop.f32.mrb[0].mxu0
        %v1892 = vadd.f32 %v1843, %v1891
        %v1893 = vpop.f32.mrb[0].mxu0
        %v1894 = vpop.f32.mrb[0].mxu0
        %v1895 = vpop.f32.mrb[0].mxu0
        %1896 = vdwg.mxu0
        %s1897 = sadd.s32 %s232, 7
        %s1898 = smul.u32 %s1897, 2
        %s1899 = smul.addr %s1898, 4
        %s1900 = scalar_lea.vmem %s229, %s1899
        %v1901 = vld [vmem:[%s1900] sm:$0xf]
        %v1902 = vld [vmem:[%s359] sm:$0xf]
        %v1903 = vld [vmem:[%s359 + $0x4] sm:$0xf]
        %v1906 = vunpack.c.l.b16 %v1902
        %v1907 = vunpack.c.l.b16 %v1903
        %v1908 = vpack.c.b16 %v1907, %v1906
        %v1911 = vsel %vm261, %v1901, 0
        %1913 = vmatprep.subr.bf16.mxu0 0
        %1914 = vmatpush1.bf16.msra.mxu0 %v1908
        %1915 = vmatprep.subr.bf16.mxu0 0
        %1916 = vmatpush1.bf16.msra.mxu0 0
        %1917 = vmatprep.subr.bf16.mxu0 0
        %1918 = vmatpush1.bf16.msra.mxu0 0
        %1919 = vmatprep.subr.bf16.mxu0 0
        %1920 = vmatpush1.bf16.msra.mxu0 0
        %1921 = vmatprep.subr.bf16.mxu0 0
        %1922 = vmatpush1.bf16.msra.mxu0 0
        %1923 = vmatprep.subr.bf16.mxu0 0
        %1924 = vmatpush1.bf16.msra.mxu0 0
        %1925 = vmatprep.subr.bf16.mxu0 0
        %1926 = vmatpush1.bf16.msra.mxu0 0
        %1927 = vmatprep.subr.bf16.mxu0 0
        %1928 = vmatpush1.bf16.msra.mxu0 0
        %1929 = vmatprep.subr.bf16.mxu0 0
        %1930 = vmatpush1.bf16.msra.mxu0 0
        %1931 = vmatprep.subr.bf16.mxu0 0
        %1932 = vmatpush1.bf16.msra.mxu0 0
        %1933 = vmatprep.subr.bf16.mxu0 0
        %1934 = vmatpush1.bf16.msra.mxu0 0
        %1935 = vmatprep.subr.bf16.mxu0 0
        %1936 = vmatpush1.bf16.msra.mxu0 0
        %1937 = vmatprep.subr.bf16.mxu0 0
        %1938 = vmatpush1.bf16.msra.mxu0 0
        %1939 = vmatprep.subr.bf16.mxu0 0
        %1940 = vmatpush1.bf16.msra.mxu0 0
        %1941 = vmatprep.subr.bf16.mxu0 0
        %1942 = vmatpush1.bf16.msra.mxu0 0
        %1943 = vmatprep.subr.bf16.mxu0 0
        %1944 = vmatpush1.bf16.msra.mxu0 0
        %1945 = vmatprep.mubr.bf16.mxu0 0
        %1946 = vmatmul.mubr.bf16.gmra.mrb[0].mxu0 %v1911
        %v1947 = vpop.f32.mrb[0].mxu0
        %v1948 = vadd.f32 0.0, %v1947
        %v1949 = vpop.f32.mrb[0].mxu0
        %v1950 = vpop.f32.mrb[0].mxu0
        %v1951 = vpop.f32.mrb[0].mxu0
        %1952 = vdwg.mxu0
        %v1953 = vadd.f32 %v1892, %v1948
        %v1954 = vld [vmem:[%s1900] sm:$0xf]
        %v1955 = vld [vmem:[%s1900 + $0x4] sm:$0x1]
        %v1956 = vld [vmem:[%s414] sm:$0xf]
        %v1957 = vld [vmem:[%s414 + $0x4] sm:$0xf]
        %v1960 = vunpack.c.l.b16 %v1954
        %v1961 = vunpack.c.l.b16 %v1955
        %v1962 = vpack.c.b16 %v1961, %v1960
        %v1964 = vshrl.u32 %v1962, 16
        %v1966 = vshll.u32 %v1962, 16
        %v1968 = vrot.slane %v1966, 1
        %v1969 = vor.u32 %v1964, %v1968
        %v1972 = vunpack.c.l.b16 %v1956
        %v1973 = vunpack.c.l.b16 %v1957
        %v1974 = vpack.c.b16 %v1973, %v1972
        %v1977 = vsel %vm261, %v1969, 0
        %1979 = vmatprep.subr.bf16.mxu0 0
        %1980 = vmatpush1.bf16.msra.mxu0 %v1974
        %1981 = vmatprep.subr.bf16.mxu0 0
        %1982 = vmatpush1.bf16.msra.mxu0 0
        %1983 = vmatprep.subr.bf16.mxu0 0
        %1984 = vmatpush1.bf16.msra.mxu0 0
        %1985 = vmatprep.subr.bf16.mxu0 0
        %1986 = vmatpush1.bf16.msra.mxu0 0
        %1987 = vmatprep.subr.bf16.mxu0 0
        %1988 = vmatpush1.bf16.msra.mxu0 0
        %1989 = vmatprep.subr.bf16.mxu0 0
        %1990 = vmatpush1.bf16.msra.mxu0 0
        %1991 = vmatprep.subr.bf16.mxu0 0
        %1992 = vmatpush1.bf16.msra.mxu0 0
        %1993 = vmatprep.subr.bf16.mxu0 0
        %1994 = vmatpush1.bf16.msra.mxu0 0
        %1995 = vmatprep.subr.bf16.mxu0 0
        %1996 = vmatpush1.bf16.msra.mxu0 0
        %1997 = vmatprep.subr.bf16.mxu0 0
        %1998 = vmatpush1.bf16.msra.mxu0 0
        %1999 = vmatprep.subr.bf16.mxu0 0
        %2000 = vmatpush1.bf16.msra.mxu0 0
        %2001 = vmatprep.subr.bf16.mxu0 0
        %2002 = vmatpush1.bf16.msra.mxu0 0
        %2003 = vmatprep.subr.bf16.mxu0 0
        %2004 = vmatpush1.bf16.msra.mxu0 0
        %2005 = vmatprep.subr.bf16.mxu0 0
        %2006 = vmatpush1.bf16.msra.mxu0 0
        %2007 = vmatprep.subr.bf16.mxu0 0
        %2008 = vmatpush1.bf16.msra.mxu0 0
        %2009 = vmatprep.subr.bf16.mxu0 0
        %2010 = vmatpush1.bf16.msra.mxu0 0
        %2011 = vmatprep.mubr.bf16.mxu0 0
        %2012 = vmatmul.mubr.bf16.gmra.mrb[0].mxu0 %v1977
        %v2013 = vpop.f32.mrb[0].mxu0
        %v2014 = vadd.f32 0.0, %v2013
        %v2015 = vpop.f32.mrb[0].mxu0
        %v2016 = vpop.f32.mrb[0].mxu0
        %v2017 = vpop.f32.mrb[0].mxu0
        %2018 = vdwg.mxu0
        %v2019 = vadd.f32 %v1953, %v2014
        %v2020 = vpack.c.bf16 %v2019, %v2019
        %s2021 = scalar_lea.vmem %s212, 24 [#allocation2]
        %2022 = vst [vmem:[%s2021] sm:$0xf] %v2020
        %v2023 = vrot.slane %v2019, 4
        %v2024 = vadd.f32 %v2019, %v2023
        %v2025 = vrot.slane %v2024, 2
        %v2026 = vadd.f32 %v2024, %v2025
        %v2027 = vrot.slane %v2026, 1
        %v2028 = vadd.f32 %v2026, %v2027
        %v2029 = vadd.f32 %v1772, %v2028
        %v2030 = vmul.f32 %v2019, %v2019
        %v2031 = vrot.slane %v2030, 4
        %v2032 = vadd.f32 %v2030, %v2031
        %v2033 = vrot.slane %v2032, 2
        %v2034 = vadd.f32 %v2032, %v2033
        %v2035 = vrot.slane %v2034, 1
        %v2036 = vadd.f32 %v2034, %v2035
        %v2037 = vadd.f32 %v1780, %v2036
        %v2038 = vld [vmem:[%s1900] sm:$0xf]
        %v2039 = vld [vmem:[%s1] sm:$0xf]
        %v2040 = vld [vmem:[%s1 + $0x4] sm:$0xf]
        %v2041 = vld [vmem:[%s1900 + $0x4] sm:$0x1]
        %v2042 = vld [vmem:[%s240] sm:$0xf]
        %v2043 = vld [vmem:[%s240 + $0x4] sm:$0xf]
        %v2046 = vunpack.c.l.b16 %v2038
        %v2047 = vunpack.c.l.b16 %v2041
        %v2048 = vpack.c.b16 %v2047, %v2046
        %v2050 = vshrl.u32 %v2048, 16
        %v2052 = vshll.u32 %v2048, 16
        %v2054 = vrot.slane %v2052, 1
        %v2055 = vor.u32 %v2050, %v2054
        %v2058 = vunpack.c.l.b16 %v2042
        %v2059 = vunpack.c.l.b16 %v2043
        %v2060 = vpack.c.b16 %v2059, %v2058
        %v2063 = vsel %vm261, %v2055, 0
        %2065 = vmatprep.subr.bf16.mxu0 0
        %2066 = vmatpush1.bf16.msra.mxu0 %v2060
        %2067 = vmatprep.subr.bf16.mxu0 0
        %2068 = vmatpush1.bf16.msra.mxu0 0
        %2069 = vmatprep.subr.bf16.mxu0 0
        %2070 = vmatpush1.bf16.msra.mxu0 0
        %2071 = vmatprep.subr.bf16.mxu0 0
        %2072 = vmatpush1.bf16.msra.mxu0 0
        %2073 = vmatprep.subr.bf16.mxu0 0
        %2074 = vmatpush1.bf16.msra.mxu0 0
        %2075 = vmatprep.subr.bf16.mxu0 0
        %2076 = vmatpush1.bf16.msra.mxu0 0
        %2077 = vmatprep.subr.bf16.mxu0 0
        %2078 = vmatpush1.bf16.msra.mxu0 0
        %2079 = vmatprep.subr.bf16.mxu0 0
        %2080 = vmatpush1.bf16.msra.mxu0 0
        %2081 = vmatprep.subr.bf16.mxu0 0
        %2082 = vmatpush1.bf16.msra.mxu0 0
        %2083 = vmatprep.subr.bf16.mxu0 0
        %2084 = vmatpush1.bf16.msra.mxu0 0
        %2085 = vmatprep.subr.bf16.mxu0 0
        %2086 = vmatpush1.bf16.msra.mxu0 0
        %2087 = vmatprep.subr.bf16.mxu0 0
        %2088 = vmatpush1.bf16.msra.mxu0 0
        %2089 = vmatprep.subr.bf16.mxu0 0
        %2090 = vmatpush1.bf16.msra.mxu0 0
        %2091 = vmatprep.subr.bf16.mxu0 0
        %2092 = vmatpush1.bf16.msra.mxu0 0
        %2093 = vmatprep.subr.bf16.mxu0 0
        %2094 = vmatpush1.bf16.msra.mxu0 0
        %2095 = vmatprep.subr.bf16.mxu0 0
        %2096 = vmatpush1.bf16.msra.mxu0 0
        %2097 = vmatprep.mubr.bf16.mxu0 0
        %2098 = vmatmul.mubr.bf16.gmra.mrb[0].mxu0 %v2063
        %v2099 = vpop.f32.mrb[0].mxu0
        %v2100 = vadd.f32 0.0, %v2099
        %v2101 = vpop.f32.mrb[0].mxu0
        %v2102 = vpop.f32.mrb[0].mxu0
        %v2103 = vpop.f32.mrb[0].mxu0
        %2104 = vdwg.mxu0
        %v2107 = vunpack.c.l.b16 %v2039
        %v2108 = vunpack.c.l.b16 %v2040
        %v2109 = vpack.c.b16 %v2108, %v2107
        %v2112 = vsel %vm261, %v2038, 0
        %2114 = vmatprep.subr.bf16.mxu0 0
        %2115 = vmatpush1.bf16.msra.mxu0 %v2109
        %2116 = vmatprep.subr.bf16.mxu0 0
        %2117 = vmatpush1.bf16.msra.mxu0 0
        %2118 = vmatprep.subr.bf16.mxu0 0
        %2119 = vmatpush1.bf16.msra.mxu0 0
        %2120 = vmatprep.subr.bf16.mxu0 0
        %2121 = vmatpush1.bf16.msra.mxu0 0
        %2122 = vmatprep.subr.bf16.mxu0 0
        %2123 = vmatpush1.bf16.msra.mxu0 0
        %2124 = vmatprep.subr.bf16.mxu0 0
        %2125 = vmatpush1.bf16.msra.mxu0 0
        %2126 = vmatprep.subr.bf16.mxu0 0
        %2127 = vmatpush1.bf16.msra.mxu0 0
        %2128 = vmatprep.subr.bf16.mxu0 0
        %2129 = vmatpush1.bf16.msra.mxu0 0
        %2130 = vmatprep.subr.bf16.mxu0 0
        %2131 = vmatpush1.bf16.msra.mxu0 0
        %2132 = vmatprep.subr.bf16.mxu0 0
        %2133 = vmatpush1.bf16.msra.mxu0 0
        %2134 = vmatprep.subr.bf16.mxu0 0
        %2135 = vmatpush1.bf16.msra.mxu0 0
        %2136 = vmatprep.subr.bf16.mxu0 0
        %2137 = vmatpush1.bf16.msra.mxu0 0
        %2138 = vmatprep.subr.bf16.mxu0 0
        %2139 = vmatpush1.bf16.msra.mxu0 0
        %2140 = vmatprep.subr.bf16.mxu0 0
        %2141 = vmatpush1.bf16.msra.mxu0 0
        %2142 = vmatprep.subr.bf16.mxu0 0
        %2143 = vmatpush1.bf16.msra.mxu0 0
        %2144 = vmatprep.subr.bf16.mxu0 0
        %2145 = vmatpush1.bf16.msra.mxu0 0
        %2146 = vmatprep.mubr.bf16.mxu0 0
        %2147 = vmatmul.mubr.bf16.gmra.mrb[0].mxu0 %v2112
        %v2148 = vpop.f32.mrb[0].mxu0
        %v2149 = vadd.f32 %v2100, %v2148
        %v2150 = vpop.f32.mrb[0].mxu0
        %v2151 = vpop.f32.mrb[0].mxu0
        %v2152 = vpop.f32.mrb[0].mxu0
        %2153 = vdwg.mxu0
        %s2154 = sadd.s32 %s232, 8
        %s2155 = smul.u32 %s2154, 2
        %s2156 = smul.addr %s2155, 4
        %s2157 = scalar_lea.vmem %s229, %s2156
        %v2158 = vld [vmem:[%s2157] sm:$0xf]
        %v2159 = vld [vmem:[%s359] sm:$0xf]
        %v2160 = vld [vmem:[%s359 + $0x4] sm:$0xf]
        %v2163 = vunpack.c.l.b16 %v2159
        %v2164 = vunpack.c.l.b16 %v2160
        %v2165 = vpack.c.b16 %v2164, %v2163
        %v2168 = vsel %vm261, %v2158, 0
        %2170 = vmatprep.subr.bf16.mxu0 0
        %2171 = vmatpush1.bf16.msra.mxu0 %v2165
        %2172 = vmatprep.subr.bf16.mxu0 0
        %2173 = vmatpush1.bf16.msra.mxu0 0
        %2174 = vmatprep.subr.bf16.mxu0 0
        %2175 = vmatpush1.bf16.msra.mxu0 0
        %2176 = vmatprep.subr.bf16.mxu0 0
        %2177 = vmatpush1.bf16.msra.mxu0 0
        %2178 = vmatprep.subr.bf16.mxu0 0
        %2179 = vmatpush1.bf16.msra.mxu0 0
        %2180 = vmatprep.subr.bf16.mxu0 0
        %2181 = vmatpush1.bf16.msra.mxu0 0
        %2182 = vmatprep.subr.bf16.mxu0 0
        %2183 = vmatpush1.bf16.msra.mxu0 0
        %2184 = vmatprep.subr.bf16.mxu0 0
        %2185 = vmatpush1.bf16.msra.mxu0 0
        %2186 = vmatprep.subr.bf16.mxu0 0
        %2187 = vmatpush1.bf16.msra.mxu0 0
        %2188 = vmatprep.subr.bf16.mxu0 0
        %2189 = vmatpush1.bf16.msra.mxu0 0
        %2190 = vmatprep.subr.bf16.mxu0 0
        %2191 = vmatpush1.bf16.msra.mxu0 0
        %2192 = vmatprep.subr.bf16.mxu0 0
        %2193 = vmatpush1.bf16.msra.mxu0 0
        %2194 = vmatprep.subr.bf16.mxu0 0
        %2195 = vmatpush1.bf16.msra.mxu0 0
        %2196 = vmatprep.subr.bf16.mxu0 0
        %2197 = vmatpush1.bf16.msra.mxu0 0
        %2198 = vmatprep.subr.bf16.mxu0 0
        %2199 = vmatpush1.bf16.msra.mxu0 0
        %2200 = vmatprep.subr.bf16.mxu0 0
        %2201 = vmatpush1.bf16.msra.mxu0 0
        %2202 = vmatprep.mubr.bf16.mxu0 0
        %2203 = vmatmul.mubr.bf16.gmra.mrb[0].mxu0 %v2168
        %v2204 = vpop.f32.mrb[0].mxu0
        %v2205 = vadd.f32 0.0, %v2204
        %v2206 = vpop.f32.mrb[0].mxu0
        %v2207 = vpop.f32.mrb[0].mxu0
        %v2208 = vpop.f32.mrb[0].mxu0
        %2209 = vdwg.mxu0
        %v2210 = vadd.f32 %v2149, %v2205
        %v2211 = vld [vmem:[%s2157] sm:$0xf]
        %v2212 = vld [vmem:[%s2157 + $0x4] sm:$0x1]
        %v2213 = vld [vmem:[%s414] sm:$0xf]
        %v2214 = vld [vmem:[%s414 + $0x4] sm:$0xf]
        %v2217 = vunpack.c.l.b16 %v2211
        %v2218 = vunpack.c.l.b16 %v2212
        %v2219 = vpack.c.b16 %v2218, %v2217
        %v2221 = vshrl.u32 %v2219, 16
        %v2223 = vshll.u32 %v2219, 16
        %v2225 = vrot.slane %v2223, 1
        %v2226 = vor.u32 %v2221, %v2225
        %v2229 = vunpack.c.l.b16 %v2213
        %v2230 = vunpack.c.l.b16 %v2214
        %v2231 = vpack.c.b16 %v2230, %v2229
        %v2234 = vsel %vm261, %v2226, 0
        %2236 = vmatprep.subr.bf16.mxu0 0
        %2237 = vmatpush1.bf16.msra.mxu0 %v2231
        %2238 = vmatprep.subr.bf16.mxu0 0
        %2239 = vmatpush1.bf16.msra.mxu0 0
        %2240 = vmatprep.subr.bf16.mxu0 0
        %2241 = vmatpush1.bf16.msra.mxu0 0
        %2242 = vmatprep.subr.bf16.mxu0 0
        %2243 = vmatpush1.bf16.msra.mxu0 0
        %2244 = vmatprep.subr.bf16.mxu0 0
        %2245 = vmatpush1.bf16.msra.mxu0 0
        %2246 = vmatprep.subr.bf16.mxu0 0
        %2247 = vmatpush1.bf16.msra.mxu0 0
        %2248 = vmatprep.subr.bf16.mxu0 0
        %2249 = vmatpush1.bf16.msra.mxu0 0
        %2250 = vmatprep.subr.bf16.mxu0 0
        %2251 = vmatpush1.bf16.msra.mxu0 0
        %2252 = vmatprep.subr.bf16.mxu0 0
        %2253 = vmatpush1.bf16.msra.mxu0 0
        %2254 = vmatprep.subr.bf16.mxu0 0
        %2255 = vmatpush1.bf16.msra.mxu0 0
        %2256 = vmatprep.subr.bf16.mxu0 0
        %2257 = vmatpush1.bf16.msra.mxu0 0
        %2258 = vmatprep.subr.bf16.mxu0 0
        %2259 = vmatpush1.bf16.msra.mxu0 0
        %2260 = vmatprep.subr.bf16.mxu0 0
        %2261 = vmatpush1.bf16.msra.mxu0 0
        %2262 = vmatprep.subr.bf16.mxu0 0
        %2263 = vmatpush1.bf16.msra.mxu0 0
        %2264 = vmatprep.subr.bf16.mxu0 0
        %2265 = vmatpush1.bf16.msra.mxu0 0
        %2266 = vmatprep.subr.bf16.mxu0 0
        %2267 = vmatpush1.bf16.msra.mxu0 0
        %2268 = vmatprep.mubr.bf16.mxu0 0
        %2269 = vmatmul.mubr.bf16.gmra.mrb[0].mxu0 %v2234
        %v2270 = vpop.f32.mrb[0].mxu0
        %v2271 = vadd.f32 0.0, %v2270
        %v2272 = vpop.f32.mrb[0].mxu0
        %v2273 = vpop.f32.mrb[0].mxu0
        %v2274 = vpop.f32.mrb[0].mxu0
        %2275 = vdwg.mxu0
        %v2276 = vadd.f32 %v2210, %v2271
        %v2277 = vpack.c.bf16 %v2276, %v2276
        %s2278 = scalar_lea.vmem %s212, 28 [#allocation2]
        %2279 = vst [vmem:[%s2278] sm:$0xf] %v2277
        %v2280 = vrot.slane %v2276, 4
        %v2281 = vadd.f32 %v2276, %v2280
        %v2282 = vrot.slane %v2281, 2
        %v2283 = vadd.f32 %v2281, %v2282
        %v2284 = vrot.slane %v2283, 1
        %v2285 = vadd.f32 %v2283, %v2284
        %v2286 = vadd.f32 %v2029, %v2285
        %v2287 = vmul.f32 %v2276, %v2276
        %v2288 = vrot.slane %v2287, 4
        %v2289 = vadd.f32 %v2287, %v2288
        %v2290 = vrot.slane %v2289, 2
        %v2291 = vadd.f32 %v2289, %v2290
        %v2292 = vrot.slane %v2291, 1
        %v2293 = vadd.f32 %v2291, %v2292
        %v2294 = vadd.f32 %v2037, %v2293
        %2295 = vst [vmem:[%s218] sm:$0x1] %v2286
        %2296 = vst [vmem:[%s224] sm:$0x1] %v2294
        %s2297 = sand.u32 %s91, 1
        %s2298 = scalar_lea.sflag [#allocation3], %s2297
        %s2299 = sand.u32 %s91, 1
        %s2300 = smul.addr %s2299, 32
        %s2301 = scalar_lea.vmem [#allocation2], %s2300
        %s2302 = sand.u32 %s22, 1
        %s2303 = scalar_lea.sflag [#allocation5], %s2302
        %s2304 = sand.u32 %s119, 1
        %s2305 = scalar_lea.vmem [#allocation4], %s2304
        %s2306 = sand.u32 %s22, 1
        %s2307 = scalar_lea.sflag [#allocation5], %s2306
        %s2308 = sand.u32 %s147, 1
        %s2309 = scalar_lea.vmem [#allocation6], %s2308
        // Predicated region
        $region29: #{tpu_custom_call.1} parent=27 // pred_check
          %p2310 = pneg %p101
        $region30: #{tpu_custom_call.1} parent=27 // pred_check_branch
          %2312 = sbr.rel (%p2310) target = $region32
        $region31: #{tpu_custom_call.1} parent=27 // pred_region
          %s2313 = smul.u32 8, %s27
          %s2315 = ssub.s32 512, 512
          %2316 = vsyncadd %s2298, %s2315
          %s2317 = smul.addr %s26, 8
          %s2318 = sadd.s32 %s2313, %s2317
          %s2319 = smul.addr %s2318, 64
          %s2320 = scalar_lea.hbm %s2, %s2319
          %s2321 = sshll.u32 %s2301, 4
          %s2322 = int_to_ptr.vmem [resolvable:$true] %s2321
          %2327 = dma.vmem_to_hbm [thread:$0]  %s2322, 512, %s2320, %s2298, 64, 64, 4
        $region32: #{tpu_custom_call.1} parent=27 // pred_fallthru
          _
        // Predicated region
        $region33: #{tpu_custom_call.1} parent=27 // pred_check
          %p2328 = pneg %p129
        $region34: #{tpu_custom_call.1} parent=27 // pred_check_branch
          %2330 = sbr.rel (%p2328) target = $region36
        $region35: #{tpu_custom_call.1} parent=27 // pred_region
          %s2332 = ssub.s32 16, 16
          %2333 = vsyncadd %s2303, %s2332
          %s2334 = sadd.s32 %s27, %s26
          %s2335 = smul.addr %s2334, 16
          %s2336 = scalar_lea.hbm %s3, %s2335
          %s2338 = sshll.u32 %s2305, 4
          %s2339 = int_to_ptr.vmem [resolvable:$true] %s2338
          %2341 = dma.vmem_to_hbm [thread:$0]  %s2339, 16, %s2336, %s2303
        $region36: #{tpu_custom_call.1} parent=27 // pred_fallthru
          _
        // Predicated region
        $region37: #{tpu_custom_call.1} parent=27 // pred_check
          %p2342 = pneg %p157
        $region38: #{tpu_custom_call.1} parent=27 // pred_check_branch
          %2344 = sbr.rel (%p2342) target = $region40
        $region39: #{tpu_custom_call.1} parent=27 // pred_region
          %s2346 = ssub.s32 16, 16
          %2347 = vsyncadd %s2307, %s2346
          %s2348 = sadd.s32 %s27, %s26
          %s2349 = smul.addr %s2348, 16
          %s2350 = scalar_lea.hbm %s4, %s2349
          %s2352 = sshll.u32 %s2309, 4
          %s2353 = int_to_ptr.vmem [resolvable:$true] %s2352
          %2355 = dma.vmem_to_hbm [thread:$0]  %s2353, 16, %s2350, %s2307
        $region40: #{tpu_custom_call.1} parent=27 // pred_fallthru
          _
      $region28: #{tpu_custom_call.1} parent=5 // pred_fallthru
        _
      %p2356 = scmp.le.s32.totalorder 2, %s17
      // Predicated region
      $region41: #{tpu_custom_call.1} parent=5 // pred_check
        %p2357 = pneg %p2356
      $region42: #{tpu_custom_call.1} parent=5 // pred_check_branch
        %2359 = sbr.rel (%p2357) target = $region44
      $region43: #{tpu_custom_call.1} parent=5 // pred_region
        %s2360 = ssub.s32 %s17, 2
        // Predicated region
        $region45: #{tpu_custom_call.1} parent=43 // pred_check
          %p2361 = pneg %p107
        $region46: #{tpu_custom_call.1} parent=43 // pred_check_branch
          %2363 = sbr.rel (%p2361) target = $region48
        $region47: #{tpu_custom_call.1} parent=43 // pred_region
          %s2364 = sand.u32 %s92, 1
          %s2365 = scalar_lea.sflag [#allocation3], %s2364
          %s2366 = sand.u32 %s92, 1
          %s2367 = smul.addr %s2366, 32
          %s2368 = scalar_lea.vmem [#allocation2], %s2367
          %2369 = dma.done %s2365, 512
        $region48: #{tpu_custom_call.1} parent=43 // pred_fallthru
          _
        // Predicated region
        $region49: #{tpu_custom_call.1} parent=43 // pred_check
          %p2370 = pneg %p135
        $region50: #{tpu_custom_call.1} parent=43 // pred_check_branch
          %2372 = sbr.rel (%p2370) target = $region52
        $region51: #{tpu_custom_call.1} parent=43 // pred_region
          %s2373 = sand.u32 %s23, 1
          %s2374 = scalar_lea.sflag [#allocation5], %s2373
          %s2375 = sand.u32 %s120, 1
          %s2376 = scalar_lea.vmem [#allocation4], %s2375
          %2377 = dma.done %s2374, 16
        $region52: #{tpu_custom_call.1} parent=43 // pred_fallthru
          _
        // Predicated region
        $region53: #{tpu_custom_call.1} parent=43 // pred_check
          %p2378 = pneg %p163
        $region54: #{tpu_custom_call.1} parent=43 // pred_check_branch
          %2380 = sbr.rel (%p2378) target = $region56
        $region55: #{tpu_custom_call.1} parent=43 // pred_region
          %s2381 = sand.u32 %s23, 1
          %s2382 = scalar_lea.sflag [#allocation5], %s2381
          %s2383 = sand.u32 %s148, 1
          %s2384 = scalar_lea.vmem [#allocation6], %s2383
          %2385 = dma.done %s2382, 16
        $region56: #{tpu_custom_call.1} parent=43 // pred_fallthru
          _
      $region44: #{tpu_custom_call.1} parent=5 // pred_fallthru
        _
    $region6: #{tpu_custom_call.1} parent=1 // loop_footer
      %s21 = sadd.s32 1, %s17
    $region7: #{tpu_custom_call.1} parent=1 // loop_footer_branch
      %16 = sbr.rel target = $region3
    $region8: #{tpu_custom_call.1} parent=1 // loop_exit
      _
    %2386 = vsyncpa [#allocation3], 1
    %s2387 = scalar_lea.sflag [#allocation3], 1
    %2388 = vsyncpa %s2387, 1
    %2389 = vsyncpa [#allocation5], 1
    %s2390 = scalar_lea.sflag [#allocation5], 1
    %2391 = vsyncpa %s2390, 1

</llo_original>
